<compile_context>
chip_gen: v7x
topology: tpu7x:2x2x1
jax: 0.10.0
libtpu: 0.0.40
codegen_flags: <defaults>
</compile_context>

<pallas_src>
import functools

import jax
import jax.numpy as jnp
from jax.experimental import pallas as pl
from jax.experimental.pallas import tpu as pltpu


# --------------------------------------------------------------------------- #
# Fused kernel: [conv3x3 + (BN+bias) + ReLU] x 2 for one image per grid step.
# --------------------------------------------------------------------------- #
def _double_conv_kernel(x_ref, w1_ref, b1_ref, w2_ref, b2_ref, o_ref,
                        xpad_ref, col1_ref, ypad_ref, col2_ref,
                        *, H, W, Cin, Cout):
    HW = H * W

    # ----------------- block_1: conv3x3 (pad=1) + BN/bias + ReLU ---------- #
    # "same" padding entirely in VMEM: zero the scratch, copy the interior.
    xpad_ref[...] = jnp.zeros_like(xpad_ref)
    xpad_ref[:, 1:H + 1, 1:W + 1] = x_ref[...].astype(jnp.float32)

    # im2col into a VMEM scratch -> one MXU matmul with K = 9*Cin
    # (bounded vreg pressure, no 9-matmul accumulation chain).
    for kh in range(3):
        for kw in range(3):
            r = (kh * 3 + kw) * Cin
            col1_ref[r:r + Cin, :] = (
                xpad_ref[:, kh:kh + H, kw:kw + W].reshape(Cin, HW))

    y1 = jnp.dot(w1_ref[...], col1_ref[...].astype(jnp.bfloat16),
                 preferred_element_type=jnp.float32)          # (Cout, HW) f32
    y1 = jnp.maximum(y1 + b1_ref[...], 0.0)                   # fused bias+ReLU
    # TODO(synk): Dropout2d(p=0.5) training mode not implemented (identity).

    # ----------------- block_2: conv3x3 (pad=1) + BN/bias + ReLU ---------- #
    ypad_ref[...] = jnp.zeros_like(ypad_ref)
    ypad_ref[:, 1:H + 1, 1:W + 1] = y1.reshape(Cout, H, W)

    for kh in range(3):
        for kw in range(3):
            r = (kh * 3 + kw) * Cout
            col2_ref[r:r + Cout, :] = (
                ypad_ref[:, kh:kh + H, kw:kw + W].reshape(Cout, HW))

    y2 = jnp.dot(w2_ref[...], col2_ref[...].astype(jnp.bfloat16),
                 preferred_element_type=jnp.float32)          # (Cout, HW) f32
    y2 = jnp.maximum(y2 + b2_ref[...], 0.0)

    # Lane-dense store: minor dim is H*W (256 here) -> full-width vst.
    o_ref[...] = y2


# --------------------------------------------------------------------------- #
# Wrapper: NCHW in, NCHW out.  No transposes, no jnp.pad.
# --------------------------------------------------------------------------- #
def double_conv_forward(x_nchw, params1, params2):
    N, Cin, H, W = x_nchw.shape
    Cout = params1["w2d"].shape[0]
    HW = H * W

    # bf16 activations over HBM / for the MXU (f32 accumulation in-kernel).
    x_bf16 = x_nchw.astype(jnp.bfloat16)

    kernel = functools.partial(
        _double_conv_kernel, H=H, W=W, Cin=Cin, Cout=Cout)

    flops = 2 * N * HW * 9 * (Cin * Cout + Cout * Cout)
    bytes_accessed = (
        N * Cin * HW * 2          # x (bf16)
        + N * Cout * HW * 4       # out (f32)
        + (Cout * 9 * Cin + Cout * 9 * Cout) * 2   # folded weights (bf16)
        + 2 * Cout * 4)           # biases (f32)

    out_flat = pl.pallas_call(
        kernel,
        out_shape=jax.ShapeDtypeStruct((N, Cout, HW), jnp.float32),
        grid=(N,),
        in_specs=[
            # one image per grid step (batch dim squeezed out of the block)
            pl.BlockSpec((None, Cin, H, W), lambda n: (n, 0, 0, 0)),
            # weights / biases: same block every step -> fetched once
            pl.BlockSpec((Cout, 9 * Cin), lambda n: (0, 0)),
            pl.BlockSpec((Cout, 1), lambda n: (0, 0)),
            pl.BlockSpec((Cout, 9 * Cout), lambda n: (0, 0)),
            pl.BlockSpec((Cout, 1), lambda n: (0, 0)),
        ],
        out_specs=pl.BlockSpec((None, Cout, HW), lambda n: (n, 0, 0)),
        scratch_shapes=[
            pltpu.VMEM((Cin, H + 2, W + 2), jnp.float32),    # padded input
            pltpu.VMEM((9 * Cin, HW), jnp.float32),          # im2col block 1
            pltpu.VMEM((Cout, H + 2, W + 2), jnp.float32),   # padded interm.
            pltpu.VMEM((9 * Cout, HW), jnp.float32),         # im2col block 2
        ],
        compiler_params=pltpu.CompilerParams(
            # batch axis is independent -> shard across TensorCores (v7x / MC)
            dimension_semantics=("parallel",),
            # explicit scoped-VMEM budget; safely under v7x's 64 MiB physical
            vmem_limit_bytes=32 * 1024 * 1024,
        ),
        cost_estimate=pl.CostEstimate(
            flops=flops, transcendentals=0, bytes_accessed=bytes_accessed),
    )(x_bf16, params1["w2d"], params1["bias"], params2["w2d"], params2["bias"])

    # (N, Cout, H*W) -> (N, Cout, H, W): split of the minor dim, no data move.
    return out_flat.reshape(N, Cout, H, W)


# --------------------------------------------------------------------------- #
# Parameter construction (deterministic).  BN (eval) folded into the conv.
# --------------------------------------------------------------------------- #
def make_convblock_params(key, cin, cout, eps=1e-5):
    k = jax.random.split(key, 6)
    fan_in = cin * 9
    bound = 1.0 / jnp.sqrt(fan_in)
    # Conv2d weights, PyTorch layout (Cout, Cin, 3, 3), and bias
    w_oihw = jax.random.uniform(k[0], (cout, cin, 3, 3), jnp.float32, -bound, bound)
    conv_b = jax.random.uniform(k[1], (cout,), jnp.float32, -bound, bound)
    # BatchNorm2d params + running stats (eval mode)
    gamma = jax.random.uniform(k[2], (cout,), jnp.float32, 0.5, 1.5)
    beta = jax.random.normal(k[3], (cout,), jnp.float32) * 0.1
    run_mean = jax.random.normal(k[4], (cout,), jnp.float32) * 0.1
    run_var = jax.random.uniform(k[5], (cout,), jnp.float32, 0.5, 1.5)
    # Fold: BN(conv(x, w) + b) == conv(x, w * s) + ((b - mean) * s + beta)
    scale = gamma / jnp.sqrt(run_var + eps)
    w_folded = w_oihw * scale[:, None, None, None]             # (Cout,Cin,3,3)
    bias = (conv_b - run_mean) * scale + beta                  # (Cout,)
    # im2col weight layout: column index = (kh*3 + kw)*Cin + ci
    w2d = jnp.transpose(w_folded, (0, 2, 3, 1)).reshape(cout, 9 * cin)
    return dict(
        w2d=w2d.astype(jnp.bfloat16),                 # kernel matmul weights
        w_conv=w_folded.astype(jnp.bfloat16),         # OIHW copy for reference
        bias=bias.reshape(cout, 1).astype(jnp.float32),
    )


# --------------------------------------------------------------------------- #
# Pure-JAX reference (same folded params, same bf16 quantization points).
# --------------------------------------------------------------------------- #
def _ref_forward(x_nchw, p1, p2):
    def block(z, p):
        y = jax.lax.conv_general_dilated(
            z.astype(jnp.bfloat16), p["w_conv"],
            window_strides=(1, 1), padding=((1, 1), (1, 1)),
            dimension_numbers=("NCHW", "OIHW", "NCHW"),
            preferred_element_type=jnp.float32)
        y = y + p["bias"].reshape(1, -1, 1, 1)
        return jnp.maximum(y, 0.0)
    return block(block(x_nchw.astype(jnp.float32), p1), p2)


if __name__ == "__main__":
    key = jax.random.PRNGKey(0)
    kx, k1, k2 = jax.random.split(key, 3)

    N, CIN, H, W = 2, 4, 16, 16
    COUT = 8

    x = jax.random.normal(kx, (N, CIN, H, W), jnp.float32)  # NCHW, like PyTorch
    params1 = make_convblock_params(k1, CIN, COUT)    # block_1: in_  -> out_
    params2 = make_convblock_params(k2, COUT, COUT)   # block_2: out_ -> out_

    out = jax.jit(double_conv_forward)(x, params1, params2)
    out = jax.block_until_ready(out)
    assert out.shape == (N, COUT, H, W), out.shape

    ref = jax.block_until_ready(_ref_forward(x, params1, params2))
    max_err = float(jnp.max(jnp.abs(out - ref)))
    assert jnp.allclose(out, ref, rtol=2e-3, atol=2e-3), max_err

    print("KERNEL_OK")
</pallas_src>

<mosaic_0001>
module attributes {stable_mosaic.version = 11 : i64} {
  func.func @_double_conv_kernel(%arg0: i32, %arg1: memref<1x4x16x16xbf16, #tpu.memory_space<vmem>>, %arg2: memref<8x36xbf16, #tpu.memory_space<vmem>>, %arg3: memref<8x1xf32, #tpu.memory_space<vmem>>, %arg4: memref<8x72xbf16, #tpu.memory_space<vmem>>, %arg5: memref<8x1xf32, #tpu.memory_space<vmem>>, %arg6: memref<1x8x256xf32, #tpu.memory_space<vmem>>, %arg7: memref<4x18x18xf32, #tpu.memory_space<vmem>>, %arg8: memref<36x256xf32, #tpu.memory_space<vmem>>, %arg9: memref<8x18x18xf32, #tpu.memory_space<vmem>>, %arg10: memref<72x256xf32, #tpu.memory_space<vmem>>) attributes {dimension_semantics = [#tpu.dimension_semantics<parallel>], iteration_bounds = array<i64: 2>, scalar_prefetch = 0 : i64, scratch_operands = 4 : i64, tpu.core_type = #tpu.core_type<tc>, window_params = [{transform_indices = @transform_0, window_bounds = array<i64: 1, 4, 16, 16>}, {pipeline_mode = #tpu.pipeline_mode<synchronous>, transform_indices = @transform_1, window_bounds = array<i64: 8, 36>}, {pipeline_mode = #tpu.pipeline_mode<synchronous>, transform_indices = @transform_2, window_bounds = array<i64: 8, 1>}, {pipeline_mode = #tpu.pipeline_mode<synchronous>, transform_indices = @transform_3, window_bounds = array<i64: 8, 72>}, {pipeline_mode = #tpu.pipeline_mode<synchronous>, transform_indices = @transform_4, window_bounds = array<i64: 8, 1>}, {transform_indices = @transform_5, window_bounds = array<i64: 1, 8, 256>}]} {
    %cst = arith.constant 0.000000e+00 : f32
    %0 = vector.broadcast %cst : f32 to vector<4x18x18xf32>
    %c0 = arith.constant 0 : index
    %c0_0 = arith.constant 0 : index
    %c0_1 = arith.constant 0 : index
    %1 = vector.load %arg7[%c0, %c0_0, %c0_1] : memref<4x18x18xf32, #tpu.memory_space<vmem>>, vector<4x18x18xf32>
    tpu.vector_store %arg7[%c0, %c0_0, %c0_1], %0 {strides = array<i32>} : memref<4x18x18xf32, #tpu.memory_space<vmem>>, vector<4x18x18xf32>,
    %c0_2 = arith.constant 0 : index
    %c0_3 = arith.constant 0 : index
    %c0_4 = arith.constant 0 : index
    %c0_5 = arith.constant 0 : index
    %2 = vector.load %arg1[%c0_2, %c0_3, %c0_4, %c0_5] : memref<1x4x16x16xbf16, #tpu.memory_space<vmem>>, vector<1x4x16x16xbf16>
    %3 = vector.shape_cast %2 : vector<1x4x16x16xbf16> to vector<4x16x16xbf16>
    %4 = arith.extf %3 : vector<4x16x16xbf16> to vector<4x16x16xf32>
    %c0_6 = arith.constant 0 : index
    %c1 = arith.constant 1 : index
    %c1_7 = arith.constant 1 : index
    %5 = vector.load %arg7[%c0_6, %c1, %c1_7] : memref<4x18x18xf32, #tpu.memory_space<vmem>>, vector<4x16x16xf32>
    tpu.vector_store %arg7[%c0_6, %c1, %c1_7], %4 {strides = array<i32>} : memref<4x18x18xf32, #tpu.memory_space<vmem>>, vector<4x16x16xf32>,
    %c0_8 = arith.constant 0 : index
    %c0_9 = arith.constant 0 : index
    %c0_10 = arith.constant 0 : index
    %6 = vector.load %arg7[%c0_8, %c0_9, %c0_10] : memref<4x18x18xf32, #tpu.memory_space<vmem>>, vector<4x16x16xf32>
    %7 = vector.shape_cast %6 : vector<4x16x16xf32> to vector<4x256xf32>
    %c0_11 = arith.constant 0 : index
    %c0_12 = arith.constant 0 : index
    %8 = vector.load %arg8[%c0_11, %c0_12] : memref<36x256xf32, #tpu.memory_space<vmem>>, vector<4x256xf32>
    tpu.vector_store %arg8[%c0_11, %c0_12], %7 {strides = array<i32>} : memref<36x256xf32, #tpu.memory_space<vmem>>, vector<4x256xf32>,
    %c0_13 = arith.constant 0 : index
    %c0_14 = arith.constant 0 : index
    %c1_15 = arith.constant 1 : index
    %9 = vector.load %arg7[%c0_13, %c0_14, %c1_15] : memref<4x18x18xf32, #tpu.memory_space<vmem>>, vector<4x16x16xf32>
    %10 = vector.shape_cast %9 : vector<4x16x16xf32> to vector<4x256xf32>
    %c4 = arith.constant 4 : index
    %c0_16 = arith.constant 0 : index
    %11 = vector.load %arg8[%c4, %c0_16] : memref<36x256xf32, #tpu.memory_space<vmem>>, vector<4x256xf32>
    tpu.vector_store %arg8[%c4, %c0_16], %10 {strides = array<i32>} : memref<36x256xf32, #tpu.memory_space<vmem>>, vector<4x256xf32>,
    %c0_17 = arith.constant 0 : index
    %c0_18 = arith.constant 0 : index
    %c2 = arith.constant 2 : index
    %12 = vector.load %arg7[%c0_17, %c0_18, %c2] : memref<4x18x18xf32, #tpu.memory_space<vmem>>, vector<4x16x16xf32>
    %13 = vector.shape_cast %12 : vector<4x16x16xf32> to vector<4x256xf32>
    %c8 = arith.constant 8 : index
    %c0_19 = arith.constant 0 : index
    %14 = vector.load %arg8[%c8, %c0_19] : memref<36x256xf32, #tpu.memory_space<vmem>>, vector<4x256xf32>
    tpu.vector_store %arg8[%c8, %c0_19], %13 {strides = array<i32>} : memref<36x256xf32, #tpu.memory_space<vmem>>, vector<4x256xf32>,
    %c0_20 = arith.constant 0 : index
    %c1_21 = arith.constant 1 : index
    %c0_22 = arith.constant 0 : index
    %15 = vector.load %arg7[%c0_20, %c1_21, %c0_22] : memref<4x18x18xf32, #tpu.memory_space<vmem>>, vector<4x16x16xf32>
    %16 = vector.shape_cast %15 : vector<4x16x16xf32> to vector<4x256xf32>
    %c12 = arith.constant 12 : index
    %c0_23 = arith.constant 0 : index
    %17 = vector.load %arg8[%c12, %c0_23] : memref<36x256xf32, #tpu.memory_space<vmem>>, vector<4x256xf32>
    tpu.vector_store %arg8[%c12, %c0_23], %16 {strides = array<i32>} : memref<36x256xf32, #tpu.memory_space<vmem>>, vector<4x256xf32>,
    %c0_24 = arith.constant 0 : index
    %c1_25 = arith.constant 1 : index
    %c1_26 = arith.constant 1 : index
    %18 = vector.load %arg7[%c0_24, %c1_25, %c1_26] : memref<4x18x18xf32, #tpu.memory_space<vmem>>, vector<4x16x16xf32>
    %19 = vector.shape_cast %18 : vector<4x16x16xf32> to vector<4x256xf32>
    %c16 = arith.constant 16 : index
    %c0_27 = arith.constant 0 : index
    %20 = vector.load %arg8[%c16, %c0_27] : memref<36x256xf32, #tpu.memory_space<vmem>>, vector<4x256xf32>
    tpu.vector_store %arg8[%c16, %c0_27], %19 {strides = array<i32>} : memref<36x256xf32, #tpu.memory_space<vmem>>, vector<4x256xf32>,
    %c0_28 = arith.constant 0 : index
    %c1_29 = arith.constant 1 : index
    %c2_30 = arith.constant 2 : index
    %21 = vector.load %arg7[%c0_28, %c1_29, %c2_30] : memref<4x18x18xf32, #tpu.memory_space<vmem>>, vector<4x16x16xf32>
    %22 = vector.shape_cast %21 : vector<4x16x16xf32> to vector<4x256xf32>
    %c20 = arith.constant 20 : index
    %c0_31 = arith.constant 0 : index
    %23 = vector.load %arg8[%c20, %c0_31] : memref<36x256xf32, #tpu.memory_space<vmem>>, vector<4x256xf32>
    tpu.vector_store %arg8[%c20, %c0_31], %22 {strides = array<i32>} : memref<36x256xf32, #tpu.memory_space<vmem>>, vector<4x256xf32>,
    %c0_32 = arith.constant 0 : index
    %c2_33 = arith.constant 2 : index
    %c0_34 = arith.constant 0 : index
    %24 = vector.load %arg7[%c0_32, %c2_33, %c0_34] : memref<4x18x18xf32, #tpu.memory_space<vmem>>, vector<4x16x16xf32>
    %25 = vector.shape_cast %24 : vector<4x16x16xf32> to vector<4x256xf32>
    %c24 = arith.constant 24 : index
    %c0_35 = arith.constant 0 : index
    %26 = vector.load %arg8[%c24, %c0_35] : memref<36x256xf32, #tpu.memory_space<vmem>>, vector<4x256xf32>
    tpu.vector_store %arg8[%c24, %c0_35], %25 {strides = array<i32>} : memref<36x256xf32, #tpu.memory_space<vmem>>, vector<4x256xf32>,
    %c0_36 = arith.constant 0 : index
    %c2_37 = arith.constant 2 : index
    %c1_38 = arith.constant 1 : index
    %27 = vector.load %arg7[%c0_36, %c2_37, %c1_38] : memref<4x18x18xf32, #tpu.memory_space<vmem>>, vector<4x16x16xf32>
    %28 = vector.shape_cast %27 : vector<4x16x16xf32> to vector<4x256xf32>
    %c28 = arith.constant 28 : index
    %c0_39 = arith.constant 0 : index
    %29 = vector.load %arg8[%c28, %c0_39] : memref<36x256xf32, #tpu.memory_space<vmem>>, vector<4x256xf32>
    tpu.vector_store %arg8[%c28, %c0_39], %28 {strides = array<i32>} : memref<36x256xf32, #tpu.memory_space<vmem>>, vector<4x256xf32>,
    %c0_40 = arith.constant 0 : index
    %c2_41 = arith.constant 2 : index
    %c2_42 = arith.constant 2 : index
    %30 = vector.load %arg7[%c0_40, %c2_41, %c2_42] : memref<4x18x18xf32, #tpu.memory_space<vmem>>, vector<4x16x16xf32>
    %31 = vector.shape_cast %30 : vector<4x16x16xf32> to vector<4x256xf32>
    %c32 = arith.constant 32 : index
    %c0_43 = arith.constant 0 : index
    %32 = vector.load %arg8[%c32, %c0_43] : memref<36x256xf32, #tpu.memory_space<vmem>>, vector<4x256xf32>
    tpu.vector_store %arg8[%c32, %c0_43], %31 {strides = array<i32>} : memref<36x256xf32, #tpu.memory_space<vmem>>, vector<4x256xf32>,
    %c0_44 = arith.constant 0 : index
    %c0_45 = arith.constant 0 : index
    %33 = vector.load %arg2[%c0_44, %c0_45] : memref<8x36xbf16, #tpu.memory_space<vmem>>, vector<8x36xbf16>
    %c0_46 = arith.constant 0 : index
    %c0_47 = arith.constant 0 : index
    %34 = vector.load %arg8[%c0_46, %c0_47] : memref<36x256xf32, #tpu.memory_space<vmem>>, vector<36x256xf32>
    %35 = arith.truncf %34 : vector<36x256xf32> to vector<36x256xbf16>
    %cst_48 = arith.constant dense<0.000000e+00> : vector<8x256xf32>
    %36 = tpu.matmul %33, %35, %cst_48 {dimension_numbers = #tpu.dot_dimension_numbers<[1], [0], [0], [1], [0, 0, 1, 1], [], []>} : vector<8x36xbf16>, vector<36x256xbf16>, vector<8x256xf32> -> vector<8x256xf32>
    %c0_49 = arith.constant 0 : index
    %c0_50 = arith.constant 0 : index
    %37 = vector.load %arg3[%c0_49, %c0_50] : memref<8x1xf32, #tpu.memory_space<vmem>>, vector<8x1xf32>
    %38 = vector.broadcast %37 : vector<8x1xf32> to vector<8x256xf32>
    %39 = arith.addf %36, %38 : vector<8x256xf32>
    %cst_51 = arith.constant 0.000000e+00 : f32
    %40 = vector.broadcast %cst_51 : f32 to vector<8x256xf32>
    %41 = arith.maximumf %39, %40 : vector<8x256xf32>
    %cst_52 = arith.constant 0.000000e+00 : f32
    %42 = vector.broadcast %cst_52 : f32 to vector<8x18x18xf32>
    %c0_53 = arith.constant 0 : index
    %c0_54 = arith.constant 0 : index
    %c0_55 = arith.constant 0 : index
    %43 = vector.load %arg9[%c0_53, %c0_54, %c0_55] : memref<8x18x18xf32, #tpu.memory_space<vmem>>, vector<8x18x18xf32>
    tpu.vector_store %arg9[%c0_53, %c0_54, %c0_55], %42 {strides = array<i32>} : memref<8x18x18xf32, #tpu.memory_space<vmem>>, vector<8x18x18xf32>,
    %44 = vector.shape_cast %41 : vector<8x256xf32> to vector<8x16x16xf32>
    %c0_56 = arith.constant 0 : index
    %c1_57 = arith.constant 1 : index
    %c1_58 = arith.constant 1 : index
    %45 = vector.load %arg9[%c0_56, %c1_57, %c1_58] : memref<8x18x18xf32, #tpu.memory_space<vmem>>, vector<8x16x16xf32>
    tpu.vector_store %arg9[%c0_56, %c1_57, %c1_58], %44 {strides = array<i32>} : memref<8x18x18xf32, #tpu.memory_space<vmem>>, vector<8x16x16xf32>,
    %c0_59 = arith.constant 0 : index
    %c0_60 = arith.constant 0 : index
    %c0_61 = arith.constant 0 : index
    %46 = vector.load %arg9[%c0_59, %c0_60, %c0_61] : memref<8x18x18xf32, #tpu.memory_space<vmem>>, vector<8x16x16xf32>
    %47 = vector.shape_cast %46 : vector<8x16x16xf32> to vector<8x256xf32>
    %c0_62 = arith.constant 0 : index
    %c0_63 = arith.constant 0 : index
    %48 = vector.load %arg10[%c0_62, %c0_63] : memref<72x256xf32, #tpu.memory_space<vmem>>, vector<8x256xf32>
    tpu.vector_store %arg10[%c0_62, %c0_63], %47 {strides = array<i32>} : memref<72x256xf32, #tpu.memory_space<vmem>>, vector<8x256xf32>,
    %c0_64 = arith.constant 0 : index
    %c0_65 = arith.constant 0 : index
    %c1_66 = arith.constant 1 : index
    %49 = vector.load %arg9[%c0_64, %c0_65, %c1_66] : memref<8x18x18xf32, #tpu.memory_space<vmem>>, vector<8x16x16xf32>
    %50 = vector.shape_cast %49 : vector<8x16x16xf32> to vector<8x256xf32>
    %c8_67 = arith.constant 8 : index
    %c0_68 = arith.constant 0 : index
    %51 = vector.load %arg10[%c8_67, %c0_68] : memref<72x256xf32, #tpu.memory_space<vmem>>, vector<8x256xf32>
    tpu.vector_store %arg10[%c8_67, %c0_68], %50 {strides = array<i32>} : memref<72x256xf32, #tpu.memory_space<vmem>>, vector<8x256xf32>,
    %c0_69 = arith.constant 0 : index
    %c0_70 = arith.constant 0 : index
    %c2_71 = arith.constant 2 : index
    %52 = vector.load %arg9[%c0_69, %c0_70, %c2_71] : memref<8x18x18xf32, #tpu.memory_space<vmem>>, vector<8x16x16xf32>
    %53 = vector.shape_cast %52 : vector<8x16x16xf32> to vector<8x256xf32>
    %c16_72 = arith.constant 16 : index
    %c0_73 = arith.constant 0 : index
    %54 = vector.load %arg10[%c16_72, %c0_73] : memref<72x256xf32, #tpu.memory_space<vmem>>, vector<8x256xf32>
    tpu.vector_store %arg10[%c16_72, %c0_73], %53 {strides = array<i32>} : memref<72x256xf32, #tpu.memory_space<vmem>>, vector<8x256xf32>,
    %c0_74 = arith.constant 0 : index
    %c1_75 = arith.constant 1 : index
    %c0_76 = arith.constant 0 : index
    %55 = vector.load %arg9[%c0_74, %c1_75, %c0_76] : memref<8x18x18xf32, #tpu.memory_space<vmem>>, vector<8x16x16xf32>
    %56 = vector.shape_cast %55 : vector<8x16x16xf32> to vector<8x256xf32>
    %c24_77 = arith.constant 24 : index
    %c0_78 = arith.constant 0 : index
    %57 = vector.load %arg10[%c24_77, %c0_78] : memref<72x256xf32, #tpu.memory_space<vmem>>, vector<8x256xf32>
    tpu.vector_store %arg10[%c24_77, %c0_78], %56 {strides = array<i32>} : memref<72x256xf32, #tpu.memory_space<vmem>>, vector<8x256xf32>,
    %c0_79 = arith.constant 0 : index
    %c1_80 = arith.constant 1 : index
    %c1_81 = arith.constant 1 : index
    %58 = vector.load %arg9[%c0_79, %c1_80, %c1_81] : memref<8x18x18xf32, #tpu.memory_space<vmem>>, vector<8x16x16xf32>
    %59 = vector.shape_cast %58 : vector<8x16x16xf32> to vector<8x256xf32>
    %c32_82 = arith.constant 32 : index
    %c0_83 = arith.constant 0 : index
    %60 = vector.load %arg10[%c32_82, %c0_83] : memref<72x256xf32, #tpu.memory_space<vmem>>, vector<8x256xf32>
    tpu.vector_store %arg10[%c32_82, %c0_83], %59 {strides = array<i32>} : memref<72x256xf32, #tpu.memory_space<vmem>>, vector<8x256xf32>,
    %c0_84 = arith.constant 0 : index
    %c1_85 = arith.constant 1 : index
    %c2_86 = arith.constant 2 : index
    %61 = vector.load %arg9[%c0_84, %c1_85, %c2_86] : memref<8x18x18xf32, #tpu.memory_space<vmem>>, vector<8x16x16xf32>
    %62 = vector.shape_cast %61 : vector<8x16x16xf32> to vector<8x256xf32>
    %c40 = arith.constant 40 : index
    %c0_87 = arith.constant 0 : index
    %63 = vector.load %arg10[%c40, %c0_87] : memref<72x256xf32, #tpu.memory_space<vmem>>, vector<8x256xf32>
    tpu.vector_store %arg10[%c40, %c0_87], %62 {strides = array<i32>} : memref<72x256xf32, #tpu.memory_space<vmem>>, vector<8x256xf32>,
    %c0_88 = arith.constant 0 : index
    %c2_89 = arith.constant 2 : index
    %c0_90 = arith.constant 0 : index
    %64 = vector.load %arg9[%c0_88, %c2_89, %c0_90] : memref<8x18x18xf32, #tpu.memory_space<vmem>>, vector<8x16x16xf32>
    %65 = vector.shape_cast %64 : vector<8x16x16xf32> to vector<8x256xf32>
    %c48 = arith.constant 48 : index
    %c0_91 = arith.constant 0 : index
    %66 = vector.load %arg10[%c48, %c0_91] : memref<72x256xf32, #tpu.memory_space<vmem>>, vector<8x256xf32>
    tpu.vector_store %arg10[%c48, %c0_91], %65 {strides = array<i32>} : memref<72x256xf32, #tpu.memory_space<vmem>>, vector<8x256xf32>,
    %c0_92 = arith.constant 0 : index
    %c2_93 = arith.constant 2 : index
    %c1_94 = arith.constant 1 : index
    %67 = vector.load %arg9[%c0_92, %c2_93, %c1_94] : memref<8x18x18xf32, #tpu.memory_space<vmem>>, vector<8x16x16xf32>
    %68 = vector.shape_cast %67 : vector<8x16x16xf32> to vector<8x256xf32>
    %c56 = arith.constant 56 : index
    %c0_95 = arith.constant 0 : index
    %69 = vector.load %arg10[%c56, %c0_95] : memref<72x256xf32, #tpu.memory_space<vmem>>, vector<8x256xf32>
    tpu.vector_store %arg10[%c56, %c0_95], %68 {strides = array<i32>} : memref<72x256xf32, #tpu.memory_space<vmem>>, vector<8x256xf32>,
    %c0_96 = arith.constant 0 : index
    %c2_97 = arith.constant 2 : index
    %c2_98 = arith.constant 2 : index
    %70 = vector.load %arg9[%c0_96, %c2_97, %c2_98] : memref<8x18x18xf32, #tpu.memory_space<vmem>>, vector<8x16x16xf32>
    %71 = vector.shape_cast %70 : vector<8x16x16xf32> to vector<8x256xf32>
    %c64 = arith.constant 64 : index
    %c0_99 = arith.constant 0 : index
    %72 = vector.load %arg10[%c64, %c0_99] : memref<72x256xf32, #tpu.memory_space<vmem>>, vector<8x256xf32>
    tpu.vector_store %arg10[%c64, %c0_99], %71 {strides = array<i32>} : memref<72x256xf32, #tpu.memory_space<vmem>>, vector<8x256xf32>,
    %c0_100 = arith.constant 0 : index
    %c0_101 = arith.constant 0 : index
    %73 = vector.load %arg4[%c0_100, %c0_101] : memref<8x72xbf16, #tpu.memory_space<vmem>>, vector<8x72xbf16>
    %c0_102 = arith.constant 0 : index
    %c0_103 = arith.constant 0 : index
    %74 = vector.load %arg10[%c0_102, %c0_103] : memref<72x256xf32, #tpu.memory_space<vmem>>, vector<72x256xf32>
    %75 = arith.truncf %74 : vector<72x256xf32> to vector<72x256xbf16>
    %cst_104 = arith.constant dense<0.000000e+00> : vector<8x256xf32>
    %76 = tpu.matmul %73, %75, %cst_104 {dimension_numbers = #tpu.dot_dimension_numbers<[1], [0], [0], [1], [0, 0, 1, 1], [], []>} : vector<8x72xbf16>, vector<72x256xbf16>, vector<8x256xf32> -> vector<8x256xf32>
    %c0_105 = arith.constant 0 : index
    %c0_106 = arith.constant 0 : index
    %77 = vector.load %arg5[%c0_105, %c0_106] : memref<8x1xf32, #tpu.memory_space<vmem>>, vector<8x1xf32>
    %78 = vector.broadcast %77 : vector<8x1xf32> to vector<8x256xf32>
    %79 = arith.addf %76, %78 : vector<8x256xf32>
    %cst_107 = arith.constant 0.000000e+00 : f32
    %80 = vector.broadcast %cst_107 : f32 to vector<8x256xf32>
    %81 = arith.maximumf %79, %80 : vector<8x256xf32>
    %c0_108 = arith.constant 0 : index
    %c0_109 = arith.constant 0 : index
    %c0_110 = arith.constant 0 : index
    %82 = vector.load %arg6[%c0_108, %c0_109, %c0_110] : memref<1x8x256xf32, #tpu.memory_space<vmem>>, vector<1x8x256xf32>
    %83 = vector.shape_cast %82 : vector<1x8x256xf32> to vector<8x256xf32>
    %84 = vector.shape_cast %81 : vector<8x256xf32> to vector<1x8x256xf32>
    tpu.vector_store %arg6[%c0_108, %c0_109, %c0_110], %84 {strides = array<i32>} : memref<1x8x256xf32, #tpu.memory_space<vmem>>, vector<1x8x256xf32>,
    return
  }
  func.func @transform_0(%arg0: i32) -> (i32, i32, i32, i32) {
    %c0_i32 = arith.constant 0 : i32
    %c0_i32_0 = arith.constant 0 : i32
    %c0_i32_1 = arith.constant 0 : i32
    %c0_i32_2 = arith.constant 0 : i32
    return %arg0, %c0_i32, %c0_i32_0, %c0_i32_1 : i32, i32, i32, i32
  }
  func.func @transform_1(%arg0: i32) -> (i32, i32) {
    %c0_i32 = arith.constant 0 : i32
    %c0_i32_0 = arith.constant 0 : i32
    %c0_i32_1 = arith.constant 0 : i32
    return %c0_i32, %c0_i32_0 : i32, i32
  }
  func.func @transform_2(%arg0: i32) -> (i32, i32) {
    %c0_i32 = arith.constant 0 : i32
    %c0_i32_0 = arith.constant 0 : i32
    %c0_i32_1 = arith.constant 0 : i32
    return %c0_i32, %c0_i32_0 : i32, i32
  }
  func.func @transform_3(%arg0: i32) -> (i32, i32) {
    %c0_i32 = arith.constant 0 : i32
    %c0_i32_0 = arith.constant 0 : i32
    %c0_i32_1 = arith.constant 0 : i32
    return %c0_i32, %c0_i32_0 : i32, i32
  }
  func.func @transform_4(%arg0: i32) -> (i32, i32) {
    %c0_i32 = arith.constant 0 : i32
    %c0_i32_0 = arith.constant 0 : i32
    %c0_i32_1 = arith.constant 0 : i32
    return %c0_i32, %c0_i32_0 : i32, i32
  }
  func.func @transform_5(%arg0: i32) -> (i32, i32, i32) {
    %c0_i32 = arith.constant 0 : i32
    %c0_i32_0 = arith.constant 0 : i32
    %c0_i32_1 = arith.constant 0 : i32
    return %arg0, %c0_i32, %c0_i32_0 : i32, i32, i32
  }
}

</mosaic_0001>

<llo_original>
// kernel: double_conv_forward.1
$region0: #{double_conv_forward.1}
  #allocation0 [shape = 'u32[]', space=smem, size = 0x4, offset = 0x4, fixed_abs, tag = 'smem constant byte address 0x4 - core index']
  #allocation1 [shape = 'u32[144,128]{1,0:T(1,128)}', space=vmem, size = 0x12000, scoped, tag = 'internal scratch']
  #allocation2 [shape = 'f32[4,18,18]{2,1,0:T(8,128)}', space=vmem, size = 0xc000, scoped, tag = 'scratch operand']
  #allocation3 [shape = 'f32[36,256]{1,0:T(8,128)}', space=vmem, size = 0xa000, scoped, tag = 'scratch operand']
  #allocation4 [shape = 'f32[8,18,18]{2,1,0:T(8,128)}', space=vmem, size = 0x18000, scoped, tag = 'scratch operand']
  #allocation5 [shape = 'f32[72,256]{1,0:T(8,128)}', space=vmem, size = 0x12000, scoped, tag = 'scratch operand']
  %s0 = inlined_call_operand.vmem [shape: bf16[2,4,16,16], index: 0, kind: input, shape index: {}]
  %s1 = inlined_call_operand.vmem [shape: bf16[8,36], index: 1, kind: input, shape index: {}]
  %s2 = inlined_call_operand.vmem [shape: f32[8,1], index: 2, kind: input, shape index: {}]
  %s3 = inlined_call_operand.vmem [shape: bf16[8,72], index: 3, kind: input, shape index: {}]
  %s4 = inlined_call_operand.vmem [shape: f32[8,1], index: 4, kind: input, shape index: {}]
  %s5 = inlined_call_operand.vmem [shape: f32[2,8,256], index: 5, kind: output, shape index: {}]
  %s6 = sld [smem:[#allocation0]]
  $region53: #{double_conv_forward.1} parent=0
    _
  %s8 = ssub.s32 1, %s6
  %s9 = scalar_select 0, %s8, %s6
  loop: start=0, step=1, limit=4
  $region2: #{double_conv_forward.1} parent=0 // loop_pre_header
    _
  $region3: #{double_conv_forward.1} parent=0 // loop_header
    %s11 = sphi 0, %s15
    %p12 = scmp.ge.s32.totalorder %s11, 4
    %s21 = sphi 0, %s23
    %s24 = sphi 0, %s21
    %s25 = sphi 0, %s24
    %s41 = sphi 0, %s25
    %s45 = sphi 0, %s45
    %s47 = sphi 0, %s45
    %s48 = sphi 0, %s47
    %s62 = sphi 0, %s48
    %s66 = sphi 0, %s66
    %s68 = sphi 0, %s66
    %s69 = sphi 0, %s68
    %s83 = sphi 0, %s69
    %s87 = sphi 0, %s87
    %s89 = sphi 0, %s87
    %s90 = sphi 0, %s89
    %s104 = sphi 0, %s90
    %s108 = sphi 0, %s108
    %s110 = sphi 0, %s108
    %s111 = sphi 0, %s110
    %s125 = sphi 0, %s111
    %s131 = sphi 0, %s133
    %s134 = sphi 0, %s131
    %s135 = sphi 0, %s134
    %s151 = sphi 0, %s135
  $region4: #{double_conv_forward.1} parent=0 // loop_header_branch
    %14 = sbr.rel (%p12) target = $region8
  $region5: #{double_conv_forward.1} parent=0 // loop_body
    %s16 = ssub.s32 %s11, 1
    %s17 = ssub.s32 %s11, 2
    %s18 = sadd.s32 %s11, 1
    %s19 = ssub.s32 %s11, %s18
    %p20 = scmp.eq.s32.totalorder %s19, 0
    %s22 = sadd.s32 %s21, 1
    %s23 = scalar_select %p20, %s21, %s22
    %p26 = pneg %p20
    %p27 = scmp.eq.s32.totalorder %s11, 1
    %p28 = por %p26, %p27
    %p29 = scmp.ne.s32.totalorder %s21, %s24
    %p30 = scmp.eq.s32.totalorder %s11, 0
    %p31 = por %p29, %p30
    %p32 = scmp.ne.s32.totalorder %s21, %s24
    %p33 = scmp.eq.s32.totalorder %s16, 1
    %p34 = por %p32, %p33
    %p35 = scmp.ne.s32.totalorder %s24, %s25
    %p36 = scmp.eq.s32.totalorder %s16, 0
    %p37 = por %p35, %p36
    %p38 = scmp.ne.s32.totalorder %s24, %s25
    %p39 = scmp.eq.s32.totalorder %s17, 1
    %p40 = por %p38, %p39
    %p42 = scmp.ne.s32.totalorder %s25, %s41
    %p43 = scmp.eq.s32.totalorder %s17, 0
    %p44 = por %p42, %p43
    %s46 = sadd.s32 %s45, 1
    %p49 = scmp.eq.s32.totalorder %s11, 1
    %p50 = scmp.ne.s32.totalorder %s45, %s47
    %p51 = scmp.eq.s32.totalorder %s11, 0
    %p52 = por %p50, %p51
    %p53 = scmp.ne.s32.totalorder %s45, %s47
    %p54 = scmp.eq.s32.totalorder %s16, 1
    %p55 = por %p53, %p54
    %p56 = scmp.ne.s32.totalorder %s47, %s48
    %p57 = scmp.eq.s32.totalorder %s16, 0
    %p58 = por %p56, %p57
    %p59 = scmp.ne.s32.totalorder %s47, %s48
    %p60 = scmp.eq.s32.totalorder %s17, 1
    %p61 = por %p59, %p60
    %p63 = scmp.ne.s32.totalorder %s48, %s62
    %p64 = scmp.eq.s32.totalorder %s17, 0
    %p65 = por %p63, %p64
    %s67 = sadd.s32 %s66, 1
    %p70 = scmp.eq.s32.totalorder %s11, 1
    %p71 = scmp.ne.s32.totalorder %s66, %s68
    %p72 = scmp.eq.s32.totalorder %s11, 0
    %p73 = por %p71, %p72
    %p74 = scmp.ne.s32.totalorder %s66, %s68
    %p75 = scmp.eq.s32.totalorder %s16, 1
    %p76 = por %p74, %p75
    %p77 = scmp.ne.s32.totalorder %s68, %s69
    %p78 = scmp.eq.s32.totalorder %s16, 0
    %p79 = por %p77, %p78
    %p80 = scmp.ne.s32.totalorder %s68, %s69
    %p81 = scmp.eq.s32.totalorder %s17, 1
    %p82 = por %p80, %p81
    %p84 = scmp.ne.s32.totalorder %s69, %s83
    %p85 = scmp.eq.s32.totalorder %s17, 0
    %p86 = por %p84, %p85
    %s88 = sadd.s32 %s87, 1
    %p91 = scmp.eq.s32.totalorder %s11, 1
    %p92 = scmp.ne.s32.totalorder %s87, %s89
    %p93 = scmp.eq.s32.totalorder %s11, 0
    %p94 = por %p92, %p93
    %p95 = scmp.ne.s32.totalorder %s87, %s89
    %p96 = scmp.eq.s32.totalorder %s16, 1
    %p97 = por %p95, %p96
    %p98 = scmp.ne.s32.totalorder %s89, %s90
    %p99 = scmp.eq.s32.totalorder %s16, 0
    %p100 = por %p98, %p99
    %p101 = scmp.ne.s32.totalorder %s89, %s90
    %p102 = scmp.eq.s32.totalorder %s17, 1
    %p103 = por %p101, %p102
    %p105 = scmp.ne.s32.totalorder %s90, %s104
    %p106 = scmp.eq.s32.totalorder %s17, 0
    %p107 = por %p105, %p106
    %s109 = sadd.s32 %s108, 1
    %p112 = scmp.eq.s32.totalorder %s11, 1
    %p113 = scmp.ne.s32.totalorder %s108, %s110
    %p114 = scmp.eq.s32.totalorder %s11, 0
    %p115 = por %p113, %p114
    %p116 = scmp.ne.s32.totalorder %s108, %s110
    %p117 = scmp.eq.s32.totalorder %s16, 1
    %p118 = por %p116, %p117
    %p119 = scmp.ne.s32.totalorder %s110, %s111
    %p120 = scmp.eq.s32.totalorder %s16, 0
    %p121 = por %p119, %p120
    %p122 = scmp.ne.s32.totalorder %s110, %s111
    %p123 = scmp.eq.s32.totalorder %s17, 1
    %p124 = por %p122, %p123
    %p126 = scmp.ne.s32.totalorder %s111, %s125
    %p127 = scmp.eq.s32.totalorder %s17, 0
    %p128 = por %p126, %p127
    %s129 = ssub.s32 %s11, %s18
    %p130 = scmp.eq.s32.totalorder %s129, 0
    %s132 = sadd.s32 %s131, 1
    %s133 = scalar_select %p130, %s131, %s132
    %p136 = pneg %p130
    %p137 = scmp.eq.s32.totalorder %s11, 1
    %p138 = por %p136, %p137
    %p139 = scmp.ne.s32.totalorder %s131, %s134
    %p140 = scmp.eq.s32.totalorder %s11, 0
    %p141 = por %p139, %p140
    %p142 = scmp.ne.s32.totalorder %s131, %s134
    %p143 = scmp.eq.s32.totalorder %s16, 1
    %p144 = por %p142, %p143
    %p145 = scmp.ne.s32.totalorder %s134, %s135
    %p146 = scmp.eq.s32.totalorder %s16, 0
    %p147 = por %p145, %p146
    %p148 = scmp.ne.s32.totalorder %s134, %s135
    %p149 = scmp.eq.s32.totalorder %s17, 1
    %p150 = por %p148, %p149
    %p152 = scmp.ne.s32.totalorder %s135, %s151
    %p153 = scmp.eq.s32.totalorder %s17, 0
    %p154 = por %p152, %p153
    %p155 = scmp.le.s32.totalorder 1, %s11
    %p156 = scmp.lt.s32.totalorder %s11, 3
    %p157 = pnand %p155, %p156
    %p158 = pneg %p157
    // Predicated region
    $region9: #{double_conv_forward.1} parent=5 // pred_check
      _
    $region10: #{double_conv_forward.1} parent=5 // pred_check_branch
      %160 = sbr.rel (%p157) target = $region12
    $region11: #{double_conv_forward.1} parent=5 // pred_region
      %s161 = ssub.s32 %s11, 1
      // Predicated region
      $region13: #{double_conv_forward.1} parent=11 // pred_check
        %p162 = pneg %p58
      $region14: #{double_conv_forward.1} parent=11 // pred_check_branch
        %164 = sbr.rel (%p162) target = $region16
      $region15: #{double_conv_forward.1} parent=11 // pred_region
        _
      $region16: #{double_conv_forward.1} parent=11 // pred_fallthru
        _
      // Predicated region
      $region17: #{double_conv_forward.1} parent=11 // pred_check
        %p165 = pneg %p79
      $region18: #{double_conv_forward.1} parent=11 // pred_check_branch
        %167 = sbr.rel (%p165) target = $region20
      $region19: #{double_conv_forward.1} parent=11 // pred_region
        _
      $region20: #{double_conv_forward.1} parent=11 // pred_fallthru
        _
      // Predicated region
      $region21: #{double_conv_forward.1} parent=11 // pred_check
        %p168 = pneg %p100
      $region22: #{double_conv_forward.1} parent=11 // pred_check_branch
        %170 = sbr.rel (%p168) target = $region24
      $region23: #{double_conv_forward.1} parent=11 // pred_region
        _
      $region24: #{double_conv_forward.1} parent=11 // pred_fallthru
        _
      // Predicated region
      $region25: #{double_conv_forward.1} parent=11 // pred_check
        %p171 = pneg %p121
      $region26: #{double_conv_forward.1} parent=11 // pred_check_branch
        %173 = sbr.rel (%p171) target = $region28
      $region27: #{double_conv_forward.1} parent=11 // pred_region
        _
      $region28: #{double_conv_forward.1} parent=11 // pred_fallthru
        _
    $region12: #{double_conv_forward.1} parent=5 // pred_fallthru
      _
    %p174 = scmp.lt.s32.totalorder %s11, 2
    // Predicated region
    $region29: #{double_conv_forward.1} parent=5 // pred_check
      %p175 = pneg %p174
    $region30: #{double_conv_forward.1} parent=5 // pred_check_branch
      %177 = sbr.rel (%p175) target = $region32
    $region31: #{double_conv_forward.1} parent=5 // pred_region
      // Predicated region
      $region33: #{double_conv_forward.1} parent=31 // pred_check
        %p178 = pneg %p31
      $region34: #{double_conv_forward.1} parent=31 // pred_check_branch
        %180 = sbr.rel (%p178) target = $region36
      $region35: #{double_conv_forward.1} parent=31 // pred_region
        %p181 = scmp.lt.s32.totalorder %s11, 1
        %s182 = scalar_select %p181, %s11, 1
        %s183 = smul.addr %s182, 8
        %s184 = smul.addr %s183, 4
        %s185 = scalar_lea.vmem %s0, %s184
      $region36: #{double_conv_forward.1} parent=31 // pred_fallthru
        _
    $region32: #{double_conv_forward.1} parent=5 // pred_fallthru
      _
    %p186 = scmp.le.s32.totalorder 1, %s11
    %p187 = scmp.lt.s32.totalorder %s11, 3
    %p188 = pnand %p186, %p187
    %p189 = pneg %p188
    // Predicated region
    $region37: #{double_conv_forward.1} parent=5 // pred_check
      _
    $region38: #{double_conv_forward.1} parent=5 // pred_check_branch
      %191 = sbr.rel (%p188) target = $region40
    $region39: #{double_conv_forward.1} parent=5 // pred_region
      %s192 = ssub.s32 %s11, 1
      %p193 = scmp.lt.s32.totalorder %s16, 1
      %s194 = scalar_select %p193, %s16, 1
      %s195 = smul.addr %s194, 8
      %s196 = smul.addr %s195, 4
      %s197 = scalar_lea.vmem %s0, %s196
      %p198 = pneg %p37
      %p199 = pneg %p34
      %p200 = pneg %p58
      %p201 = pneg %p55
      %p202 = pneg %p79
      %p203 = pneg %p76
      %p204 = pneg %p100
      %p205 = pneg %p97
      %p206 = pneg %p121
      %p207 = pneg %p118
      %p208 = pneg %p147
      %p209 = pneg %p144
      %p210 = scmp.lt.s32.totalorder %s16, 1
      %s211 = scalar_select %p210, %s16, 1
      %s212 = smul.addr %s211, 2
      %s213 = smul.addr %s212, 8
      %s214 = scalar_lea.vmem %s5, %s213
      %p215 = scmp.lt.s32.totalorder %s16, 1
      %s216 = scalar_select %p215, %s16, 1
      %s217 = smul.addr %s216, 8
      %s218 = smul.addr %s217, 4
      %s219 = scalar_lea.vmem %s0, %s218
      %p220 = scmp.lt.s32.totalorder %s16, 1
      %s221 = scalar_select %p220, %s16, 1
      %s222 = smul.addr %s221, 2
      %s223 = smul.addr %s222, 8
      %s224 = scalar_lea.vmem %s5, %s223
      %vm226 = vcmask 146432
      %227 = vst.msk [vmem:[#allocation2] sm:$0xff] %vm226, 0.0
      %228 = vst.msk [vmem:[#allocation2 + $0x8] sm:$0xff] %vm226, 0.0
      %vm229 = vcmask 140288
      %230 = vst.msk [vmem:[#allocation2 + $0x10] sm:$0x3] %vm229, 0.0
      %231 = vst.msk [vmem:[#allocation2 + $0x18] sm:$0xff] %vm226, 0.0
      %232 = vst.msk [vmem:[#allocation2 + $0x20] sm:$0xff] %vm226, 0.0
      %233 = vst.msk [vmem:[#allocation2 + $0x28] sm:$0x3] %vm229, 0.0
      %234 = vst.msk [vmem:[#allocation2 + $0x30] sm:$0xff] %vm226, 0.0
      %235 = vst.msk [vmem:[#allocation2 + $0x38] sm:$0xff] %vm226, 0.0
      %236 = vst.msk [vmem:[#allocation2 + $0x40] sm:$0x3] %vm229, 0.0
      %237 = vst.msk [vmem:[#allocation2 + $0x48] sm:$0xff] %vm226, 0.0
      %238 = vst.msk [vmem:[#allocation2 + $0x50] sm:$0xff] %vm226, 0.0
      %239 = vst.msk [vmem:[#allocation2 + $0x58] sm:$0x3] %vm229, 0.0
      %v240 = vld [vmem:[%s219] sm:$0xf]
      %v241 = vld [vmem:[%s219 + $0x4] sm:$0xf]
      %v242 = vld [vmem:[%s219 + $0x8] sm:$0xf]
      %v243 = vld [vmem:[%s219 + $0xc] sm:$0xf]
      %v244 = vld [vmem:[%s219 + $0x10] sm:$0xf]
      %v245 = vld [vmem:[%s219 + $0x14] sm:$0xf]
      %v246 = vld [vmem:[%s219 + $0x18] sm:$0xf]
      %v247 = vld [vmem:[%s219 + $0x1c] sm:$0xf]
      %v248 = vunpack.c.l.bf16 %v240
      %v249 = vunpack.c.l.bf16 %v241
      %v250 = vunpack.c.l.bf16 %v242
      %v251 = vunpack.c.l.bf16 %v243
      %v252 = vunpack.c.l.bf16 %v244
      %v253 = vunpack.c.l.bf16 %v245
      %v254 = vunpack.c.l.bf16 %v246
      %v255 = vunpack.c.l.bf16 %v247
      %264 = vrot.lane.b32.xlu0 %v248, 1
      %v265 = vpop.permute.xlu0 %264
      %266 = vrot.lane.b32.xlu0 %v249, 1
      %v267 = vpop.permute.xlu0 %266
      %268 = vrot.lane.b32.xlu0 %v250, 1
      %v269 = vpop.permute.xlu0 %268
      %270 = vrot.lane.b32.xlu0 %v251, 1
      %v271 = vpop.permute.xlu0 %270
      %272 = vrot.lane.b32.xlu0 %v252, 1
      %v273 = vpop.permute.xlu0 %272
      %274 = vrot.lane.b32.xlu0 %v253, 1
      %v275 = vpop.permute.xlu0 %274
      %276 = vrot.lane.b32.xlu0 %v254, 1
      %v277 = vpop.permute.xlu0 %276
      %278 = vrot.lane.b32.xlu0 %v255, 1
      %v279 = vpop.permute.xlu0 %278
      %vm288 = vcmask 138248
      %289 = vst.msk [vmem:[#allocation2 + $0x1] sm:$0xff] %vm288, %v265
      %290 = vst.msk [vmem:[#allocation2 + $0x9] sm:$0xff] %vm288, %v267
      %291 = vst.msk [vmem:[#allocation2 + $0x19] sm:$0xff] %vm288, %v269
      %292 = vst.msk [vmem:[#allocation2 + $0x21] sm:$0xff] %vm288, %v271
      %293 = vst.msk [vmem:[#allocation2 + $0x31] sm:$0xff] %vm288, %v273
      %294 = vst.msk [vmem:[#allocation2 + $0x39] sm:$0xff] %vm288, %v275
      %295 = vst.msk [vmem:[#allocation2 + $0x49] sm:$0xff] %vm288, %v277
      %296 = vst.msk [vmem:[#allocation2 + $0x51] sm:$0xff] %vm288, %v279
      %v297 = vld [vmem:[#allocation2] sm:$0xff]
      %v298 = vld [vmem:[#allocation2 + $0x8] sm:$0xff]
      %v299 = vld [vmem:[#allocation2 + $0x18] sm:$0xff]
      %v300 = vld [vmem:[#allocation2 + $0x20] sm:$0xff]
      %v301 = vld [vmem:[#allocation2 + $0x30] sm:$0xff]
      %v302 = vld [vmem:[#allocation2 + $0x38] sm:$0xff]
      %v303 = vld [vmem:[#allocation2 + $0x48] sm:$0xff]
      %v304 = vld [vmem:[#allocation2 + $0x50] sm:$0xff]
      %v305 = vcombine.low %v297, %v301
      %v306 = vcombine.high %v297, %v301
      %v308 = vunpack.c.l.s4 1983009808
      %v309 = vunpack.c.0.s8 %v308
      %v310 = vlaneseq
      %v311 = vshrl.u32 %v310, 7
      %v312 = vsub.s32 %v309, %v311
      %v313 = vrot.slane %v305, %v312
      %v315 = vunpack.c.l.s4 1983009808
      %v316 = vunpack.c.0.s8 %v315
      %v317 = vlaneseq
      %v318 = vshrl.u32 %v317, 7
      %v319 = vsub.s32 %v316, %v318
      %v320 = vrot.slane %v306, %v319
      %v321 = vcombine.low %v299, %v303
      %v322 = vcombine.high %v299, %v303
      %v324 = vunpack.c.l.s4 1983009808
      %v325 = vunpack.c.0.s8 %v324
      %v326 = vlaneseq
      %v327 = vshrl.u32 %v326, 7
      %v328 = vsub.s32 %v325, %v327
      %v329 = vrot.slane %v321, %v328
      %v331 = vunpack.c.l.s4 1983009808
      %v332 = vunpack.c.0.s8 %v331
      %v333 = vlaneseq
      %v334 = vshrl.u32 %v333, 7
      %v335 = vsub.s32 %v332, %v334
      %v336 = vrot.slane %v322, %v335
      %v337 = vcombine.low %v313, %v329
      %v338 = vcombine.high %v313, %v329
      %v340 = vunpack.c.l.s4 1934713408
      %v341 = vunpack.c.0.s8 %v340
      %v342 = vlaneseq
      %v343 = vshrl.u32 %v342, 7
      %v344 = vsub.s32 %v341, %v343
      %v345 = vrot.slane %v337, %v344
      %v347 = vunpack.c.l.s4 1934713408
      %v348 = vunpack.c.0.s8 %v347
      %v349 = vlaneseq
      %v350 = vshrl.u32 %v349, 7
      %v351 = vsub.s32 %v348, %v350
      %v352 = vrot.slane %v338, %v351
      %v353 = vcombine.low %v320, %v336
      %v354 = vcombine.high %v320, %v336
      %v356 = vunpack.c.l.s4 1934713408
      %v357 = vunpack.c.0.s8 %v356
      %v358 = vlaneseq
      %v359 = vshrl.u32 %v358, 7
      %v360 = vsub.s32 %v357, %v359
      %v361 = vrot.slane %v353, %v360
      %v363 = vunpack.c.l.s4 1934713408
      %v364 = vunpack.c.0.s8 %v363
      %v365 = vlaneseq
      %v366 = vshrl.u32 %v365, 7
      %v367 = vsub.s32 %v364, %v366
      %v368 = vrot.slane %v354, %v367
      %v369 = vcombine.high %v345, 0.0
      %v370 = vcombine.high %v352, 0.0
      %v371 = vcombine.high %v361, 0.0
      %v372 = vcombine.high %v368, 0.0
      %v373 = vcombine.low %v298, %v302
      %v374 = vcombine.high %v298, %v302
      %v376 = vunpack.c.l.s4 1983009808
      %v377 = vunpack.c.0.s8 %v376
      %v378 = vlaneseq
      %v379 = vshrl.u32 %v378, 7
      %v380 = vsub.s32 %v377, %v379
      %v381 = vrot.slane %v373, %v380
      %v383 = vunpack.c.l.s4 1983009808
      %v384 = vunpack.c.0.s8 %v383
      %v385 = vlaneseq
      %v386 = vshrl.u32 %v385, 7
      %v387 = vsub.s32 %v384, %v386
      %v388 = vrot.slane %v374, %v387
      %v389 = vcombine.low %v300, %v304
      %v390 = vcombine.high %v300, %v304
      %v392 = vunpack.c.l.s4 1983009808
      %v393 = vunpack.c.0.s8 %v392
      %v394 = vlaneseq
      %v395 = vshrl.u32 %v394, 7
      %v396 = vsub.s32 %v393, %v395
      %v397 = vrot.slane %v389, %v396
      %v399 = vunpack.c.l.s4 1983009808
      %v400 = vunpack.c.0.s8 %v399
      %v401 = vlaneseq
      %v402 = vshrl.u32 %v401, 7
      %v403 = vsub.s32 %v400, %v402
      %v404 = vrot.slane %v390, %v403
      %v405 = vcombine.low %v381, %v397
      %v406 = vcombine.high %v381, %v397
      %v408 = vunpack.c.l.s4 1934713408
      %v409 = vunpack.c.0.s8 %v408
      %v410 = vlaneseq
      %v411 = vshrl.u32 %v410, 7
      %v412 = vsub.s32 %v409, %v411
      %v413 = vrot.slane %v405, %v412
      %v415 = vunpack.c.l.s4 1934713408
      %v416 = vunpack.c.0.s8 %v415
      %v417 = vlaneseq
      %v418 = vshrl.u32 %v417, 7
      %v419 = vsub.s32 %v416, %v418
      %v420 = vrot.slane %v406, %v419
      %v421 = vcombine.low %v388, %v404
      %v422 = vcombine.high %v388, %v404
      %v424 = vunpack.c.l.s4 1934713408
      %v425 = vunpack.c.0.s8 %v424
      %v426 = vlaneseq
      %v427 = vshrl.u32 %v426, 7
      %v428 = vsub.s32 %v425, %v427
      %v429 = vrot.slane %v421, %v428
      %v431 = vunpack.c.l.s4 1934713408
      %v432 = vunpack.c.0.s8 %v431
      %v433 = vlaneseq
      %v434 = vshrl.u32 %v433, 7
      %v435 = vsub.s32 %v432, %v434
      %v436 = vrot.slane %v422, %v435
      %v437 = vcombine.high %v413, 0.0
      %v438 = vcombine.high %v420, 0.0
      %v439 = vcombine.high %v429, 0.0
      %v440 = vcombine.high %v436, 0.0
      %442 = vrot.lane.b32.xlu0 %v369, 16
      %v443 = vpop.permute.xlu0 %442
      %446 = vrot.lane.b32.xlu0 %v352, 32
      %v447 = vpop.permute.xlu0 %446
      %450 = vrot.lane.b32.xlu0 %v370, 48
      %v451 = vpop.permute.xlu0 %450
      %454 = vrot.lane.b32.xlu0 %v361, 64
      %v455 = vpop.permute.xlu0 %454
      %458 = vrot.lane.b32.xlu0 %v371, 80
      %v459 = vpop.permute.xlu0 %458
      %462 = vrot.lane.b32.xlu0 %v368, 96
      %v463 = vpop.permute.xlu0 %462
      %466 = vrot.lane.b32.xlu0 %v372, 112
      %v467 = vpop.permute.xlu0 %466
      %470 = vrot.lane.b32.xlu0 %v437, 16
      %v471 = vpop.permute.xlu0 %470
      %474 = vrot.lane.b32.xlu0 %v420, 32
      %v475 = vpop.permute.xlu0 %474
      %478 = vrot.lane.b32.xlu0 %v438, 48
      %v479 = vpop.permute.xlu0 %478
      %482 = vrot.lane.b32.xlu0 %v429, 64
      %v483 = vpop.permute.xlu0 %482
      %486 = vrot.lane.b32.xlu0 %v439, 80
      %v487 = vpop.permute.xlu0 %486
      %490 = vrot.lane.b32.xlu0 %v436, 96
      %v491 = vpop.permute.xlu0 %490
      %494 = vrot.lane.b32.xlu0 %v440, 112
      %v495 = vpop.permute.xlu0 %494
      %vm497 = vcmask 130048
      %v498 = vsel %vm497, %v345, %v443
      %vm499 = vcmask 261120
      %v500 = vsel %vm499, %v498, %v447
      %vm501 = vcmask 392192
      %v502 = vsel %vm501, %v500, %v451
      %vm503 = vcmask 523264
      %v504 = vsel %vm503, %v502, %v455
      %vm505 = vcmask 654336
      %v506 = vsel %vm505, %v504, %v459
      %vm507 = vcmask 785408
      %v508 = vsel %vm507, %v506, %v463
      %vm509 = vcmask 916480
      %v510 = vsel %vm509, %v508, %v467
      %v511 = vsel %vm497, %v413, %v471
      %v512 = vsel %vm499, %v511, %v475
      %v513 = vsel %vm501, %v512, %v479
      %v514 = vsel %vm503, %v513, %v483
      %v515 = vsel %vm505, %v514, %v487
      %v516 = vsel %vm507, %v515, %v491
      %v517 = vsel %vm509, %v516, %v495
      %518 = vst [vmem:[#allocation3] sm:$0xf] %v510
      %519 = vst [vmem:[#allocation3 + $0x8] sm:$0xf] %v517
      %v520 = vld [vmem:[#allocation2] sm:$0xff]
      %v521 = vld [vmem:[#allocation2 + $0x8] sm:$0xff]
      %v522 = vld [vmem:[#allocation2 + $0x18] sm:$0xff]
      %v523 = vld [vmem:[#allocation2 + $0x20] sm:$0xff]
      %v524 = vld [vmem:[#allocation2 + $0x30] sm:$0xff]
      %v525 = vld [vmem:[#allocation2 + $0x38] sm:$0xff]
      %v526 = vld [vmem:[#allocation2 + $0x48] sm:$0xff]
      %v527 = vld [vmem:[#allocation2 + $0x50] sm:$0xff]
      %536 = vrot.lane.b32.xlu0 %v520, 127
      %v537 = vpop.permute.xlu0 %536
      %538 = vrot.lane.b32.xlu0 %v521, 127
      %v539 = vpop.permute.xlu0 %538
      %540 = vrot.lane.b32.xlu0 %v522, 127
      %v541 = vpop.permute.xlu0 %540
      %542 = vrot.lane.b32.xlu0 %v523, 127
      %v543 = vpop.permute.xlu0 %542
      %544 = vrot.lane.b32.xlu0 %v524, 127
      %v545 = vpop.permute.xlu0 %544
      %546 = vrot.lane.b32.xlu0 %v525, 127
      %v547 = vpop.permute.xlu0 %546
      %548 = vrot.lane.b32.xlu0 %v526, 127
      %v549 = vpop.permute.xlu0 %548
      %550 = vrot.lane.b32.xlu0 %v527, 127
      %v551 = vpop.permute.xlu0 %550
      %v560 = vcombine.low %v537, %v545
      %v561 = vcombine.high %v537, %v545
      %v563 = vunpack.c.l.s4 1983009808
      %v564 = vunpack.c.0.s8 %v563
      %v565 = vlaneseq
      %v566 = vshrl.u32 %v565, 7
      %v567 = vsub.s32 %v564, %v566
      %v568 = vrot.slane %v560, %v567
      %v570 = vunpack.c.l.s4 1983009808
      %v571 = vunpack.c.0.s8 %v570
      %v572 = vlaneseq
      %v573 = vshrl.u32 %v572, 7
      %v574 = vsub.s32 %v571, %v573
      %v575 = vrot.slane %v561, %v574
      %v576 = vcombine.low %v541, %v549
      %v577 = vcombine.high %v541, %v549
      %v579 = vunpack.c.l.s4 1983009808
      %v580 = vunpack.c.0.s8 %v579
      %v581 = vlaneseq
      %v582 = vshrl.u32 %v581, 7
      %v583 = vsub.s32 %v580, %v582
      %v584 = vrot.slane %v576, %v583
      %v586 = vunpack.c.l.s4 1983009808
      %v587 = vunpack.c.0.s8 %v586
      %v588 = vlaneseq
      %v589 = vshrl.u32 %v588, 7
      %v590 = vsub.s32 %v587, %v589
      %v591 = vrot.slane %v577, %v590
      %v592 = vcombine.low %v568, %v584
      %v593 = vcombine.high %v568, %v584
      %v595 = vunpack.c.l.s4 1934713408
      %v596 = vunpack.c.0.s8 %v595
      %v597 = vlaneseq
      %v598 = vshrl.u32 %v597, 7
      %v599 = vsub.s32 %v596, %v598
      %v600 = vrot.slane %v592, %v599
      %v602 = vunpack.c.l.s4 1934713408
      %v603 = vunpack.c.0.s8 %v602
      %v604 = vlaneseq
      %v605 = vshrl.u32 %v604, 7
      %v606 = vsub.s32 %v603, %v605
      %v607 = vrot.slane %v593, %v606
      %v608 = vcombine.low %v575, %v591
      %v609 = vcombine.high %v575, %v591
      %v611 = vunpack.c.l.s4 1934713408
      %v612 = vunpack.c.0.s8 %v611
      %v613 = vlaneseq
      %v614 = vshrl.u32 %v613, 7
      %v615 = vsub.s32 %v612, %v614
      %v616 = vrot.slane %v608, %v615
      %v618 = vunpack.c.l.s4 1934713408
      %v619 = vunpack.c.0.s8 %v618
      %v620 = vlaneseq
      %v621 = vshrl.u32 %v620, 7
      %v622 = vsub.s32 %v619, %v621
      %v623 = vrot.slane %v609, %v622
      %v624 = vcombine.high %v600, 0.0
      %v625 = vcombine.high %v607, 0.0
      %v626 = vcombine.high %v616, 0.0
      %v627 = vcombine.high %v623, 0.0
      %v628 = vcombine.low %v539, %v547
      %v629 = vcombine.high %v539, %v547
      %v631 = vunpack.c.l.s4 1983009808
      %v632 = vunpack.c.0.s8 %v631
      %v633 = vlaneseq
      %v634 = vshrl.u32 %v633, 7
      %v635 = vsub.s32 %v632, %v634
      %v636 = vrot.slane %v628, %v635
      %v638 = vunpack.c.l.s4 1983009808
      %v639 = vunpack.c.0.s8 %v638
      %v640 = vlaneseq
      %v641 = vshrl.u32 %v640, 7
      %v642 = vsub.s32 %v639, %v641
      %v643 = vrot.slane %v629, %v642
      %v644 = vcombine.low %v543, %v551
      %v645 = vcombine.high %v543, %v551
      %v647 = vunpack.c.l.s4 1983009808
      %v648 = vunpack.c.0.s8 %v647
      %v649 = vlaneseq
      %v650 = vshrl.u32 %v649, 7
      %v651 = vsub.s32 %v648, %v650
      %v652 = vrot.slane %v644, %v651
      %v654 = vunpack.c.l.s4 1983009808
      %v655 = vunpack.c.0.s8 %v654
      %v656 = vlaneseq
      %v657 = vshrl.u32 %v656, 7
      %v658 = vsub.s32 %v655, %v657
      %v659 = vrot.slane %v645, %v658
      %v660 = vcombine.low %v636, %v652
      %v661 = vcombine.high %v636, %v652
      %v663 = vunpack.c.l.s4 1934713408
      %v664 = vunpack.c.0.s8 %v663
      %v665 = vlaneseq
      %v666 = vshrl.u32 %v665, 7
      %v667 = vsub.s32 %v664, %v666
      %v668 = vrot.slane %v660, %v667
      %v670 = vunpack.c.l.s4 1934713408
      %v671 = vunpack.c.0.s8 %v670
      %v672 = vlaneseq
      %v673 = vshrl.u32 %v672, 7
      %v674 = vsub.s32 %v671, %v673
      %v675 = vrot.slane %v661, %v674
      %v676 = vcombine.low %v643, %v659
      %v677 = vcombine.high %v643, %v659
      %v679 = vunpack.c.l.s4 1934713408
      %v680 = vunpack.c.0.s8 %v679
      %v681 = vlaneseq
      %v682 = vshrl.u32 %v681, 7
      %v683 = vsub.s32 %v680, %v682
      %v684 = vrot.slane %v676, %v683
      %v686 = vunpack.c.l.s4 1934713408
      %v687 = vunpack.c.0.s8 %v686
      %v688 = vlaneseq
      %v689 = vshrl.u32 %v688, 7
      %v690 = vsub.s32 %v687, %v689
      %v691 = vrot.slane %v677, %v690
      %v692 = vcombine.high %v668, 0.0
      %v693 = vcombine.high %v675, 0.0
      %v694 = vcombine.high %v684, 0.0
      %v695 = vcombine.high %v691, 0.0
      %697 = vrot.lane.b32.xlu0 %v624, 16
      %v698 = vpop.permute.xlu0 %697
      %701 = vrot.lane.b32.xlu0 %v607, 32
      %v702 = vpop.permute.xlu0 %701
      %705 = vrot.lane.b32.xlu0 %v625, 48
      %v706 = vpop.permute.xlu0 %705
      %709 = vrot.lane.b32.xlu0 %v616, 64
      %v710 = vpop.permute.xlu0 %709
      %713 = vrot.lane.b32.xlu0 %v626, 80
      %v714 = vpop.permute.xlu0 %713
      %717 = vrot.lane.b32.xlu0 %v623, 96
      %v718 = vpop.permute.xlu0 %717
      %721 = vrot.lane.b32.xlu0 %v627, 112
      %v722 = vpop.permute.xlu0 %721
      %725 = vrot.lane.b32.xlu0 %v692, 16
      %v726 = vpop.permute.xlu0 %725
      %729 = vrot.lane.b32.xlu0 %v675, 32
      %v730 = vpop.permute.xlu0 %729
      %733 = vrot.lane.b32.xlu0 %v693, 48
      %v734 = vpop.permute.xlu0 %733
      %737 = vrot.lane.b32.xlu0 %v684, 64
      %v738 = vpop.permute.xlu0 %737
      %741 = vrot.lane.b32.xlu0 %v694, 80
      %v742 = vpop.permute.xlu0 %741
      %745 = vrot.lane.b32.xlu0 %v691, 96
      %v746 = vpop.permute.xlu0 %745
      %749 = vrot.lane.b32.xlu0 %v695, 112
      %v750 = vpop.permute.xlu0 %749
      %v752 = vsel %vm497, %v600, %v698
      %v753 = vsel %vm499, %v752, %v702
      %v754 = vsel %vm501, %v753, %v706
      %v755 = vsel %vm503, %v754, %v710
      %v756 = vsel %vm505, %v755, %v714
      %v757 = vsel %vm507, %v756, %v718
      %v758 = vsel %vm509, %v757, %v722
      %v759 = vsel %vm497, %v668, %v726
      %v760 = vsel %vm499, %v759, %v730
      %v761 = vsel %vm501, %v760, %v734
      %v762 = vsel %vm503, %v761, %v738
      %v763 = vsel %vm505, %v762, %v742
      %v764 = vsel %vm507, %v763, %v746
      %v765 = vsel %vm509, %v764, %v750
      %v768 = vrot.slane %v758, 4
      %v769 = vrot.slane %v765, 4
      %772 = vst [vmem:[#allocation3] sm:$0xf0] %v768
      %773 = vst [vmem:[#allocation3 + $0x8] sm:$0xf0] %v769
      %v774 = vld [vmem:[#allocation2] sm:$0xff]
      %v775 = vld [vmem:[#allocation2 + $0x8] sm:$0xff]
      %v776 = vld [vmem:[#allocation2 + $0x18] sm:$0xff]
      %v777 = vld [vmem:[#allocation2 + $0x20] sm:$0xff]
      %v778 = vld [vmem:[#allocation2 + $0x30] sm:$0xff]
      %v779 = vld [vmem:[#allocation2 + $0x38] sm:$0xff]
      %v780 = vld [vmem:[#allocation2 + $0x48] sm:$0xff]
      %v781 = vld [vmem:[#allocation2 + $0x50] sm:$0xff]
      %790 = vrot.lane.b32.xlu0 %v774, 126
      %v791 = vpop.permute.xlu0 %790
      %792 = vrot.lane.b32.xlu0 %v775, 126
      %v793 = vpop.permute.xlu0 %792
      %794 = vrot.lane.b32.xlu0 %v776, 126
      %v795 = vpop.permute.xlu0 %794
      %796 = vrot.lane.b32.xlu0 %v777, 126
      %v797 = vpop.permute.xlu0 %796
      %798 = vrot.lane.b32.xlu0 %v778, 126
      %v799 = vpop.permute.xlu0 %798
      %800 = vrot.lane.b32.xlu0 %v779, 126
      %v801 = vpop.permute.xlu0 %800
      %802 = vrot.lane.b32.xlu0 %v780, 126
      %v803 = vpop.permute.xlu0 %802
      %804 = vrot.lane.b32.xlu0 %v781, 126
      %v805 = vpop.permute.xlu0 %804
      %v814 = vcombine.low %v791, %v799
      %v815 = vcombine.high %v791, %v799
      %v817 = vunpack.c.l.s4 1983009808
      %v818 = vunpack.c.0.s8 %v817
      %v819 = vlaneseq
      %v820 = vshrl.u32 %v819, 7
      %v821 = vsub.s32 %v818, %v820
      %v822 = vrot.slane %v814, %v821
      %v824 = vunpack.c.l.s4 1983009808
      %v825 = vunpack.c.0.s8 %v824
      %v826 = vlaneseq
      %v827 = vshrl.u32 %v826, 7
      %v828 = vsub.s32 %v825, %v827
      %v829 = vrot.slane %v815, %v828
      %v830 = vcombine.low %v795, %v803
      %v831 = vcombine.high %v795, %v803
      %v833 = vunpack.c.l.s4 1983009808
      %v834 = vunpack.c.0.s8 %v833
      %v835 = vlaneseq
      %v836 = vshrl.u32 %v835, 7
      %v837 = vsub.s32 %v834, %v836
      %v838 = vrot.slane %v830, %v837
      %v840 = vunpack.c.l.s4 1983009808
      %v841 = vunpack.c.0.s8 %v840
      %v842 = vlaneseq
      %v843 = vshrl.u32 %v842, 7
      %v844 = vsub.s32 %v841, %v843
      %v845 = vrot.slane %v831, %v844
      %v846 = vcombine.low %v822, %v838
      %v847 = vcombine.high %v822, %v838
      %v849 = vunpack.c.l.s4 1934713408
      %v850 = vunpack.c.0.s8 %v849
      %v851 = vlaneseq
      %v852 = vshrl.u32 %v851, 7
      %v853 = vsub.s32 %v850, %v852
      %v854 = vrot.slane %v846, %v853
      %v856 = vunpack.c.l.s4 1934713408
      %v857 = vunpack.c.0.s8 %v856
      %v858 = vlaneseq
      %v859 = vshrl.u32 %v858, 7
      %v860 = vsub.s32 %v857, %v859
      %v861 = vrot.slane %v847, %v860
      %v862 = vcombine.low %v829, %v845
      %v863 = vcombine.high %v829, %v845
      %v865 = vunpack.c.l.s4 1934713408
      %v866 = vunpack.c.0.s8 %v865
      %v867 = vlaneseq
      %v868 = vshrl.u32 %v867, 7
      %v869 = vsub.s32 %v866, %v868
      %v870 = vrot.slane %v862, %v869
      %v872 = vunpack.c.l.s4 1934713408
      %v873 = vunpack.c.0.s8 %v872
      %v874 = vlaneseq
      %v875 = vshrl.u32 %v874, 7
      %v876 = vsub.s32 %v873, %v875
      %v877 = vrot.slane %v863, %v876
      %v878 = vcombine.high %v854, 0.0
      %v879 = vcombine.high %v861, 0.0
      %v880 = vcombine.high %v870, 0.0
      %v881 = vcombine.high %v877, 0.0
      %v882 = vcombine.low %v793, %v801
      %v883 = vcombine.high %v793, %v801
      %v885 = vunpack.c.l.s4 1983009808
      %v886 = vunpack.c.0.s8 %v885
      %v887 = vlaneseq
      %v888 = vshrl.u32 %v887, 7
      %v889 = vsub.s32 %v886, %v888
      %v890 = vrot.slane %v882, %v889
      %v892 = vunpack.c.l.s4 1983009808
      %v893 = vunpack.c.0.s8 %v892
      %v894 = vlaneseq
      %v895 = vshrl.u32 %v894, 7
      %v896 = vsub.s32 %v893, %v895
      %v897 = vrot.slane %v883, %v896
      %v898 = vcombine.low %v797, %v805
      %v899 = vcombine.high %v797, %v805
      %v901 = vunpack.c.l.s4 1983009808
      %v902 = vunpack.c.0.s8 %v901
      %v903 = vlaneseq
      %v904 = vshrl.u32 %v903, 7
      %v905 = vsub.s32 %v902, %v904
      %v906 = vrot.slane %v898, %v905
      %v908 = vunpack.c.l.s4 1983009808
      %v909 = vunpack.c.0.s8 %v908
      %v910 = vlaneseq
      %v911 = vshrl.u32 %v910, 7
      %v912 = vsub.s32 %v909, %v911
      %v913 = vrot.slane %v899, %v912
      %v914 = vcombine.low %v890, %v906
      %v915 = vcombine.high %v890, %v906
      %v917 = vunpack.c.l.s4 1934713408
      %v918 = vunpack.c.0.s8 %v917
      %v919 = vlaneseq
      %v920 = vshrl.u32 %v919, 7
      %v921 = vsub.s32 %v918, %v920
      %v922 = vrot.slane %v914, %v921
      %v924 = vunpack.c.l.s4 1934713408
      %v925 = vunpack.c.0.s8 %v924
      %v926 = vlaneseq
      %v927 = vshrl.u32 %v926, 7
      %v928 = vsub.s32 %v925, %v927
      %v929 = vrot.slane %v915, %v928
      %v930 = vcombine.low %v897, %v913
      %v931 = vcombine.high %v897, %v913
      %v933 = vunpack.c.l.s4 1934713408
      %v934 = vunpack.c.0.s8 %v933
      %v935 = vlaneseq
      %v936 = vshrl.u32 %v935, 7
      %v937 = vsub.s32 %v934, %v936
      %v938 = vrot.slane %v930, %v937
      %v940 = vunpack.c.l.s4 1934713408
      %v941 = vunpack.c.0.s8 %v940
      %v942 = vlaneseq
      %v943 = vshrl.u32 %v942, 7
      %v944 = vsub.s32 %v941, %v943
      %v945 = vrot.slane %v931, %v944
      %v946 = vcombine.high %v922, 0.0
      %v947 = vcombine.high %v929, 0.0
      %v948 = vcombine.high %v938, 0.0
      %v949 = vcombine.high %v945, 0.0
      %951 = vrot.lane.b32.xlu0 %v878, 16
      %v952 = vpop.permute.xlu0 %951
      %955 = vrot.lane.b32.xlu0 %v861, 32
      %v956 = vpop.permute.xlu0 %955
      %959 = vrot.lane.b32.xlu0 %v879, 48
      %v960 = vpop.permute.xlu0 %959
      %963 = vrot.lane.b32.xlu0 %v870, 64
      %v964 = vpop.permute.xlu0 %963
      %967 = vrot.lane.b32.xlu0 %v880, 80
      %v968 = vpop.permute.xlu0 %967
      %971 = vrot.lane.b32.xlu0 %v877, 96
      %v972 = vpop.permute.xlu0 %971
      %975 = vrot.lane.b32.xlu0 %v881, 112
      %v976 = vpop.permute.xlu0 %975
      %979 = vrot.lane.b32.xlu0 %v946, 16
      %v980 = vpop.permute.xlu0 %979
      %983 = vrot.lane.b32.xlu0 %v929, 32
      %v984 = vpop.permute.xlu0 %983
      %987 = vrot.lane.b32.xlu0 %v947, 48
      %v988 = vpop.permute.xlu0 %987
      %991 = vrot.lane.b32.xlu0 %v938, 64
      %v992 = vpop.permute.xlu0 %991
      %995 = vrot.lane.b32.xlu0 %v948, 80
      %v996 = vpop.permute.xlu0 %995
      %999 = vrot.lane.b32.xlu0 %v945, 96
      %v1000 = vpop.permute.xlu0 %999
      %1003 = vrot.lane.b32.xlu0 %v949, 112
      %v1004 = vpop.permute.xlu0 %1003
      %v1006 = vsel %vm497, %v854, %v952
      %v1007 = vsel %vm499, %v1006, %v956
      %v1008 = vsel %vm501, %v1007, %v960
      %v1009 = vsel %vm503, %v1008, %v964
      %v1010 = vsel %vm505, %v1009, %v968
      %v1011 = vsel %vm507, %v1010, %v972
      %v1012 = vsel %vm509, %v1011, %v976
      %v1013 = vsel %vm497, %v922, %v980
      %v1014 = vsel %vm499, %v1013, %v984
      %v1015 = vsel %vm501, %v1014, %v988
      %v1016 = vsel %vm503, %v1015, %v992
      %v1017 = vsel %vm505, %v1016, %v996
      %v1018 = vsel %vm507, %v1017, %v1000
      %v1019 = vsel %vm509, %v1018, %v1004
      %1020 = vst [vmem:[#allocation3 + $0x10] sm:$0xf] %v1012
      %1021 = vst [vmem:[#allocation3 + $0x18] sm:$0xf] %v1019
      %v1022 = vld [vmem:[#allocation2 + $0x1] sm:$0xff]
      %v1023 = vld [vmem:[#allocation2 + $0x9] sm:$0xff]
      %v1024 = vld [vmem:[#allocation2 + $0x19] sm:$0xff]
      %v1025 = vld [vmem:[#allocation2 + $0x21] sm:$0xff]
      %v1026 = vld [vmem:[#allocation2 + $0x31] sm:$0xff]
      %v1027 = vld [vmem:[#allocation2 + $0x39] sm:$0xff]
      %v1028 = vld [vmem:[#allocation2 + $0x49] sm:$0xff]
      %v1029 = vld [vmem:[#allocation2 + $0x51] sm:$0xff]
      %v1030 = vcombine.low %v1022, %v1026
      %v1031 = vcombine.high %v1022, %v1026
      %v1033 = vunpack.c.l.s4 1983009808
      %v1034 = vunpack.c.0.s8 %v1033
      %v1035 = vlaneseq
      %v1036 = vshrl.u32 %v1035, 7
      %v1037 = vsub.s32 %v1034, %v1036
      %v1038 = vrot.slane %v1030, %v1037
      %v1040 = vunpack.c.l.s4 1983009808
      %v1041 = vunpack.c.0.s8 %v1040
      %v1042 = vlaneseq
      %v1043 = vshrl.u32 %v1042, 7
      %v1044 = vsub.s32 %v1041, %v1043
      %v1045 = vrot.slane %v1031, %v1044
      %v1046 = vcombine.low %v1024, %v1028
      %v1047 = vcombine.high %v1024, %v1028
      %v1049 = vunpack.c.l.s4 1983009808
      %v1050 = vunpack.c.0.s8 %v1049
      %v1051 = vlaneseq
      %v1052 = vshrl.u32 %v1051, 7
      %v1053 = vsub.s32 %v1050, %v1052
      %v1054 = vrot.slane %v1046, %v1053
      %v1056 = vunpack.c.l.s4 1983009808
      %v1057 = vunpack.c.0.s8 %v1056
      %v1058 = vlaneseq
      %v1059 = vshrl.u32 %v1058, 7
      %v1060 = vsub.s32 %v1057, %v1059
      %v1061 = vrot.slane %v1047, %v1060
      %v1062 = vcombine.low %v1038, %v1054
      %v1063 = vcombine.high %v1038, %v1054
      %v1065 = vunpack.c.l.s4 1934713408
      %v1066 = vunpack.c.0.s8 %v1065
      %v1067 = vlaneseq
      %v1068 = vshrl.u32 %v1067, 7
      %v1069 = vsub.s32 %v1066, %v1068
      %v1070 = vrot.slane %v1062, %v1069
      %v1072 = vunpack.c.l.s4 1934713408
      %v1073 = vunpack.c.0.s8 %v1072
      %v1074 = vlaneseq
      %v1075 = vshrl.u32 %v1074, 7
      %v1076 = vsub.s32 %v1073, %v1075
      %v1077 = vrot.slane %v1063, %v1076
      %v1078 = vcombine.low %v1045, %v1061
      %v1079 = vcombine.high %v1045, %v1061
      %v1081 = vunpack.c.l.s4 1934713408
      %v1082 = vunpack.c.0.s8 %v1081
      %v1083 = vlaneseq
      %v1084 = vshrl.u32 %v1083, 7
      %v1085 = vsub.s32 %v1082, %v1084
      %v1086 = vrot.slane %v1078, %v1085
      %v1088 = vunpack.c.l.s4 1934713408
      %v1089 = vunpack.c.0.s8 %v1088
      %v1090 = vlaneseq
      %v1091 = vshrl.u32 %v1090, 7
      %v1092 = vsub.s32 %v1089, %v1091
      %v1093 = vrot.slane %v1079, %v1092
      %v1094 = vcombine.high %v1070, 0.0
      %v1095 = vcombine.high %v1077, 0.0
      %v1096 = vcombine.high %v1086, 0.0
      %v1097 = vcombine.high %v1093, 0.0
      %v1098 = vcombine.low %v1023, %v1027
      %v1099 = vcombine.high %v1023, %v1027
      %v1101 = vunpack.c.l.s4 1983009808
      %v1102 = vunpack.c.0.s8 %v1101
      %v1103 = vlaneseq
      %v1104 = vshrl.u32 %v1103, 7
      %v1105 = vsub.s32 %v1102, %v1104
      %v1106 = vrot.slane %v1098, %v1105
      %v1108 = vunpack.c.l.s4 1983009808
      %v1109 = vunpack.c.0.s8 %v1108
      %v1110 = vlaneseq
      %v1111 = vshrl.u32 %v1110, 7
      %v1112 = vsub.s32 %v1109, %v1111
      %v1113 = vrot.slane %v1099, %v1112
      %v1114 = vcombine.low %v1025, %v1029
      %v1115 = vcombine.high %v1025, %v1029
      %v1117 = vunpack.c.l.s4 1983009808
      %v1118 = vunpack.c.0.s8 %v1117
      %v1119 = vlaneseq
      %v1120 = vshrl.u32 %v1119, 7
      %v1121 = vsub.s32 %v1118, %v1120
      %v1122 = vrot.slane %v1114, %v1121
      %v1124 = vunpack.c.l.s4 1983009808
      %v1125 = vunpack.c.0.s8 %v1124
      %v1126 = vlaneseq
      %v1127 = vshrl.u32 %v1126, 7
      %v1128 = vsub.s32 %v1125, %v1127
      %v1129 = vrot.slane %v1115, %v1128
      %v1130 = vcombine.low %v1106, %v1122
      %v1131 = vcombine.high %v1106, %v1122
      %v1133 = vunpack.c.l.s4 1934713408
      %v1134 = vunpack.c.0.s8 %v1133
      %v1135 = vlaneseq
      %v1136 = vshrl.u32 %v1135, 7
      %v1137 = vsub.s32 %v1134, %v1136
      %v1138 = vrot.slane %v1130, %v1137
      %v1140 = vunpack.c.l.s4 1934713408
      %v1141 = vunpack.c.0.s8 %v1140
      %v1142 = vlaneseq
      %v1143 = vshrl.u32 %v1142, 7
      %v1144 = vsub.s32 %v1141, %v1143
      %v1145 = vrot.slane %v1131, %v1144
      %v1146 = vcombine.low %v1113, %v1129
      %v1147 = vcombine.high %v1113, %v1129
      %v1149 = vunpack.c.l.s4 1934713408
      %v1150 = vunpack.c.0.s8 %v1149
      %v1151 = vlaneseq
      %v1152 = vshrl.u32 %v1151, 7
      %v1153 = vsub.s32 %v1150, %v1152
      %v1154 = vrot.slane %v1146, %v1153
      %v1156 = vunpack.c.l.s4 1934713408
      %v1157 = vunpack.c.0.s8 %v1156
      %v1158 = vlaneseq
      %v1159 = vshrl.u32 %v1158, 7
      %v1160 = vsub.s32 %v1157, %v1159
      %v1161 = vrot.slane %v1147, %v1160
      %v1162 = vcombine.high %v1138, 0.0
      %v1163 = vcombine.high %v1145, 0.0
      %v1164 = vcombine.high %v1154, 0.0
      %v1165 = vcombine.high %v1161, 0.0
      %1167 = vrot.lane.b32.xlu0 %v1094, 16
      %v1168 = vpop.permute.xlu0 %1167
      %1171 = vrot.lane.b32.xlu0 %v1077, 32
      %v1172 = vpop.permute.xlu0 %1171
      %1175 = vrot.lane.b32.xlu0 %v1095, 48
      %v1176 = vpop.permute.xlu0 %1175
      %1179 = vrot.lane.b32.xlu0 %v1086, 64
      %v1180 = vpop.permute.xlu0 %1179
      %1183 = vrot.lane.b32.xlu0 %v1096, 80
      %v1184 = vpop.permute.xlu0 %1183
      %1187 = vrot.lane.b32.xlu0 %v1093, 96
      %v1188 = vpop.permute.xlu0 %1187
      %1191 = vrot.lane.b32.xlu0 %v1097, 112
      %v1192 = vpop.permute.xlu0 %1191
      %1195 = vrot.lane.b32.xlu0 %v1162, 16
      %v1196 = vpop.permute.xlu0 %1195
      %1199 = vrot.lane.b32.xlu0 %v1145, 32
      %v1200 = vpop.permute.xlu0 %1199
      %1203 = vrot.lane.b32.xlu0 %v1163, 48
      %v1204 = vpop.permute.xlu0 %1203
      %1207 = vrot.lane.b32.xlu0 %v1154, 64
      %v1208 = vpop.permute.xlu0 %1207
      %1211 = vrot.lane.b32.xlu0 %v1164, 80
      %v1212 = vpop.permute.xlu0 %1211
      %1215 = vrot.lane.b32.xlu0 %v1161, 96
      %v1216 = vpop.permute.xlu0 %1215
      %1219 = vrot.lane.b32.xlu0 %v1165, 112
      %v1220 = vpop.permute.xlu0 %1219
      %v1222 = vsel %vm497, %v1070, %v1168
      %v1223 = vsel %vm499, %v1222, %v1172
      %v1224 = vsel %vm501, %v1223, %v1176
      %v1225 = vsel %vm503, %v1224, %v1180
      %v1226 = vsel %vm505, %v1225, %v1184
      %v1227 = vsel %vm507, %v1226, %v1188
      %v1228 = vsel %vm509, %v1227, %v1192
      %v1229 = vsel %vm497, %v1138, %v1196
      %v1230 = vsel %vm499, %v1229, %v1200
      %v1231 = vsel %vm501, %v1230, %v1204
      %v1232 = vsel %vm503, %v1231, %v1208
      %v1233 = vsel %vm505, %v1232, %v1212
      %v1234 = vsel %vm507, %v1233, %v1216
      %v1235 = vsel %vm509, %v1234, %v1220
      %v1238 = vrot.slane %v1228, 4
      %v1239 = vrot.slane %v1235, 4
      %1242 = vst [vmem:[#allocation3 + $0x10] sm:$0xf0] %v1238
      %1243 = vst [vmem:[#allocation3 + $0x18] sm:$0xf0] %v1239
      %v1244 = vld [vmem:[#allocation2 + $0x1] sm:$0xff]
      %v1245 = vld [vmem:[#allocation2 + $0x9] sm:$0xff]
      %v1246 = vld [vmem:[#allocation2 + $0x19] sm:$0xff]
      %v1247 = vld [vmem:[#allocation2 + $0x21] sm:$0xff]
      %v1248 = vld [vmem:[#allocation2 + $0x31] sm:$0xff]
      %v1249 = vld [vmem:[#allocation2 + $0x39] sm:$0xff]
      %v1250 = vld [vmem:[#allocation2 + $0x49] sm:$0xff]
      %v1251 = vld [vmem:[#allocation2 + $0x51] sm:$0xff]
      %1260 = vrot.lane.b32.xlu0 %v1244, 127
      %v1261 = vpop.permute.xlu0 %1260
      %1262 = vrot.lane.b32.xlu0 %v1245, 127
      %v1263 = vpop.permute.xlu0 %1262
      %1264 = vrot.lane.b32.xlu0 %v1246, 127
      %v1265 = vpop.permute.xlu0 %1264
      %1266 = vrot.lane.b32.xlu0 %v1247, 127
      %v1267 = vpop.permute.xlu0 %1266
      %1268 = vrot.lane.b32.xlu0 %v1248, 127
      %v1269 = vpop.permute.xlu0 %1268
      %1270 = vrot.lane.b32.xlu0 %v1249, 127
      %v1271 = vpop.permute.xlu0 %1270
      %1272 = vrot.lane.b32.xlu0 %v1250, 127
      %v1273 = vpop.permute.xlu0 %1272
      %1274 = vrot.lane.b32.xlu0 %v1251, 127
      %v1275 = vpop.permute.xlu0 %1274
      %v1284 = vcombine.low %v1261, %v1269
      %v1285 = vcombine.high %v1261, %v1269
      %v1287 = vunpack.c.l.s4 1983009808
      %v1288 = vunpack.c.0.s8 %v1287
      %v1289 = vlaneseq
      %v1290 = vshrl.u32 %v1289, 7
      %v1291 = vsub.s32 %v1288, %v1290
      %v1292 = vrot.slane %v1284, %v1291
      %v1294 = vunpack.c.l.s4 1983009808
      %v1295 = vunpack.c.0.s8 %v1294
      %v1296 = vlaneseq
      %v1297 = vshrl.u32 %v1296, 7
      %v1298 = vsub.s32 %v1295, %v1297
      %v1299 = vrot.slane %v1285, %v1298
      %v1300 = vcombine.low %v1265, %v1273
      %v1301 = vcombine.high %v1265, %v1273
      %v1303 = vunpack.c.l.s4 1983009808
      %v1304 = vunpack.c.0.s8 %v1303
      %v1305 = vlaneseq
      %v1306 = vshrl.u32 %v1305, 7
      %v1307 = vsub.s32 %v1304, %v1306
      %v1308 = vrot.slane %v1300, %v1307
      %v1310 = vunpack.c.l.s4 1983009808
      %v1311 = vunpack.c.0.s8 %v1310
      %v1312 = vlaneseq
      %v1313 = vshrl.u32 %v1312, 7
      %v1314 = vsub.s32 %v1311, %v1313
      %v1315 = vrot.slane %v1301, %v1314
      %v1316 = vcombine.low %v1292, %v1308
      %v1317 = vcombine.high %v1292, %v1308
      %v1319 = vunpack.c.l.s4 1934713408
      %v1320 = vunpack.c.0.s8 %v1319
      %v1321 = vlaneseq
      %v1322 = vshrl.u32 %v1321, 7
      %v1323 = vsub.s32 %v1320, %v1322
      %v1324 = vrot.slane %v1316, %v1323
      %v1326 = vunpack.c.l.s4 1934713408
      %v1327 = vunpack.c.0.s8 %v1326
      %v1328 = vlaneseq
      %v1329 = vshrl.u32 %v1328, 7
      %v1330 = vsub.s32 %v1327, %v1329
      %v1331 = vrot.slane %v1317, %v1330
      %v1332 = vcombine.low %v1299, %v1315
      %v1333 = vcombine.high %v1299, %v1315
      %v1335 = vunpack.c.l.s4 1934713408
      %v1336 = vunpack.c.0.s8 %v1335
      %v1337 = vlaneseq
      %v1338 = vshrl.u32 %v1337, 7
      %v1339 = vsub.s32 %v1336, %v1338
      %v1340 = vrot.slane %v1332, %v1339
      %v1342 = vunpack.c.l.s4 1934713408
      %v1343 = vunpack.c.0.s8 %v1342
      %v1344 = vlaneseq
      %v1345 = vshrl.u32 %v1344, 7
      %v1346 = vsub.s32 %v1343, %v1345
      %v1347 = vrot.slane %v1333, %v1346
      %v1348 = vcombine.high %v1324, 0.0
      %v1349 = vcombine.high %v1331, 0.0
      %v1350 = vcombine.high %v1340, 0.0
      %v1351 = vcombine.high %v1347, 0.0
      %v1352 = vcombine.low %v1263, %v1271
      %v1353 = vcombine.high %v1263, %v1271
      %v1355 = vunpack.c.l.s4 1983009808
      %v1356 = vunpack.c.0.s8 %v1355
      %v1357 = vlaneseq
      %v1358 = vshrl.u32 %v1357, 7
      %v1359 = vsub.s32 %v1356, %v1358
      %v1360 = vrot.slane %v1352, %v1359
      %v1362 = vunpack.c.l.s4 1983009808
      %v1363 = vunpack.c.0.s8 %v1362
      %v1364 = vlaneseq
      %v1365 = vshrl.u32 %v1364, 7
      %v1366 = vsub.s32 %v1363, %v1365
      %v1367 = vrot.slane %v1353, %v1366
      %v1368 = vcombine.low %v1267, %v1275
      %v1369 = vcombine.high %v1267, %v1275
      %v1371 = vunpack.c.l.s4 1983009808
      %v1372 = vunpack.c.0.s8 %v1371
      %v1373 = vlaneseq
      %v1374 = vshrl.u32 %v1373, 7
      %v1375 = vsub.s32 %v1372, %v1374
      %v1376 = vrot.slane %v1368, %v1375
      %v1378 = vunpack.c.l.s4 1983009808
      %v1379 = vunpack.c.0.s8 %v1378
      %v1380 = vlaneseq
      %v1381 = vshrl.u32 %v1380, 7
      %v1382 = vsub.s32 %v1379, %v1381
      %v1383 = vrot.slane %v1369, %v1382
      %v1384 = vcombine.low %v1360, %v1376
      %v1385 = vcombine.high %v1360, %v1376
      %v1387 = vunpack.c.l.s4 1934713408
      %v1388 = vunpack.c.0.s8 %v1387
      %v1389 = vlaneseq
      %v1390 = vshrl.u32 %v1389, 7
      %v1391 = vsub.s32 %v1388, %v1390
      %v1392 = vrot.slane %v1384, %v1391
      %v1394 = vunpack.c.l.s4 1934713408
      %v1395 = vunpack.c.0.s8 %v1394
      %v1396 = vlaneseq
      %v1397 = vshrl.u32 %v1396, 7
      %v1398 = vsub.s32 %v1395, %v1397
      %v1399 = vrot.slane %v1385, %v1398
      %v1400 = vcombine.low %v1367, %v1383
      %v1401 = vcombine.high %v1367, %v1383
      %v1403 = vunpack.c.l.s4 1934713408
      %v1404 = vunpack.c.0.s8 %v1403
      %v1405 = vlaneseq
      %v1406 = vshrl.u32 %v1405, 7
      %v1407 = vsub.s32 %v1404, %v1406
      %v1408 = vrot.slane %v1400, %v1407
      %v1410 = vunpack.c.l.s4 1934713408
      %v1411 = vunpack.c.0.s8 %v1410
      %v1412 = vlaneseq
      %v1413 = vshrl.u32 %v1412, 7
      %v1414 = vsub.s32 %v1411, %v1413
      %v1415 = vrot.slane %v1401, %v1414
      %v1416 = vcombine.high %v1392, 0.0
      %v1417 = vcombine.high %v1399, 0.0
      %v1418 = vcombine.high %v1408, 0.0
      %v1419 = vcombine.high %v1415, 0.0
      %1421 = vrot.lane.b32.xlu0 %v1348, 16
      %v1422 = vpop.permute.xlu0 %1421
      %1425 = vrot.lane.b32.xlu0 %v1331, 32
      %v1426 = vpop.permute.xlu0 %1425
      %1429 = vrot.lane.b32.xlu0 %v1349, 48
      %v1430 = vpop.permute.xlu0 %1429
      %1433 = vrot.lane.b32.xlu0 %v1340, 64
      %v1434 = vpop.permute.xlu0 %1433
      %1437 = vrot.lane.b32.xlu0 %v1350, 80
      %v1438 = vpop.permute.xlu0 %1437
      %1441 = vrot.lane.b32.xlu0 %v1347, 96
      %v1442 = vpop.permute.xlu0 %1441
      %1445 = vrot.lane.b32.xlu0 %v1351, 112
      %v1446 = vpop.permute.xlu0 %1445
      %1449 = vrot.lane.b32.xlu0 %v1416, 16
      %v1450 = vpop.permute.xlu0 %1449
      %1453 = vrot.lane.b32.xlu0 %v1399, 32
      %v1454 = vpop.permute.xlu0 %1453
      %1457 = vrot.lane.b32.xlu0 %v1417, 48
      %v1458 = vpop.permute.xlu0 %1457
      %1461 = vrot.lane.b32.xlu0 %v1408, 64
      %v1462 = vpop.permute.xlu0 %1461
      %1465 = vrot.lane.b32.xlu0 %v1418, 80
      %v1466 = vpop.permute.xlu0 %1465
      %1469 = vrot.lane.b32.xlu0 %v1415, 96
      %v1470 = vpop.permute.xlu0 %1469
      %1473 = vrot.lane.b32.xlu0 %v1419, 112
      %v1474 = vpop.permute.xlu0 %1473
      %v1476 = vsel %vm497, %v1324, %v1422
      %v1477 = vsel %vm499, %v1476, %v1426
      %v1478 = vsel %vm501, %v1477, %v1430
      %v1479 = vsel %vm503, %v1478, %v1434
      %v1480 = vsel %vm505, %v1479, %v1438
      %v1481 = vsel %vm507, %v1480, %v1442
      %v1482 = vsel %vm509, %v1481, %v1446
      %v1483 = vsel %vm497, %v1392, %v1450
      %v1484 = vsel %vm499, %v1483, %v1454
      %v1485 = vsel %vm501, %v1484, %v1458
      %v1486 = vsel %vm503, %v1485, %v1462
      %v1487 = vsel %vm505, %v1486, %v1466
      %v1488 = vsel %vm507, %v1487, %v1470
      %v1489 = vsel %vm509, %v1488, %v1474
      %1490 = vst [vmem:[#allocation3 + $0x20] sm:$0xf] %v1482
      %1491 = vst [vmem:[#allocation3 + $0x28] sm:$0xf] %v1489
      %v1492 = vld [vmem:[#allocation2 + $0x1] sm:$0xff]
      %v1493 = vld [vmem:[#allocation2 + $0x9] sm:$0xff]
      %v1494 = vld [vmem:[#allocation2 + $0x19] sm:$0xff]
      %v1495 = vld [vmem:[#allocation2 + $0x21] sm:$0xff]
      %v1496 = vld [vmem:[#allocation2 + $0x31] sm:$0xff]
      %v1497 = vld [vmem:[#allocation2 + $0x39] sm:$0xff]
      %v1498 = vld [vmem:[#allocation2 + $0x49] sm:$0xff]
      %v1499 = vld [vmem:[#allocation2 + $0x51] sm:$0xff]
      %1508 = vrot.lane.b32.xlu0 %v1492, 126
      %v1509 = vpop.permute.xlu0 %1508
      %1510 = vrot.lane.b32.xlu0 %v1493, 126
      %v1511 = vpop.permute.xlu0 %1510
      %1512 = vrot.lane.b32.xlu0 %v1494, 126
      %v1513 = vpop.permute.xlu0 %1512
      %1514 = vrot.lane.b32.xlu0 %v1495, 126
      %v1515 = vpop.permute.xlu0 %1514
      %1516 = vrot.lane.b32.xlu0 %v1496, 126
      %v1517 = vpop.permute.xlu0 %1516
      %1518 = vrot.lane.b32.xlu0 %v1497, 126
      %v1519 = vpop.permute.xlu0 %1518
      %1520 = vrot.lane.b32.xlu0 %v1498, 126
      %v1521 = vpop.permute.xlu0 %1520
      %1522 = vrot.lane.b32.xlu0 %v1499, 126
      %v1523 = vpop.permute.xlu0 %1522
      %v1532 = vcombine.low %v1509, %v1517
      %v1533 = vcombine.high %v1509, %v1517
      %v1535 = vunpack.c.l.s4 1983009808
      %v1536 = vunpack.c.0.s8 %v1535
      %v1537 = vlaneseq
      %v1538 = vshrl.u32 %v1537, 7
      %v1539 = vsub.s32 %v1536, %v1538
      %v1540 = vrot.slane %v1532, %v1539
      %v1542 = vunpack.c.l.s4 1983009808
      %v1543 = vunpack.c.0.s8 %v1542
      %v1544 = vlaneseq
      %v1545 = vshrl.u32 %v1544, 7
      %v1546 = vsub.s32 %v1543, %v1545
      %v1547 = vrot.slane %v1533, %v1546
      %v1548 = vcombine.low %v1513, %v1521
      %v1549 = vcombine.high %v1513, %v1521
      %v1551 = vunpack.c.l.s4 1983009808
      %v1552 = vunpack.c.0.s8 %v1551
      %v1553 = vlaneseq
      %v1554 = vshrl.u32 %v1553, 7
      %v1555 = vsub.s32 %v1552, %v1554
      %v1556 = vrot.slane %v1548, %v1555
      %v1558 = vunpack.c.l.s4 1983009808
      %v1559 = vunpack.c.0.s8 %v1558
      %v1560 = vlaneseq
      %v1561 = vshrl.u32 %v1560, 7
      %v1562 = vsub.s32 %v1559, %v1561
      %v1563 = vrot.slane %v1549, %v1562
      %v1564 = vcombine.low %v1540, %v1556
      %v1565 = vcombine.high %v1540, %v1556
      %v1567 = vunpack.c.l.s4 1934713408
      %v1568 = vunpack.c.0.s8 %v1567
      %v1569 = vlaneseq
      %v1570 = vshrl.u32 %v1569, 7
      %v1571 = vsub.s32 %v1568, %v1570
      %v1572 = vrot.slane %v1564, %v1571
      %v1574 = vunpack.c.l.s4 1934713408
      %v1575 = vunpack.c.0.s8 %v1574
      %v1576 = vlaneseq
      %v1577 = vshrl.u32 %v1576, 7
      %v1578 = vsub.s32 %v1575, %v1577
      %v1579 = vrot.slane %v1565, %v1578
      %v1580 = vcombine.low %v1547, %v1563
      %v1581 = vcombine.high %v1547, %v1563
      %v1583 = vunpack.c.l.s4 1934713408
      %v1584 = vunpack.c.0.s8 %v1583
      %v1585 = vlaneseq
      %v1586 = vshrl.u32 %v1585, 7
      %v1587 = vsub.s32 %v1584, %v1586
      %v1588 = vrot.slane %v1580, %v1587
      %v1590 = vunpack.c.l.s4 1934713408
      %v1591 = vunpack.c.0.s8 %v1590
      %v1592 = vlaneseq
      %v1593 = vshrl.u32 %v1592, 7
      %v1594 = vsub.s32 %v1591, %v1593
      %v1595 = vrot.slane %v1581, %v1594
      %v1596 = vcombine.high %v1572, 0.0
      %v1597 = vcombine.high %v1579, 0.0
      %v1598 = vcombine.high %v1588, 0.0
      %v1599 = vcombine.high %v1595, 0.0
      %v1600 = vcombine.low %v1511, %v1519
      %v1601 = vcombine.high %v1511, %v1519
      %v1603 = vunpack.c.l.s4 1983009808
      %v1604 = vunpack.c.0.s8 %v1603
      %v1605 = vlaneseq
      %v1606 = vshrl.u32 %v1605, 7
      %v1607 = vsub.s32 %v1604, %v1606
      %v1608 = vrot.slane %v1600, %v1607
      %v1610 = vunpack.c.l.s4 1983009808
      %v1611 = vunpack.c.0.s8 %v1610
      %v1612 = vlaneseq
      %v1613 = vshrl.u32 %v1612, 7
      %v1614 = vsub.s32 %v1611, %v1613
      %v1615 = vrot.slane %v1601, %v1614
      %v1616 = vcombine.low %v1515, %v1523
      %v1617 = vcombine.high %v1515, %v1523
      %v1619 = vunpack.c.l.s4 1983009808
      %v1620 = vunpack.c.0.s8 %v1619
      %v1621 = vlaneseq
      %v1622 = vshrl.u32 %v1621, 7
      %v1623 = vsub.s32 %v1620, %v1622
      %v1624 = vrot.slane %v1616, %v1623
      %v1626 = vunpack.c.l.s4 1983009808
      %v1627 = vunpack.c.0.s8 %v1626
      %v1628 = vlaneseq
      %v1629 = vshrl.u32 %v1628, 7
      %v1630 = vsub.s32 %v1627, %v1629
      %v1631 = vrot.slane %v1617, %v1630
      %v1632 = vcombine.low %v1608, %v1624
      %v1633 = vcombine.high %v1608, %v1624
      %v1635 = vunpack.c.l.s4 1934713408
      %v1636 = vunpack.c.0.s8 %v1635
      %v1637 = vlaneseq
      %v1638 = vshrl.u32 %v1637, 7
      %v1639 = vsub.s32 %v1636, %v1638
      %v1640 = vrot.slane %v1632, %v1639
      %v1642 = vunpack.c.l.s4 1934713408
      %v1643 = vunpack.c.0.s8 %v1642
      %v1644 = vlaneseq
      %v1645 = vshrl.u32 %v1644, 7
      %v1646 = vsub.s32 %v1643, %v1645
      %v1647 = vrot.slane %v1633, %v1646
      %v1648 = vcombine.low %v1615, %v1631
      %v1649 = vcombine.high %v1615, %v1631
      %v1651 = vunpack.c.l.s4 1934713408
      %v1652 = vunpack.c.0.s8 %v1651
      %v1653 = vlaneseq
      %v1654 = vshrl.u32 %v1653, 7
      %v1655 = vsub.s32 %v1652, %v1654
      %v1656 = vrot.slane %v1648, %v1655
      %v1658 = vunpack.c.l.s4 1934713408
      %v1659 = vunpack.c.0.s8 %v1658
      %v1660 = vlaneseq
      %v1661 = vshrl.u32 %v1660, 7
      %v1662 = vsub.s32 %v1659, %v1661
      %v1663 = vrot.slane %v1649, %v1662
      %v1664 = vcombine.high %v1640, 0.0
      %v1665 = vcombine.high %v1647, 0.0
      %v1666 = vcombine.high %v1656, 0.0
      %v1667 = vcombine.high %v1663, 0.0
      %1669 = vrot.lane.b32.xlu0 %v1596, 16
      %v1670 = vpop.permute.xlu0 %1669
      %1673 = vrot.lane.b32.xlu0 %v1579, 32
      %v1674 = vpop.permute.xlu0 %1673
      %1677 = vrot.lane.b32.xlu0 %v1597, 48
      %v1678 = vpop.permute.xlu0 %1677
      %1681 = vrot.lane.b32.xlu0 %v1588, 64
      %v1682 = vpop.permute.xlu0 %1681
      %1685 = vrot.lane.b32.xlu0 %v1598, 80
      %v1686 = vpop.permute.xlu0 %1685
      %1689 = vrot.lane.b32.xlu0 %v1595, 96
      %v1690 = vpop.permute.xlu0 %1689
      %1693 = vrot.lane.b32.xlu0 %v1599, 112
      %v1694 = vpop.permute.xlu0 %1693
      %1697 = vrot.lane.b32.xlu0 %v1664, 16
      %v1698 = vpop.permute.xlu0 %1697
      %1701 = vrot.lane.b32.xlu0 %v1647, 32
      %v1702 = vpop.permute.xlu0 %1701
      %1705 = vrot.lane.b32.xlu0 %v1665, 48
      %v1706 = vpop.permute.xlu0 %1705
      %1709 = vrot.lane.b32.xlu0 %v1656, 64
      %v1710 = vpop.permute.xlu0 %1709
      %1713 = vrot.lane.b32.xlu0 %v1666, 80
      %v1714 = vpop.permute.xlu0 %1713
      %1717 = vrot.lane.b32.xlu0 %v1663, 96
      %v1718 = vpop.permute.xlu0 %1717
      %1721 = vrot.lane.b32.xlu0 %v1667, 112
      %v1722 = vpop.permute.xlu0 %1721
      %v1724 = vsel %vm497, %v1572, %v1670
      %v1725 = vsel %vm499, %v1724, %v1674
      %v1726 = vsel %vm501, %v1725, %v1678
      %v1727 = vsel %vm503, %v1726, %v1682
      %v1728 = vsel %vm505, %v1727, %v1686
      %v1729 = vsel %vm507, %v1728, %v1690
      %v1730 = vsel %vm509, %v1729, %v1694
      %v1731 = vsel %vm497, %v1640, %v1698
      %v1732 = vsel %vm499, %v1731, %v1702
      %v1733 = vsel %vm501, %v1732, %v1706
      %v1734 = vsel %vm503, %v1733, %v1710
      %v1735 = vsel %vm505, %v1734, %v1714
      %v1736 = vsel %vm507, %v1735, %v1718
      %v1737 = vsel %vm509, %v1736, %v1722
      %v1740 = vrot.slane %v1730, 4
      %v1741 = vrot.slane %v1737, 4
      %1744 = vst [vmem:[#allocation3 + $0x20] sm:$0xf0] %v1740
      %1745 = vst [vmem:[#allocation3 + $0x28] sm:$0xf0] %v1741
      %v1746 = vld [vmem:[#allocation2 + $0x2] sm:$0xff]
      %v1747 = vld [vmem:[#allocation2 + $0xa] sm:$0xff]
      %v1748 = vld [vmem:[#allocation2 + $0x1a] sm:$0xff]
      %v1749 = vld [vmem:[#allocation2 + $0x22] sm:$0xff]
      %v1750 = vld [vmem:[#allocation2 + $0x32] sm:$0xff]
      %v1751 = vld [vmem:[#allocation2 + $0x3a] sm:$0xff]
      %v1752 = vld [vmem:[#allocation2 + $0x4a] sm:$0xff]
      %v1753 = vld [vmem:[#allocation2 + $0x52] sm:$0xff]
      %v1754 = vcombine.low %v1746, %v1750
      %v1755 = vcombine.high %v1746, %v1750
      %v1757 = vunpack.c.l.s4 1983009808
      %v1758 = vunpack.c.0.s8 %v1757
      %v1759 = vlaneseq
      %v1760 = vshrl.u32 %v1759, 7
      %v1761 = vsub.s32 %v1758, %v1760
      %v1762 = vrot.slane %v1754, %v1761
      %v1764 = vunpack.c.l.s4 1983009808
      %v1765 = vunpack.c.0.s8 %v1764
      %v1766 = vlaneseq
      %v1767 = vshrl.u32 %v1766, 7
      %v1768 = vsub.s32 %v1765, %v1767
      %v1769 = vrot.slane %v1755, %v1768
      %v1770 = vcombine.low %v1748, %v1752
      %v1771 = vcombine.high %v1748, %v1752
      %v1773 = vunpack.c.l.s4 1983009808
      %v1774 = vunpack.c.0.s8 %v1773
      %v1775 = vlaneseq
      %v1776 = vshrl.u32 %v1775, 7
      %v1777 = vsub.s32 %v1774, %v1776
      %v1778 = vrot.slane %v1770, %v1777
      %v1780 = vunpack.c.l.s4 1983009808
      %v1781 = vunpack.c.0.s8 %v1780
      %v1782 = vlaneseq
      %v1783 = vshrl.u32 %v1782, 7
      %v1784 = vsub.s32 %v1781, %v1783
      %v1785 = vrot.slane %v1771, %v1784
      %v1786 = vcombine.low %v1762, %v1778
      %v1787 = vcombine.high %v1762, %v1778
      %v1789 = vunpack.c.l.s4 1934713408
      %v1790 = vunpack.c.0.s8 %v1789
      %v1791 = vlaneseq
      %v1792 = vshrl.u32 %v1791, 7
      %v1793 = vsub.s32 %v1790, %v1792
      %v1794 = vrot.slane %v1786, %v1793
      %v1796 = vunpack.c.l.s4 1934713408
      %v1797 = vunpack.c.0.s8 %v1796
      %v1798 = vlaneseq
      %v1799 = vshrl.u32 %v1798, 7
      %v1800 = vsub.s32 %v1797, %v1799
      %v1801 = vrot.slane %v1787, %v1800
      %v1802 = vcombine.low %v1769, %v1785
      %v1803 = vcombine.high %v1769, %v1785
      %v1805 = vunpack.c.l.s4 1934713408
      %v1806 = vunpack.c.0.s8 %v1805
      %v1807 = vlaneseq
      %v1808 = vshrl.u32 %v1807, 7
      %v1809 = vsub.s32 %v1806, %v1808
      %v1810 = vrot.slane %v1802, %v1809
      %v1812 = vunpack.c.l.s4 1934713408
      %v1813 = vunpack.c.0.s8 %v1812
      %v1814 = vlaneseq
      %v1815 = vshrl.u32 %v1814, 7
      %v1816 = vsub.s32 %v1813, %v1815
      %v1817 = vrot.slane %v1803, %v1816
      %v1818 = vcombine.high %v1794, 0.0
      %v1819 = vcombine.high %v1801, 0.0
      %v1820 = vcombine.high %v1810, 0.0
      %v1821 = vcombine.high %v1817, 0.0
      %v1822 = vcombine.low %v1747, %v1751
      %v1823 = vcombine.high %v1747, %v1751
      %v1825 = vunpack.c.l.s4 1983009808
      %v1826 = vunpack.c.0.s8 %v1825
      %v1827 = vlaneseq
      %v1828 = vshrl.u32 %v1827, 7
      %v1829 = vsub.s32 %v1826, %v1828
      %v1830 = vrot.slane %v1822, %v1829
      %v1832 = vunpack.c.l.s4 1983009808
      %v1833 = vunpack.c.0.s8 %v1832
      %v1834 = vlaneseq
      %v1835 = vshrl.u32 %v1834, 7
      %v1836 = vsub.s32 %v1833, %v1835
      %v1837 = vrot.slane %v1823, %v1836
      %v1838 = vcombine.low %v1749, %v1753
      %v1839 = vcombine.high %v1749, %v1753
      %v1841 = vunpack.c.l.s4 1983009808
      %v1842 = vunpack.c.0.s8 %v1841
      %v1843 = vlaneseq
      %v1844 = vshrl.u32 %v1843, 7
      %v1845 = vsub.s32 %v1842, %v1844
      %v1846 = vrot.slane %v1838, %v1845
      %v1848 = vunpack.c.l.s4 1983009808
      %v1849 = vunpack.c.0.s8 %v1848
      %v1850 = vlaneseq
      %v1851 = vshrl.u32 %v1850, 7
      %v1852 = vsub.s32 %v1849, %v1851
      %v1853 = vrot.slane %v1839, %v1852
      %v1854 = vcombine.low %v1830, %v1846
      %v1855 = vcombine.high %v1830, %v1846
      %v1857 = vunpack.c.l.s4 1934713408
      %v1858 = vunpack.c.0.s8 %v1857
      %v1859 = vlaneseq
      %v1860 = vshrl.u32 %v1859, 7
      %v1861 = vsub.s32 %v1858, %v1860
      %v1862 = vrot.slane %v1854, %v1861
      %v1864 = vunpack.c.l.s4 1934713408
      %v1865 = vunpack.c.0.s8 %v1864
      %v1866 = vlaneseq
      %v1867 = vshrl.u32 %v1866, 7
      %v1868 = vsub.s32 %v1865, %v1867
      %v1869 = vrot.slane %v1855, %v1868
      %v1870 = vcombine.low %v1837, %v1853
      %v1871 = vcombine.high %v1837, %v1853
      %v1873 = vunpack.c.l.s4 1934713408
      %v1874 = vunpack.c.0.s8 %v1873
      %v1875 = vlaneseq
      %v1876 = vshrl.u32 %v1875, 7
      %v1877 = vsub.s32 %v1874, %v1876
      %v1878 = vrot.slane %v1870, %v1877
      %v1880 = vunpack.c.l.s4 1934713408
      %v1881 = vunpack.c.0.s8 %v1880
      %v1882 = vlaneseq
      %v1883 = vshrl.u32 %v1882, 7
      %v1884 = vsub.s32 %v1881, %v1883
      %v1885 = vrot.slane %v1871, %v1884
      %v1886 = vcombine.high %v1862, 0.0
      %v1887 = vcombine.high %v1869, 0.0
      %v1888 = vcombine.high %v1878, 0.0
      %v1889 = vcombine.high %v1885, 0.0
      %1891 = vrot.lane.b32.xlu0 %v1818, 16
      %v1892 = vpop.permute.xlu0 %1891
      %1895 = vrot.lane.b32.xlu0 %v1801, 32
      %v1896 = vpop.permute.xlu0 %1895
      %1899 = vrot.lane.b32.xlu0 %v1819, 48
      %v1900 = vpop.permute.xlu0 %1899
      %1903 = vrot.lane.b32.xlu0 %v1810, 64
      %v1904 = vpop.permute.xlu0 %1903
      %1907 = vrot.lane.b32.xlu0 %v1820, 80
      %v1908 = vpop.permute.xlu0 %1907
      %1911 = vrot.lane.b32.xlu0 %v1817, 96
      %v1912 = vpop.permute.xlu0 %1911
      %1915 = vrot.lane.b32.xlu0 %v1821, 112
      %v1916 = vpop.permute.xlu0 %1915
      %1919 = vrot.lane.b32.xlu0 %v1886, 16
      %v1920 = vpop.permute.xlu0 %1919
      %1923 = vrot.lane.b32.xlu0 %v1869, 32
      %v1924 = vpop.permute.xlu0 %1923
      %1927 = vrot.lane.b32.xlu0 %v1887, 48
      %v1928 = vpop.permute.xlu0 %1927
      %1931 = vrot.lane.b32.xlu0 %v1878, 64
      %v1932 = vpop.permute.xlu0 %1931
      %1935 = vrot.lane.b32.xlu0 %v1888, 80
      %v1936 = vpop.permute.xlu0 %1935
      %1939 = vrot.lane.b32.xlu0 %v1885, 96
      %v1940 = vpop.permute.xlu0 %1939
      %1943 = vrot.lane.b32.xlu0 %v1889, 112
      %v1944 = vpop.permute.xlu0 %1943
      %v1946 = vsel %vm497, %v1794, %v1892
      %v1947 = vsel %vm499, %v1946, %v1896
      %v1948 = vsel %vm501, %v1947, %v1900
      %v1949 = vsel %vm503, %v1948, %v1904
      %v1950 = vsel %vm505, %v1949, %v1908
      %v1951 = vsel %vm507, %v1950, %v1912
      %v1952 = vsel %vm509, %v1951, %v1916
      %v1953 = vsel %vm497, %v1862, %v1920
      %v1954 = vsel %vm499, %v1953, %v1924
      %v1955 = vsel %vm501, %v1954, %v1928
      %v1956 = vsel %vm503, %v1955, %v1932
      %v1957 = vsel %vm505, %v1956, %v1936
      %v1958 = vsel %vm507, %v1957, %v1940
      %v1959 = vsel %vm509, %v1958, %v1944
      %1960 = vst [vmem:[#allocation3 + $0x30] sm:$0xf] %v1952
      %1961 = vst [vmem:[#allocation3 + $0x38] sm:$0xf] %v1959
      %v1962 = vld [vmem:[#allocation2 + $0x2] sm:$0xff]
      %v1963 = vld [vmem:[#allocation2 + $0xa] sm:$0xff]
      %v1964 = vld [vmem:[#allocation2 + $0x1a] sm:$0xff]
      %v1965 = vld [vmem:[#allocation2 + $0x22] sm:$0xff]
      %v1966 = vld [vmem:[#allocation2 + $0x32] sm:$0xff]
      %v1967 = vld [vmem:[#allocation2 + $0x3a] sm:$0xff]
      %v1968 = vld [vmem:[#allocation2 + $0x4a] sm:$0xff]
      %v1969 = vld [vmem:[#allocation2 + $0x52] sm:$0xff]
      %1978 = vrot.lane.b32.xlu0 %v1962, 127
      %v1979 = vpop.permute.xlu0 %1978
      %1980 = vrot.lane.b32.xlu0 %v1963, 127
      %v1981 = vpop.permute.xlu0 %1980
      %1982 = vrot.lane.b32.xlu0 %v1964, 127
      %v1983 = vpop.permute.xlu0 %1982
      %1984 = vrot.lane.b32.xlu0 %v1965, 127
      %v1985 = vpop.permute.xlu0 %1984
      %1986 = vrot.lane.b32.xlu0 %v1966, 127
      %v1987 = vpop.permute.xlu0 %1986
      %1988 = vrot.lane.b32.xlu0 %v1967, 127
      %v1989 = vpop.permute.xlu0 %1988
      %1990 = vrot.lane.b32.xlu0 %v1968, 127
      %v1991 = vpop.permute.xlu0 %1990
      %1992 = vrot.lane.b32.xlu0 %v1969, 127
      %v1993 = vpop.permute.xlu0 %1992
      %v2002 = vcombine.low %v1979, %v1987
      %v2003 = vcombine.high %v1979, %v1987
      %v2005 = vunpack.c.l.s4 1983009808
      %v2006 = vunpack.c.0.s8 %v2005
      %v2007 = vlaneseq
      %v2008 = vshrl.u32 %v2007, 7
      %v2009 = vsub.s32 %v2006, %v2008
      %v2010 = vrot.slane %v2002, %v2009
      %v2012 = vunpack.c.l.s4 1983009808
      %v2013 = vunpack.c.0.s8 %v2012
      %v2014 = vlaneseq
      %v2015 = vshrl.u32 %v2014, 7
      %v2016 = vsub.s32 %v2013, %v2015
      %v2017 = vrot.slane %v2003, %v2016
      %v2018 = vcombine.low %v1983, %v1991
      %v2019 = vcombine.high %v1983, %v1991
      %v2021 = vunpack.c.l.s4 1983009808
      %v2022 = vunpack.c.0.s8 %v2021
      %v2023 = vlaneseq
      %v2024 = vshrl.u32 %v2023, 7
      %v2025 = vsub.s32 %v2022, %v2024
      %v2026 = vrot.slane %v2018, %v2025
      %v2028 = vunpack.c.l.s4 1983009808
      %v2029 = vunpack.c.0.s8 %v2028
      %v2030 = vlaneseq
      %v2031 = vshrl.u32 %v2030, 7
      %v2032 = vsub.s32 %v2029, %v2031
      %v2033 = vrot.slane %v2019, %v2032
      %v2034 = vcombine.low %v2010, %v2026
      %v2035 = vcombine.high %v2010, %v2026
      %v2037 = vunpack.c.l.s4 1934713408
      %v2038 = vunpack.c.0.s8 %v2037
      %v2039 = vlaneseq
      %v2040 = vshrl.u32 %v2039, 7
      %v2041 = vsub.s32 %v2038, %v2040
      %v2042 = vrot.slane %v2034, %v2041
      %v2044 = vunpack.c.l.s4 1934713408
      %v2045 = vunpack.c.0.s8 %v2044
      %v2046 = vlaneseq
      %v2047 = vshrl.u32 %v2046, 7
      %v2048 = vsub.s32 %v2045, %v2047
      %v2049 = vrot.slane %v2035, %v2048
      %v2050 = vcombine.low %v2017, %v2033
      %v2051 = vcombine.high %v2017, %v2033
      %v2053 = vunpack.c.l.s4 1934713408
      %v2054 = vunpack.c.0.s8 %v2053
      %v2055 = vlaneseq
      %v2056 = vshrl.u32 %v2055, 7
      %v2057 = vsub.s32 %v2054, %v2056
      %v2058 = vrot.slane %v2050, %v2057
      %v2060 = vunpack.c.l.s4 1934713408
      %v2061 = vunpack.c.0.s8 %v2060
      %v2062 = vlaneseq
      %v2063 = vshrl.u32 %v2062, 7
      %v2064 = vsub.s32 %v2061, %v2063
      %v2065 = vrot.slane %v2051, %v2064
      %v2066 = vcombine.high %v2042, 0.0
      %v2067 = vcombine.high %v2049, 0.0
      %v2068 = vcombine.high %v2058, 0.0
      %v2069 = vcombine.high %v2065, 0.0
      %v2070 = vcombine.low %v1981, %v1989
      %v2071 = vcombine.high %v1981, %v1989
      %v2073 = vunpack.c.l.s4 1983009808
      %v2074 = vunpack.c.0.s8 %v2073
      %v2075 = vlaneseq
      %v2076 = vshrl.u32 %v2075, 7
      %v2077 = vsub.s32 %v2074, %v2076
      %v2078 = vrot.slane %v2070, %v2077
      %v2080 = vunpack.c.l.s4 1983009808
      %v2081 = vunpack.c.0.s8 %v2080
      %v2082 = vlaneseq
      %v2083 = vshrl.u32 %v2082, 7
      %v2084 = vsub.s32 %v2081, %v2083
      %v2085 = vrot.slane %v2071, %v2084
      %v2086 = vcombine.low %v1985, %v1993
      %v2087 = vcombine.high %v1985, %v1993
      %v2089 = vunpack.c.l.s4 1983009808
      %v2090 = vunpack.c.0.s8 %v2089
      %v2091 = vlaneseq
      %v2092 = vshrl.u32 %v2091, 7
      %v2093 = vsub.s32 %v2090, %v2092
      %v2094 = vrot.slane %v2086, %v2093
      %v2096 = vunpack.c.l.s4 1983009808
      %v2097 = vunpack.c.0.s8 %v2096
      %v2098 = vlaneseq
      %v2099 = vshrl.u32 %v2098, 7
      %v2100 = vsub.s32 %v2097, %v2099
      %v2101 = vrot.slane %v2087, %v2100
      %v2102 = vcombine.low %v2078, %v2094
      %v2103 = vcombine.high %v2078, %v2094
      %v2105 = vunpack.c.l.s4 1934713408
      %v2106 = vunpack.c.0.s8 %v2105
      %v2107 = vlaneseq
      %v2108 = vshrl.u32 %v2107, 7
      %v2109 = vsub.s32 %v2106, %v2108
      %v2110 = vrot.slane %v2102, %v2109
      %v2112 = vunpack.c.l.s4 1934713408
      %v2113 = vunpack.c.0.s8 %v2112
      %v2114 = vlaneseq
      %v2115 = vshrl.u32 %v2114, 7
      %v2116 = vsub.s32 %v2113, %v2115
      %v2117 = vrot.slane %v2103, %v2116
      %v2118 = vcombine.low %v2085, %v2101
      %v2119 = vcombine.high %v2085, %v2101
      %v2121 = vunpack.c.l.s4 1934713408
      %v2122 = vunpack.c.0.s8 %v2121
      %v2123 = vlaneseq
      %v2124 = vshrl.u32 %v2123, 7
      %v2125 = vsub.s32 %v2122, %v2124
      %v2126 = vrot.slane %v2118, %v2125
      %v2128 = vunpack.c.l.s4 1934713408
      %v2129 = vunpack.c.0.s8 %v2128
      %v2130 = vlaneseq
      %v2131 = vshrl.u32 %v2130, 7
      %v2132 = vsub.s32 %v2129, %v2131
      %v2133 = vrot.slane %v2119, %v2132
      %v2134 = vcombine.high %v2110, 0.0
      %v2135 = vcombine.high %v2117, 0.0
      %v2136 = vcombine.high %v2126, 0.0
      %v2137 = vcombine.high %v2133, 0.0
      %2139 = vrot.lane.b32.xlu0 %v2066, 16
      %v2140 = vpop.permute.xlu0 %2139
      %2143 = vrot.lane.b32.xlu0 %v2049, 32
      %v2144 = vpop.permute.xlu0 %2143
      %2147 = vrot.lane.b32.xlu0 %v2067, 48
      %v2148 = vpop.permute.xlu0 %2147
      %2151 = vrot.lane.b32.xlu0 %v2058, 64
      %v2152 = vpop.permute.xlu0 %2151
      %2155 = vrot.lane.b32.xlu0 %v2068, 80
      %v2156 = vpop.permute.xlu0 %2155
      %2159 = vrot.lane.b32.xlu0 %v2065, 96
      %v2160 = vpop.permute.xlu0 %2159
      %2163 = vrot.lane.b32.xlu0 %v2069, 112
      %v2164 = vpop.permute.xlu0 %2163
      %2167 = vrot.lane.b32.xlu0 %v2134, 16
      %v2168 = vpop.permute.xlu0 %2167
      %2171 = vrot.lane.b32.xlu0 %v2117, 32
      %v2172 = vpop.permute.xlu0 %2171
      %2175 = vrot.lane.b32.xlu0 %v2135, 48
      %v2176 = vpop.permute.xlu0 %2175
      %2179 = vrot.lane.b32.xlu0 %v2126, 64
      %v2180 = vpop.permute.xlu0 %2179
      %2183 = vrot.lane.b32.xlu0 %v2136, 80
      %v2184 = vpop.permute.xlu0 %2183
      %2187 = vrot.lane.b32.xlu0 %v2133, 96
      %v2188 = vpop.permute.xlu0 %2187
      %2191 = vrot.lane.b32.xlu0 %v2137, 112
      %v2192 = vpop.permute.xlu0 %2191
      %v2194 = vsel %vm497, %v2042, %v2140
      %v2195 = vsel %vm499, %v2194, %v2144
      %v2196 = vsel %vm501, %v2195, %v2148
      %v2197 = vsel %vm503, %v2196, %v2152
      %v2198 = vsel %vm505, %v2197, %v2156
      %v2199 = vsel %vm507, %v2198, %v2160
      %v2200 = vsel %vm509, %v2199, %v2164
      %v2201 = vsel %vm497, %v2110, %v2168
      %v2202 = vsel %vm499, %v2201, %v2172
      %v2203 = vsel %vm501, %v2202, %v2176
      %v2204 = vsel %vm503, %v2203, %v2180
      %v2205 = vsel %vm505, %v2204, %v2184
      %v2206 = vsel %vm507, %v2205, %v2188
      %v2207 = vsel %vm509, %v2206, %v2192
      %v2210 = vrot.slane %v2200, 4
      %v2211 = vrot.slane %v2207, 4
      %2214 = vst [vmem:[#allocation3 + $0x30] sm:$0xf0] %v2210
      %2215 = vst [vmem:[#allocation3 + $0x38] sm:$0xf0] %v2211
      %v2216 = vld [vmem:[#allocation2 + $0x2] sm:$0xff]
      %v2217 = vld [vmem:[#allocation2 + $0xa] sm:$0xff]
      %v2218 = vld [vmem:[#allocation2 + $0x1a] sm:$0xff]
      %v2219 = vld [vmem:[#allocation2 + $0x22] sm:$0xff]
      %v2220 = vld [vmem:[#allocation2 + $0x32] sm:$0xff]
      %v2221 = vld [vmem:[#allocation2 + $0x3a] sm:$0xff]
      %v2222 = vld [vmem:[#allocation2 + $0x4a] sm:$0xff]
      %v2223 = vld [vmem:[#allocation2 + $0x52] sm:$0xff]
      %2232 = vrot.lane.b32.xlu0 %v2216, 126
      %v2233 = vpop.permute.xlu0 %2232
      %2234 = vrot.lane.b32.xlu0 %v2217, 126
      %v2235 = vpop.permute.xlu0 %2234
      %2236 = vrot.lane.b32.xlu0 %v2218, 126
      %v2237 = vpop.permute.xlu0 %2236
      %2238 = vrot.lane.b32.xlu0 %v2219, 126
      %v2239 = vpop.permute.xlu0 %2238
      %2240 = vrot.lane.b32.xlu0 %v2220, 126
      %v2241 = vpop.permute.xlu0 %2240
      %2242 = vrot.lane.b32.xlu0 %v2221, 126
      %v2243 = vpop.permute.xlu0 %2242
      %2244 = vrot.lane.b32.xlu0 %v2222, 126
      %v2245 = vpop.permute.xlu0 %2244
      %2246 = vrot.lane.b32.xlu0 %v2223, 126
      %v2247 = vpop.permute.xlu0 %2246
      %v2256 = vcombine.low %v2233, %v2241
      %v2257 = vcombine.high %v2233, %v2241
      %v2259 = vunpack.c.l.s4 1983009808
      %v2260 = vunpack.c.0.s8 %v2259
      %v2261 = vlaneseq
      %v2262 = vshrl.u32 %v2261, 7
      %v2263 = vsub.s32 %v2260, %v2262
      %v2264 = vrot.slane %v2256, %v2263
      %v2266 = vunpack.c.l.s4 1983009808
      %v2267 = vunpack.c.0.s8 %v2266
      %v2268 = vlaneseq
      %v2269 = vshrl.u32 %v2268, 7
      %v2270 = vsub.s32 %v2267, %v2269
      %v2271 = vrot.slane %v2257, %v2270
      %v2272 = vcombine.low %v2237, %v2245
      %v2273 = vcombine.high %v2237, %v2245
      %v2275 = vunpack.c.l.s4 1983009808
      %v2276 = vunpack.c.0.s8 %v2275
      %v2277 = vlaneseq
      %v2278 = vshrl.u32 %v2277, 7
      %v2279 = vsub.s32 %v2276, %v2278
      %v2280 = vrot.slane %v2272, %v2279
      %v2282 = vunpack.c.l.s4 1983009808
      %v2283 = vunpack.c.0.s8 %v2282
      %v2284 = vlaneseq
      %v2285 = vshrl.u32 %v2284, 7
      %v2286 = vsub.s32 %v2283, %v2285
      %v2287 = vrot.slane %v2273, %v2286
      %v2288 = vcombine.low %v2264, %v2280
      %v2289 = vcombine.high %v2264, %v2280
      %v2291 = vunpack.c.l.s4 1934713408
      %v2292 = vunpack.c.0.s8 %v2291
      %v2293 = vlaneseq
      %v2294 = vshrl.u32 %v2293, 7
      %v2295 = vsub.s32 %v2292, %v2294
      %v2296 = vrot.slane %v2288, %v2295
      %v2298 = vunpack.c.l.s4 1934713408
      %v2299 = vunpack.c.0.s8 %v2298
      %v2300 = vlaneseq
      %v2301 = vshrl.u32 %v2300, 7
      %v2302 = vsub.s32 %v2299, %v2301
      %v2303 = vrot.slane %v2289, %v2302
      %v2304 = vcombine.low %v2271, %v2287
      %v2305 = vcombine.high %v2271, %v2287
      %v2307 = vunpack.c.l.s4 1934713408
      %v2308 = vunpack.c.0.s8 %v2307
      %v2309 = vlaneseq
      %v2310 = vshrl.u32 %v2309, 7
      %v2311 = vsub.s32 %v2308, %v2310
      %v2312 = vrot.slane %v2304, %v2311
      %v2314 = vunpack.c.l.s4 1934713408
      %v2315 = vunpack.c.0.s8 %v2314
      %v2316 = vlaneseq
      %v2317 = vshrl.u32 %v2316, 7
      %v2318 = vsub.s32 %v2315, %v2317
      %v2319 = vrot.slane %v2305, %v2318
      %v2320 = vcombine.high %v2296, 0.0
      %v2321 = vcombine.high %v2303, 0.0
      %v2322 = vcombine.high %v2312, 0.0
      %v2323 = vcombine.high %v2319, 0.0
      %v2324 = vcombine.low %v2235, %v2243
      %v2325 = vcombine.high %v2235, %v2243
      %v2327 = vunpack.c.l.s4 1983009808
      %v2328 = vunpack.c.0.s8 %v2327
      %v2329 = vlaneseq
      %v2330 = vshrl.u32 %v2329, 7
      %v2331 = vsub.s32 %v2328, %v2330
      %v2332 = vrot.slane %v2324, %v2331
      %v2334 = vunpack.c.l.s4 1983009808
      %v2335 = vunpack.c.0.s8 %v2334
      %v2336 = vlaneseq
      %v2337 = vshrl.u32 %v2336, 7
      %v2338 = vsub.s32 %v2335, %v2337
      %v2339 = vrot.slane %v2325, %v2338
      %v2340 = vcombine.low %v2239, %v2247
      %v2341 = vcombine.high %v2239, %v2247
      %v2343 = vunpack.c.l.s4 1983009808
      %v2344 = vunpack.c.0.s8 %v2343
      %v2345 = vlaneseq
      %v2346 = vshrl.u32 %v2345, 7
      %v2347 = vsub.s32 %v2344, %v2346
      %v2348 = vrot.slane %v2340, %v2347
      %v2350 = vunpack.c.l.s4 1983009808
      %v2351 = vunpack.c.0.s8 %v2350
      %v2352 = vlaneseq
      %v2353 = vshrl.u32 %v2352, 7
      %v2354 = vsub.s32 %v2351, %v2353
      %v2355 = vrot.slane %v2341, %v2354
      %v2356 = vcombine.low %v2332, %v2348
      %v2357 = vcombine.high %v2332, %v2348
      %v2359 = vunpack.c.l.s4 1934713408
      %v2360 = vunpack.c.0.s8 %v2359
      %v2361 = vlaneseq
      %v2362 = vshrl.u32 %v2361, 7
      %v2363 = vsub.s32 %v2360, %v2362
      %v2364 = vrot.slane %v2356, %v2363
      %v2366 = vunpack.c.l.s4 1934713408
      %v2367 = vunpack.c.0.s8 %v2366
      %v2368 = vlaneseq
      %v2369 = vshrl.u32 %v2368, 7
      %v2370 = vsub.s32 %v2367, %v2369
      %v2371 = vrot.slane %v2357, %v2370
      %v2372 = vcombine.low %v2339, %v2355
      %v2373 = vcombine.high %v2339, %v2355
      %v2375 = vunpack.c.l.s4 1934713408
      %v2376 = vunpack.c.0.s8 %v2375
      %v2377 = vlaneseq
      %v2378 = vshrl.u32 %v2377, 7
      %v2379 = vsub.s32 %v2376, %v2378
      %v2380 = vrot.slane %v2372, %v2379
      %v2382 = vunpack.c.l.s4 1934713408
      %v2383 = vunpack.c.0.s8 %v2382
      %v2384 = vlaneseq
      %v2385 = vshrl.u32 %v2384, 7
      %v2386 = vsub.s32 %v2383, %v2385
      %v2387 = vrot.slane %v2373, %v2386
      %v2388 = vcombine.high %v2364, 0.0
      %v2389 = vcombine.high %v2371, 0.0
      %v2390 = vcombine.high %v2380, 0.0
      %v2391 = vcombine.high %v2387, 0.0
      %2393 = vrot.lane.b32.xlu0 %v2320, 16
      %v2394 = vpop.permute.xlu0 %2393
      %2397 = vrot.lane.b32.xlu0 %v2303, 32
      %v2398 = vpop.permute.xlu0 %2397
      %2401 = vrot.lane.b32.xlu0 %v2321, 48
      %v2402 = vpop.permute.xlu0 %2401
      %2405 = vrot.lane.b32.xlu0 %v2312, 64
      %v2406 = vpop.permute.xlu0 %2405
      %2409 = vrot.lane.b32.xlu0 %v2322, 80
      %v2410 = vpop.permute.xlu0 %2409
      %2413 = vrot.lane.b32.xlu0 %v2319, 96
      %v2414 = vpop.permute.xlu0 %2413
      %2417 = vrot.lane.b32.xlu0 %v2323, 112
      %v2418 = vpop.permute.xlu0 %2417
      %2421 = vrot.lane.b32.xlu0 %v2388, 16
      %v2422 = vpop.permute.xlu0 %2421
      %2425 = vrot.lane.b32.xlu0 %v2371, 32
      %v2426 = vpop.permute.xlu0 %2425
      %2429 = vrot.lane.b32.xlu0 %v2389, 48
      %v2430 = vpop.permute.xlu0 %2429
      %2433 = vrot.lane.b32.xlu0 %v2380, 64
      %v2434 = vpop.permute.xlu0 %2433
      %2437 = vrot.lane.b32.xlu0 %v2390, 80
      %v2438 = vpop.permute.xlu0 %2437
      %2441 = vrot.lane.b32.xlu0 %v2387, 96
      %v2442 = vpop.permute.xlu0 %2441
      %2445 = vrot.lane.b32.xlu0 %v2391, 112
      %v2446 = vpop.permute.xlu0 %2445
      %v2448 = vsel %vm497, %v2296, %v2394
      %v2449 = vsel %vm499, %v2448, %v2398
      %v2450 = vsel %vm501, %v2449, %v2402
      %v2451 = vsel %vm503, %v2450, %v2406
      %v2452 = vsel %vm505, %v2451, %v2410
      %v2453 = vsel %vm507, %v2452, %v2414
      %v2454 = vsel %vm509, %v2453, %v2418
      %v2455 = vsel %vm497, %v2364, %v2422
      %v2456 = vsel %vm499, %v2455, %v2426
      %v2457 = vsel %vm501, %v2456, %v2430
      %v2458 = vsel %vm503, %v2457, %v2434
      %v2459 = vsel %vm505, %v2458, %v2438
      %v2460 = vsel %vm507, %v2459, %v2442
      %v2461 = vsel %vm509, %v2460, %v2446
      %2462 = vst [vmem:[#allocation3 + $0x40] sm:$0xf] %v2454
      %2463 = vst [vmem:[#allocation3 + $0x48] sm:$0xf] %v2461
      %v2464 = vld [vmem:[%s1] sm:$0xf]
      %v2465 = vld [vmem:[#allocation3] sm:$0xff]
      %v2466 = vld [vmem:[#allocation3 + $0x8] sm:$0xff]
      %v2467 = vld [vmem:[#allocation3 + $0x10] sm:$0xff]
      %v2468 = vld [vmem:[#allocation3 + $0x18] sm:$0xff]
      %v2469 = vld [vmem:[#allocation3 + $0x20] sm:$0xff]
      %v2470 = vld [vmem:[#allocation3 + $0x28] sm:$0xff]
      %v2471 = vld [vmem:[#allocation3 + $0x30] sm:$0xff]
      %v2472 = vld [vmem:[#allocation3 + $0x38] sm:$0xff]
      %v2473 = vld [vmem:[#allocation3 + $0x40] sm:$0xf]
      %v2474 = vld [vmem:[#allocation3 + $0x48] sm:$0xf]
      %v2475 = vpack.c.bf16 %v2467, %v2465
      %v2476 = vpack.c.bf16 %v2468, %v2466
      %v2477 = vpack.c.bf16 %v2471, %v2469
      %v2478 = vpack.c.bf16 %v2472, %v2470
      %v2479 = vpack.c.bf16 %v2473, %v2473
      %v2480 = vpack.c.bf16 %v2474, %v2474
      %v2481 = vld [vmem:[%s2] sm:$0xff]
      %2483 = vset.pattern.permute.xlu0 0
      %2484 = vperm.xlu0 %2483, %v2481
      %v2485 = vpop.permute.xlu0 %2484
      %vm2487 = vcmask 293888
      %v2489 = vsel %vm2487, %v2464, 0
      %vm2491 = vcmask 1041408
      %v2493 = vsel %vm2491, %v2479, 0
      %v2496 = vsel %vm2491, %v2480, 0
      %2498 = vmatprep.subr.bf16.mxu0 %v2476
      %2499 = vmatpush1.bf16.msra.mxu0 %v2475
      %2500 = vmatprep.subr.bf16.mxu0 %v2478
      %2501 = vmatpush1.bf16.msra.mxu0 %v2477
      %2502 = vmatprep.subr.bf16.mxu0 %v2496
      %2503 = vmatpush1.bf16.msra.mxu0 %v2493
      %2504 = vmatprep.subr.bf16.mxu0 0
      %2505 = vmatpush1.bf16.msra.mxu0 0
      %2506 = vmatprep.subr.bf16.mxu0 0
      %2507 = vmatpush1.bf16.msra.mxu0 0
      %2508 = vmatprep.subr.bf16.mxu0 0
      %2509 = vmatpush1.bf16.msra.mxu0 0
      %2510 = vmatprep.subr.bf16.mxu0 0
      %2511 = vmatpush1.bf16.msra.mxu0 0
      %2512 = vmatprep.subr.bf16.mxu0 0
      %2513 = vmatpush1.bf16.msra.mxu0 0
      %2514 = vmatprep.subr.bf16.mxu0 0
      %2515 = vmatpush1.bf16.msra.mxu0 0
      %2516 = vmatprep.subr.bf16.mxu0 0
      %2517 = vmatpush1.bf16.msra.mxu0 0
      %2518 = vmatprep.subr.bf16.mxu0 0
      %2519 = vmatpush1.bf16.msra.mxu0 0
      %2520 = vmatprep.subr.bf16.mxu0 0
      %2521 = vmatpush1.bf16.msra.mxu0 0
      %2522 = vmatprep.subr.bf16.mxu0 0
      %2523 = vmatpush1.bf16.msra.mxu0 0
      %2524 = vmatprep.subr.bf16.mxu0 0
      %2525 = vmatpush1.bf16.msra.mxu0 0
      %2526 = vmatprep.subr.bf16.mxu0 0
      %2527 = vmatpush1.bf16.msra.mxu0 0
      %2528 = vmatprep.subr.bf16.mxu0 0
      %2529 = vmatpush1.bf16.msra.mxu0 0
      %2530 = vmatprep.mubr.bf16.mxu0 0
      %2531 = vmatmul.mubr.bf16.gmra.mrb[0].mxu0 %v2489
      %v2532 = vpop.f32.mrb[0].mxu0
      %v2533 = vadd.f32 %v2485, %v2532
      %v2534 = vpop.f32.mrb[0].mxu0
      %v2535 = vadd.f32 %v2485, %v2534
      %v2536 = vpop.f32.mrb[0].mxu0
      %v2537 = vpop.f32.mrb[0].mxu0
      %2538 = vdwg.mxu0
      %v2539 = vmax.f32 %v2533, 0.0
      %v2540 = vmax.f32 %v2535, 0.0
      %2541 = vst.msk [vmem:[#allocation4] sm:$0xff] %vm226, 0.0
      %2542 = vst.msk [vmem:[#allocation4 + $0x8] sm:$0xff] %vm226, 0.0
      %2543 = vst.msk [vmem:[#allocation4 + $0x10] sm:$0x3] %vm229, 0.0
      %2544 = vst.msk [vmem:[#allocation4 + $0x18] sm:$0xff] %vm226, 0.0
      %2545 = vst.msk [vmem:[#allocation4 + $0x20] sm:$0xff] %vm226, 0.0
      %2546 = vst.msk [vmem:[#allocation4 + $0x28] sm:$0x3] %vm229, 0.0
      %2547 = vst.msk [vmem:[#allocation4 + $0x30] sm:$0xff] %vm226, 0.0
      %2548 = vst.msk [vmem:[#allocation4 + $0x38] sm:$0xff] %vm226, 0.0
      %2549 = vst.msk [vmem:[#allocation4 + $0x40] sm:$0x3] %vm229, 0.0
      %2550 = vst.msk [vmem:[#allocation4 + $0x48] sm:$0xff] %vm226, 0.0
      %2551 = vst.msk [vmem:[#allocation4 + $0x50] sm:$0xff] %vm226, 0.0
      %2552 = vst.msk [vmem:[#allocation4 + $0x58] sm:$0x3] %vm229, 0.0
      %2553 = vst.msk [vmem:[#allocation4 + $0x60] sm:$0xff] %vm226, 0.0
      %2554 = vst.msk [vmem:[#allocation4 + $0x68] sm:$0xff] %vm226, 0.0
      %2555 = vst.msk [vmem:[#allocation4 + $0x70] sm:$0x3] %vm229, 0.0
      %2556 = vst.msk [vmem:[#allocation4 + $0x78] sm:$0xff] %vm226, 0.0
      %2557 = vst.msk [vmem:[#allocation4 + $0x80] sm:$0xff] %vm226, 0.0
      %2558 = vst.msk [vmem:[#allocation4 + $0x88] sm:$0x3] %vm229, 0.0
      %2559 = vst.msk [vmem:[#allocation4 + $0x90] sm:$0xff] %vm226, 0.0
      %2560 = vst.msk [vmem:[#allocation4 + $0x98] sm:$0xff] %vm226, 0.0
      %2561 = vst.msk [vmem:[#allocation4 + $0xa0] sm:$0x3] %vm229, 0.0
      %2562 = vst.msk [vmem:[#allocation4 + $0xa8] sm:$0xff] %vm226, 0.0
      %2563 = vst.msk [vmem:[#allocation4 + $0xb0] sm:$0xff] %vm226, 0.0
      %2564 = vst.msk [vmem:[#allocation4 + $0xb8] sm:$0x3] %vm229, 0.0
      %2566 = vrot.lane.b32.xlu0 %v2539, 112
      %v2567 = vpop.permute.xlu0 %2566
      %2569 = vrot.lane.b32.xlu0 %v2539, 96
      %v2570 = vpop.permute.xlu0 %2569
      %2572 = vrot.lane.b32.xlu0 %v2539, 80
      %v2573 = vpop.permute.xlu0 %2572
      %2575 = vrot.lane.b32.xlu0 %v2539, 64
      %v2576 = vpop.permute.xlu0 %2575
      %2578 = vrot.lane.b32.xlu0 %v2539, 48
      %v2579 = vpop.permute.xlu0 %2578
      %2581 = vrot.lane.b32.xlu0 %v2539, 32
      %v2582 = vpop.permute.xlu0 %2581
      %2584 = vrot.lane.b32.xlu0 %v2539, 16
      %v2585 = vpop.permute.xlu0 %2584
      %2588 = vrot.lane.b32.xlu0 %v2540, 112
      %v2589 = vpop.permute.xlu0 %2588
      %2591 = vrot.lane.b32.xlu0 %v2540, 96
      %v2592 = vpop.permute.xlu0 %2591
      %2594 = vrot.lane.b32.xlu0 %v2540, 80
      %v2595 = vpop.permute.xlu0 %2594
      %2597 = vrot.lane.b32.xlu0 %v2540, 64
      %v2598 = vpop.permute.xlu0 %2597
      %2600 = vrot.lane.b32.xlu0 %v2540, 48
      %v2601 = vpop.permute.xlu0 %2600
      %2603 = vrot.lane.b32.xlu0 %v2540, 32
      %v2604 = vpop.permute.xlu0 %2603
      %2606 = vrot.lane.b32.xlu0 %v2540, 16
      %v2607 = vpop.permute.xlu0 %2606
      %v2609 = vcombine.low %v2539, %v2570
      %v2610 = vcombine.high %v2539, %v2570
      %v2612 = vunpack.c.l.s4 1983009808
      %v2613 = vunpack.c.0.s8 %v2612
      %v2614 = vlaneseq
      %v2615 = vshrl.u32 %v2614, 7
      %v2616 = vsub.s32 %v2613, %v2615
      %v2617 = vrot.slane %v2609, %v2616
      %v2619 = vunpack.c.l.s4 1983009808
      %v2620 = vunpack.c.0.s8 %v2619
      %v2621 = vlaneseq
      %v2622 = vshrl.u32 %v2621, 7
      %v2623 = vsub.s32 %v2620, %v2622
      %v2624 = vrot.slane %v2610, %v2623
      %v2625 = vcombine.low %v2567, %v2573
      %v2626 = vcombine.high %v2567, %v2573
      %v2628 = vunpack.c.l.s4 1983009808
      %v2629 = vunpack.c.0.s8 %v2628
      %v2630 = vlaneseq
      %v2631 = vshrl.u32 %v2630, 7
      %v2632 = vsub.s32 %v2629, %v2631
      %v2633 = vrot.slane %v2625, %v2632
      %v2635 = vunpack.c.l.s4 1983009808
      %v2636 = vunpack.c.0.s8 %v2635
      %v2637 = vlaneseq
      %v2638 = vshrl.u32 %v2637, 7
      %v2639 = vsub.s32 %v2636, %v2638
      %v2640 = vrot.slane %v2626, %v2639
      %v2641 = vcombine.low %v2576, %v2582
      %v2642 = vcombine.high %v2576, %v2582
      %v2644 = vunpack.c.l.s4 1983009808
      %v2645 = vunpack.c.0.s8 %v2644
      %v2646 = vlaneseq
      %v2647 = vshrl.u32 %v2646, 7
      %v2648 = vsub.s32 %v2645, %v2647
      %v2649 = vrot.slane %v2641, %v2648
      %v2651 = vunpack.c.l.s4 1983009808
      %v2652 = vunpack.c.0.s8 %v2651
      %v2653 = vlaneseq
      %v2654 = vshrl.u32 %v2653, 7
      %v2655 = vsub.s32 %v2652, %v2654
      %v2656 = vrot.slane %v2642, %v2655
      %v2657 = vcombine.low %v2579, %v2585
      %v2658 = vcombine.high %v2579, %v2585
      %v2660 = vunpack.c.l.s4 1983009808
      %v2661 = vunpack.c.0.s8 %v2660
      %v2662 = vlaneseq
      %v2663 = vshrl.u32 %v2662, 7
      %v2664 = vsub.s32 %v2661, %v2663
      %v2665 = vrot.slane %v2657, %v2664
      %v2667 = vunpack.c.l.s4 1983009808
      %v2668 = vunpack.c.0.s8 %v2667
      %v2669 = vlaneseq
      %v2670 = vshrl.u32 %v2669, 7
      %v2671 = vsub.s32 %v2668, %v2670
      %v2672 = vrot.slane %v2658, %v2671
      %v2673 = vcombine.low %v2617, %v2633
      %v2674 = vcombine.high %v2617, %v2633
      %v2676 = vunpack.c.l.s4 1934713408
      %v2677 = vunpack.c.0.s8 %v2676
      %v2678 = vlaneseq
      %v2679 = vshrl.u32 %v2678, 7
      %v2680 = vsub.s32 %v2677, %v2679
      %v2681 = vrot.slane %v2673, %v2680
      %v2683 = vunpack.c.l.s4 1934713408
      %v2684 = vunpack.c.0.s8 %v2683
      %v2685 = vlaneseq
      %v2686 = vshrl.u32 %v2685, 7
      %v2687 = vsub.s32 %v2684, %v2686
      %v2688 = vrot.slane %v2674, %v2687
      %v2689 = vcombine.low %v2624, %v2640
      %v2690 = vcombine.high %v2624, %v2640
      %v2692 = vunpack.c.l.s4 1934713408
      %v2693 = vunpack.c.0.s8 %v2692
      %v2694 = vlaneseq
      %v2695 = vshrl.u32 %v2694, 7
      %v2696 = vsub.s32 %v2693, %v2695
      %v2697 = vrot.slane %v2689, %v2696
      %v2699 = vunpack.c.l.s4 1934713408
      %v2700 = vunpack.c.0.s8 %v2699
      %v2701 = vlaneseq
      %v2702 = vshrl.u32 %v2701, 7
      %v2703 = vsub.s32 %v2700, %v2702
      %v2704 = vrot.slane %v2690, %v2703
      %v2705 = vcombine.low %v2649, %v2665
      %v2706 = vcombine.high %v2649, %v2665
      %v2708 = vunpack.c.l.s4 1934713408
      %v2709 = vunpack.c.0.s8 %v2708
      %v2710 = vlaneseq
      %v2711 = vshrl.u32 %v2710, 7
      %v2712 = vsub.s32 %v2709, %v2711
      %v2713 = vrot.slane %v2705, %v2712
      %v2715 = vunpack.c.l.s4 1934713408
      %v2716 = vunpack.c.0.s8 %v2715
      %v2717 = vlaneseq
      %v2718 = vshrl.u32 %v2717, 7
      %v2719 = vsub.s32 %v2716, %v2718
      %v2720 = vrot.slane %v2706, %v2719
      %v2721 = vcombine.low %v2656, %v2672
      %v2722 = vcombine.high %v2656, %v2672
      %v2724 = vunpack.c.l.s4 1934713408
      %v2725 = vunpack.c.0.s8 %v2724
      %v2726 = vlaneseq
      %v2727 = vshrl.u32 %v2726, 7
      %v2728 = vsub.s32 %v2725, %v2727
      %v2729 = vrot.slane %v2721, %v2728
      %v2731 = vunpack.c.l.s4 1934713408
      %v2732 = vunpack.c.0.s8 %v2731
      %v2733 = vlaneseq
      %v2734 = vshrl.u32 %v2733, 7
      %v2735 = vsub.s32 %v2732, %v2734
      %v2736 = vrot.slane %v2722, %v2735
      %v2737 = vcombine.low %v2681, %v2713
      %v2738 = vcombine.high %v2681, %v2713
      %v2739 = vcombine.low %v2688, %v2720
      %v2740 = vcombine.high %v2688, %v2720
      %v2741 = vcombine.low %v2697, %v2729
      %v2742 = vcombine.high %v2697, %v2729
      %v2743 = vcombine.low %v2704, %v2736
      %v2744 = vcombine.high %v2704, %v2736
      %v2745 = vcombine.low %v2540, %v2592
      %v2746 = vcombine.high %v2540, %v2592
      %v2748 = vunpack.c.l.s4 1983009808
      %v2749 = vunpack.c.0.s8 %v2748
      %v2750 = vlaneseq
      %v2751 = vshrl.u32 %v2750, 7
      %v2752 = vsub.s32 %v2749, %v2751
      %v2753 = vrot.slane %v2745, %v2752
      %v2755 = vunpack.c.l.s4 1983009808
      %v2756 = vunpack.c.0.s8 %v2755
      %v2757 = vlaneseq
      %v2758 = vshrl.u32 %v2757, 7
      %v2759 = vsub.s32 %v2756, %v2758
      %v2760 = vrot.slane %v2746, %v2759
      %v2761 = vcombine.low %v2589, %v2595
      %v2762 = vcombine.high %v2589, %v2595
      %v2764 = vunpack.c.l.s4 1983009808
      %v2765 = vunpack.c.0.s8 %v2764
      %v2766 = vlaneseq
      %v2767 = vshrl.u32 %v2766, 7
      %v2768 = vsub.s32 %v2765, %v2767
      %v2769 = vrot.slane %v2761, %v2768
      %v2771 = vunpack.c.l.s4 1983009808
      %v2772 = vunpack.c.0.s8 %v2771
      %v2773 = vlaneseq
      %v2774 = vshrl.u32 %v2773, 7
      %v2775 = vsub.s32 %v2772, %v2774
      %v2776 = vrot.slane %v2762, %v2775
      %v2777 = vcombine.low %v2598, %v2604
      %v2778 = vcombine.high %v2598, %v2604
      %v2780 = vunpack.c.l.s4 1983009808
      %v2781 = vunpack.c.0.s8 %v2780
      %v2782 = vlaneseq
      %v2783 = vshrl.u32 %v2782, 7
      %v2784 = vsub.s32 %v2781, %v2783
      %v2785 = vrot.slane %v2777, %v2784
      %v2787 = vunpack.c.l.s4 1983009808
      %v2788 = vunpack.c.0.s8 %v2787
      %v2789 = vlaneseq
      %v2790 = vshrl.u32 %v2789, 7
      %v2791 = vsub.s32 %v2788, %v2790
      %v2792 = vrot.slane %v2778, %v2791
      %v2793 = vcombine.low %v2601, %v2607
      %v2794 = vcombine.high %v2601, %v2607
      %v2796 = vunpack.c.l.s4 1983009808
      %v2797 = vunpack.c.0.s8 %v2796
      %v2798 = vlaneseq
      %v2799 = vshrl.u32 %v2798, 7
      %v2800 = vsub.s32 %v2797, %v2799
      %v2801 = vrot.slane %v2793, %v2800
      %v2803 = vunpack.c.l.s4 1983009808
      %v2804 = vunpack.c.0.s8 %v2803
      %v2805 = vlaneseq
      %v2806 = vshrl.u32 %v2805, 7
      %v2807 = vsub.s32 %v2804, %v2806
      %v2808 = vrot.slane %v2794, %v2807
      %v2809 = vcombine.low %v2753, %v2769
      %v2810 = vcombine.high %v2753, %v2769
      %v2812 = vunpack.c.l.s4 1934713408
      %v2813 = vunpack.c.0.s8 %v2812
      %v2814 = vlaneseq
      %v2815 = vshrl.u32 %v2814, 7
      %v2816 = vsub.s32 %v2813, %v2815
      %v2817 = vrot.slane %v2809, %v2816
      %v2819 = vunpack.c.l.s4 1934713408
      %v2820 = vunpack.c.0.s8 %v2819
      %v2821 = vlaneseq
      %v2822 = vshrl.u32 %v2821, 7
      %v2823 = vsub.s32 %v2820, %v2822
      %v2824 = vrot.slane %v2810, %v2823
      %v2825 = vcombine.low %v2760, %v2776
      %v2826 = vcombine.high %v2760, %v2776
      %v2828 = vunpack.c.l.s4 1934713408
      %v2829 = vunpack.c.0.s8 %v2828
      %v2830 = vlaneseq
      %v2831 = vshrl.u32 %v2830, 7
      %v2832 = vsub.s32 %v2829, %v2831
      %v2833 = vrot.slane %v2825, %v2832
      %v2835 = vunpack.c.l.s4 1934713408
      %v2836 = vunpack.c.0.s8 %v2835
      %v2837 = vlaneseq
      %v2838 = vshrl.u32 %v2837, 7
      %v2839 = vsub.s32 %v2836, %v2838
      %v2840 = vrot.slane %v2826, %v2839
      %v2841 = vcombine.low %v2785, %v2801
      %v2842 = vcombine.high %v2785, %v2801
      %v2844 = vunpack.c.l.s4 1934713408
      %v2845 = vunpack.c.0.s8 %v2844
      %v2846 = vlaneseq
      %v2847 = vshrl.u32 %v2846, 7
      %v2848 = vsub.s32 %v2845, %v2847
      %v2849 = vrot.slane %v2841, %v2848
      %v2851 = vunpack.c.l.s4 1934713408
      %v2852 = vunpack.c.0.s8 %v2851
      %v2853 = vlaneseq
      %v2854 = vshrl.u32 %v2853, 7
      %v2855 = vsub.s32 %v2852, %v2854
      %v2856 = vrot.slane %v2842, %v2855
      %v2857 = vcombine.low %v2792, %v2808
      %v2858 = vcombine.high %v2792, %v2808
      %v2860 = vunpack.c.l.s4 1934713408
      %v2861 = vunpack.c.0.s8 %v2860
      %v2862 = vlaneseq
      %v2863 = vshrl.u32 %v2862, 7
      %v2864 = vsub.s32 %v2861, %v2863
      %v2865 = vrot.slane %v2857, %v2864
      %v2867 = vunpack.c.l.s4 1934713408
      %v2868 = vunpack.c.0.s8 %v2867
      %v2869 = vlaneseq
      %v2870 = vshrl.u32 %v2869, 7
      %v2871 = vsub.s32 %v2868, %v2870
      %v2872 = vrot.slane %v2858, %v2871
      %v2873 = vcombine.low %v2817, %v2849
      %v2874 = vcombine.high %v2817, %v2849
      %v2875 = vcombine.low %v2824, %v2856
      %v2876 = vcombine.high %v2824, %v2856
      %v2877 = vcombine.low %v2833, %v2865
      %v2878 = vcombine.high %v2833, %v2865
      %v2879 = vcombine.low %v2840, %v2872
      %v2880 = vcombine.high %v2840, %v2872
      %2897 = vrot.lane.b32.xlu0 %v2737, 1
      %v2898 = vpop.permute.xlu0 %2897
      %2899 = vrot.lane.b32.xlu0 %v2873, 1
      %v2900 = vpop.permute.xlu0 %2899
      %2901 = vrot.lane.b32.xlu0 %v2738, 1
      %v2902 = vpop.permute.xlu0 %2901
      %2903 = vrot.lane.b32.xlu0 %v2874, 1
      %v2904 = vpop.permute.xlu0 %2903
      %2905 = vrot.lane.b32.xlu0 %v2739, 1
      %v2906 = vpop.permute.xlu0 %2905
      %2907 = vrot.lane.b32.xlu0 %v2875, 1
      %v2908 = vpop.permute.xlu0 %2907
      %2909 = vrot.lane.b32.xlu0 %v2740, 1
      %v2910 = vpop.permute.xlu0 %2909
      %2911 = vrot.lane.b32.xlu0 %v2876, 1
      %v2912 = vpop.permute.xlu0 %2911
      %2913 = vrot.lane.b32.xlu0 %v2741, 1
      %v2914 = vpop.permute.xlu0 %2913
      %2915 = vrot.lane.b32.xlu0 %v2877, 1
      %v2916 = vpop.permute.xlu0 %2915
      %2917 = vrot.lane.b32.xlu0 %v2742, 1
      %v2918 = vpop.permute.xlu0 %2917
      %2919 = vrot.lane.b32.xlu0 %v2878, 1
      %v2920 = vpop.permute.xlu0 %2919
      %2921 = vrot.lane.b32.xlu0 %v2743, 1
      %v2922 = vpop.permute.xlu0 %2921
      %2923 = vrot.lane.b32.xlu0 %v2879, 1
      %v2924 = vpop.permute.xlu0 %2923
      %2925 = vrot.lane.b32.xlu0 %v2744, 1
      %v2926 = vpop.permute.xlu0 %2925
      %2927 = vrot.lane.b32.xlu0 %v2880, 1
      %v2928 = vpop.permute.xlu0 %2927
      %2945 = vst.msk [vmem:[#allocation4 + $0x1] sm:$0xff] %vm288, %v2898
      %2946 = vst.msk [vmem:[#allocation4 + $0x9] sm:$0xff] %vm288, %v2900
      %2947 = vst.msk [vmem:[#allocation4 + $0x19] sm:$0xff] %vm288, %v2902
      %2948 = vst.msk [vmem:[#allocation4 + $0x21] sm:$0xff] %vm288, %v2904
      %2949 = vst.msk [vmem:[#allocation4 + $0x31] sm:$0xff] %vm288, %v2906
      %2950 = vst.msk [vmem:[#allocation4 + $0x39] sm:$0xff] %vm288, %v2908
      %2951 = vst.msk [vmem:[#allocation4 + $0x49] sm:$0xff] %vm288, %v2910
      %2952 = vst.msk [vmem:[#allocation4 + $0x51] sm:$0xff] %vm288, %v2912
      %2953 = vst.msk [vmem:[#allocation4 + $0x61] sm:$0xff] %vm288, %v2914
      %2954 = vst.msk [vmem:[#allocation4 + $0x69] sm:$0xff] %vm288, %v2916
      %2955 = vst.msk [vmem:[#allocation4 + $0x79] sm:$0xff] %vm288, %v2918
      %2956 = vst.msk [vmem:[#allocation4 + $0x81] sm:$0xff] %vm288, %v2920
      %2957 = vst.msk [vmem:[#allocation4 + $0x91] sm:$0xff] %vm288, %v2922
      %2958 = vst.msk [vmem:[#allocation4 + $0x99] sm:$0xff] %vm288, %v2924
      %2959 = vst.msk [vmem:[#allocation4 + $0xa9] sm:$0xff] %vm288, %v2926
      %2960 = vst.msk [vmem:[#allocation4 + $0xb1] sm:$0xff] %vm288, %v2928
      %v2961 = vld [vmem:[#allocation4] sm:$0xff]
      %v2962 = vld [vmem:[#allocation4 + $0x8] sm:$0xff]
      %v2963 = vld [vmem:[#allocation4 + $0x18] sm:$0xff]
      %v2964 = vld [vmem:[#allocation4 + $0x20] sm:$0xff]
      %v2965 = vld [vmem:[#allocation4 + $0x30] sm:$0xff]
      %v2966 = vld [vmem:[#allocation4 + $0x38] sm:$0xff]
      %v2967 = vld [vmem:[#allocation4 + $0x48] sm:$0xff]
      %v2968 = vld [vmem:[#allocation4 + $0x50] sm:$0xff]
      %v2969 = vld [vmem:[#allocation4 + $0x60] sm:$0xff]
      %v2970 = vld [vmem:[#allocation4 + $0x68] sm:$0xff]
      %v2971 = vld [vmem:[#allocation4 + $0x78] sm:$0xff]
      %v2972 = vld [vmem:[#allocation4 + $0x80] sm:$0xff]
      %v2973 = vld [vmem:[#allocation4 + $0x90] sm:$0xff]
      %v2974 = vld [vmem:[#allocation4 + $0x98] sm:$0xff]
      %v2975 = vld [vmem:[#allocation4 + $0xa8] sm:$0xff]
      %v2976 = vld [vmem:[#allocation4 + $0xb0] sm:$0xff]
      %v2977 = vcombine.low %v2961, %v2965
      %v2978 = vcombine.high %v2961, %v2965
      %v2980 = vunpack.c.l.s4 1983009808
      %v2981 = vunpack.c.0.s8 %v2980
      %v2982 = vlaneseq
      %v2983 = vshrl.u32 %v2982, 7
      %v2984 = vsub.s32 %v2981, %v2983
      %v2985 = vrot.slane %v2977, %v2984
      %v2987 = vunpack.c.l.s4 1983009808
      %v2988 = vunpack.c.0.s8 %v2987
      %v2989 = vlaneseq
      %v2990 = vshrl.u32 %v2989, 7
      %v2991 = vsub.s32 %v2988, %v2990
      %v2992 = vrot.slane %v2978, %v2991
      %v2993 = vcombine.low %v2963, %v2967
      %v2994 = vcombine.high %v2963, %v2967
      %v2996 = vunpack.c.l.s4 1983009808
      %v2997 = vunpack.c.0.s8 %v2996
      %v2998 = vlaneseq
      %v2999 = vshrl.u32 %v2998, 7
      %v3000 = vsub.s32 %v2997, %v2999
      %v3001 = vrot.slane %v2993, %v3000
      %v3003 = vunpack.c.l.s4 1983009808
      %v3004 = vunpack.c.0.s8 %v3003
      %v3005 = vlaneseq
      %v3006 = vshrl.u32 %v3005, 7
      %v3007 = vsub.s32 %v3004, %v3006
      %v3008 = vrot.slane %v2994, %v3007
      %v3009 = vcombine.low %v2969, %v2973
      %v3010 = vcombine.high %v2969, %v2973
      %v3012 = vunpack.c.l.s4 1983009808
      %v3013 = vunpack.c.0.s8 %v3012
      %v3014 = vlaneseq
      %v3015 = vshrl.u32 %v3014, 7
      %v3016 = vsub.s32 %v3013, %v3015
      %v3017 = vrot.slane %v3009, %v3016
      %v3019 = vunpack.c.l.s4 1983009808
      %v3020 = vunpack.c.0.s8 %v3019
      %v3021 = vlaneseq
      %v3022 = vshrl.u32 %v3021, 7
      %v3023 = vsub.s32 %v3020, %v3022
      %v3024 = vrot.slane %v3010, %v3023
      %v3025 = vcombine.low %v2971, %v2975
      %v3026 = vcombine.high %v2971, %v2975
      %v3028 = vunpack.c.l.s4 1983009808
      %v3029 = vunpack.c.0.s8 %v3028
      %v3030 = vlaneseq
      %v3031 = vshrl.u32 %v3030, 7
      %v3032 = vsub.s32 %v3029, %v3031
      %v3033 = vrot.slane %v3025, %v3032
      %v3035 = vunpack.c.l.s4 1983009808
      %v3036 = vunpack.c.0.s8 %v3035
      %v3037 = vlaneseq
      %v3038 = vshrl.u32 %v3037, 7
      %v3039 = vsub.s32 %v3036, %v3038
      %v3040 = vrot.slane %v3026, %v3039
      %v3041 = vcombine.low %v2985, %v3001
      %v3042 = vcombine.high %v2985, %v3001
      %v3044 = vunpack.c.l.s4 1934713408
      %v3045 = vunpack.c.0.s8 %v3044
      %v3046 = vlaneseq
      %v3047 = vshrl.u32 %v3046, 7
      %v3048 = vsub.s32 %v3045, %v3047
      %v3049 = vrot.slane %v3041, %v3048
      %v3051 = vunpack.c.l.s4 1934713408
      %v3052 = vunpack.c.0.s8 %v3051
      %v3053 = vlaneseq
      %v3054 = vshrl.u32 %v3053, 7
      %v3055 = vsub.s32 %v3052, %v3054
      %v3056 = vrot.slane %v3042, %v3055
      %v3057 = vcombine.low %v2992, %v3008
      %v3058 = vcombine.high %v2992, %v3008
      %v3060 = vunpack.c.l.s4 1934713408
      %v3061 = vunpack.c.0.s8 %v3060
      %v3062 = vlaneseq
      %v3063 = vshrl.u32 %v3062, 7
      %v3064 = vsub.s32 %v3061, %v3063
      %v3065 = vrot.slane %v3057, %v3064
      %v3067 = vunpack.c.l.s4 1934713408
      %v3068 = vunpack.c.0.s8 %v3067
      %v3069 = vlaneseq
      %v3070 = vshrl.u32 %v3069, 7
      %v3071 = vsub.s32 %v3068, %v3070
      %v3072 = vrot.slane %v3058, %v3071
      %v3073 = vcombine.low %v3017, %v3033
      %v3074 = vcombine.high %v3017, %v3033
      %v3076 = vunpack.c.l.s4 1934713408
      %v3077 = vunpack.c.0.s8 %v3076
      %v3078 = vlaneseq
      %v3079 = vshrl.u32 %v3078, 7
      %v3080 = vsub.s32 %v3077, %v3079
      %v3081 = vrot.slane %v3073, %v3080
      %v3083 = vunpack.c.l.s4 1934713408
      %v3084 = vunpack.c.0.s8 %v3083
      %v3085 = vlaneseq
      %v3086 = vshrl.u32 %v3085, 7
      %v3087 = vsub.s32 %v3084, %v3086
      %v3088 = vrot.slane %v3074, %v3087
      %v3089 = vcombine.low %v3024, %v3040
      %v3090 = vcombine.high %v3024, %v3040
      %v3092 = vunpack.c.l.s4 1934713408
      %v3093 = vunpack.c.0.s8 %v3092
      %v3094 = vlaneseq
      %v3095 = vshrl.u32 %v3094, 7
      %v3096 = vsub.s32 %v3093, %v3095
      %v3097 = vrot.slane %v3089, %v3096
      %v3099 = vunpack.c.l.s4 1934713408
      %v3100 = vunpack.c.0.s8 %v3099
      %v3101 = vlaneseq
      %v3102 = vshrl.u32 %v3101, 7
      %v3103 = vsub.s32 %v3100, %v3102
      %v3104 = vrot.slane %v3090, %v3103
      %v3105 = vcombine.low %v3049, %v3081
      %v3106 = vcombine.high %v3049, %v3081
      %v3107 = vcombine.low %v3056, %v3088
      %v3108 = vcombine.high %v3056, %v3088
      %v3109 = vcombine.low %v3065, %v3097
      %v3110 = vcombine.high %v3065, %v3097
      %v3111 = vcombine.low %v3072, %v3104
      %v3112 = vcombine.high %v3072, %v3104
      %v3113 = vcombine.low %v2962, %v2966
      %v3114 = vcombine.high %v2962, %v2966
      %v3116 = vunpack.c.l.s4 1983009808
      %v3117 = vunpack.c.0.s8 %v3116
      %v3118 = vlaneseq
      %v3119 = vshrl.u32 %v3118, 7
      %v3120 = vsub.s32 %v3117, %v3119
      %v3121 = vrot.slane %v3113, %v3120
      %v3123 = vunpack.c.l.s4 1983009808
      %v3124 = vunpack.c.0.s8 %v3123
      %v3125 = vlaneseq
      %v3126 = vshrl.u32 %v3125, 7
      %v3127 = vsub.s32 %v3124, %v3126
      %v3128 = vrot.slane %v3114, %v3127
      %v3129 = vcombine.low %v2964, %v2968
      %v3130 = vcombine.high %v2964, %v2968
      %v3132 = vunpack.c.l.s4 1983009808
      %v3133 = vunpack.c.0.s8 %v3132
      %v3134 = vlaneseq
      %v3135 = vshrl.u32 %v3134, 7
      %v3136 = vsub.s32 %v3133, %v3135
      %v3137 = vrot.slane %v3129, %v3136
      %v3139 = vunpack.c.l.s4 1983009808
      %v3140 = vunpack.c.0.s8 %v3139
      %v3141 = vlaneseq
      %v3142 = vshrl.u32 %v3141, 7
      %v3143 = vsub.s32 %v3140, %v3142
      %v3144 = vrot.slane %v3130, %v3143
      %v3145 = vcombine.low %v2970, %v2974
      %v3146 = vcombine.high %v2970, %v2974
      %v3148 = vunpack.c.l.s4 1983009808
      %v3149 = vunpack.c.0.s8 %v3148
      %v3150 = vlaneseq
      %v3151 = vshrl.u32 %v3150, 7
      %v3152 = vsub.s32 %v3149, %v3151
      %v3153 = vrot.slane %v3145, %v3152
      %v3155 = vunpack.c.l.s4 1983009808
      %v3156 = vunpack.c.0.s8 %v3155
      %v3157 = vlaneseq
      %v3158 = vshrl.u32 %v3157, 7
      %v3159 = vsub.s32 %v3156, %v3158
      %v3160 = vrot.slane %v3146, %v3159
      %v3161 = vcombine.low %v2972, %v2976
      %v3162 = vcombine.high %v2972, %v2976
      %v3164 = vunpack.c.l.s4 1983009808
      %v3165 = vunpack.c.0.s8 %v3164
      %v3166 = vlaneseq
      %v3167 = vshrl.u32 %v3166, 7
      %v3168 = vsub.s32 %v3165, %v3167
      %v3169 = vrot.slane %v3161, %v3168
      %v3171 = vunpack.c.l.s4 1983009808
      %v3172 = vunpack.c.0.s8 %v3171
      %v3173 = vlaneseq
      %v3174 = vshrl.u32 %v3173, 7
      %v3175 = vsub.s32 %v3172, %v3174
      %v3176 = vrot.slane %v3162, %v3175
      %v3177 = vcombine.low %v3121, %v3137
      %v3178 = vcombine.high %v3121, %v3137
      %v3180 = vunpack.c.l.s4 1934713408
      %v3181 = vunpack.c.0.s8 %v3180
      %v3182 = vlaneseq
      %v3183 = vshrl.u32 %v3182, 7
      %v3184 = vsub.s32 %v3181, %v3183
      %v3185 = vrot.slane %v3177, %v3184
      %v3187 = vunpack.c.l.s4 1934713408
      %v3188 = vunpack.c.0.s8 %v3187
      %v3189 = vlaneseq
      %v3190 = vshrl.u32 %v3189, 7
      %v3191 = vsub.s32 %v3188, %v3190
      %v3192 = vrot.slane %v3178, %v3191
      %v3193 = vcombine.low %v3128, %v3144
      %v3194 = vcombine.high %v3128, %v3144
      %v3196 = vunpack.c.l.s4 1934713408
      %v3197 = vunpack.c.0.s8 %v3196
      %v3198 = vlaneseq
      %v3199 = vshrl.u32 %v3198, 7
      %v3200 = vsub.s32 %v3197, %v3199
      %v3201 = vrot.slane %v3193, %v3200
      %v3203 = vunpack.c.l.s4 1934713408
      %v3204 = vunpack.c.0.s8 %v3203
      %v3205 = vlaneseq
      %v3206 = vshrl.u32 %v3205, 7
      %v3207 = vsub.s32 %v3204, %v3206
      %v3208 = vrot.slane %v3194, %v3207
      %v3209 = vcombine.low %v3153, %v3169
      %v3210 = vcombine.high %v3153, %v3169
      %v3212 = vunpack.c.l.s4 1934713408
      %v3213 = vunpack.c.0.s8 %v3212
      %v3214 = vlaneseq
      %v3215 = vshrl.u32 %v3214, 7
      %v3216 = vsub.s32 %v3213, %v3215
      %v3217 = vrot.slane %v3209, %v3216
      %v3219 = vunpack.c.l.s4 1934713408
      %v3220 = vunpack.c.0.s8 %v3219
      %v3221 = vlaneseq
      %v3222 = vshrl.u32 %v3221, 7
      %v3223 = vsub.s32 %v3220, %v3222
      %v3224 = vrot.slane %v3210, %v3223
      %v3225 = vcombine.low %v3160, %v3176
      %v3226 = vcombine.high %v3160, %v3176
      %v3228 = vunpack.c.l.s4 1934713408
      %v3229 = vunpack.c.0.s8 %v3228
      %v3230 = vlaneseq
      %v3231 = vshrl.u32 %v3230, 7
      %v3232 = vsub.s32 %v3229, %v3231
      %v3233 = vrot.slane %v3225, %v3232
      %v3235 = vunpack.c.l.s4 1934713408
      %v3236 = vunpack.c.0.s8 %v3235
      %v3237 = vlaneseq
      %v3238 = vshrl.u32 %v3237, 7
      %v3239 = vsub.s32 %v3236, %v3238
      %v3240 = vrot.slane %v3226, %v3239
      %v3241 = vcombine.low %v3185, %v3217
      %v3242 = vcombine.high %v3185, %v3217
      %v3243 = vcombine.low %v3192, %v3224
      %v3244 = vcombine.high %v3192, %v3224
      %v3245 = vcombine.low %v3201, %v3233
      %v3246 = vcombine.high %v3201, %v3233
      %v3247 = vcombine.low %v3208, %v3240
      %v3248 = vcombine.high %v3208, %v3240
      %3250 = vrot.lane.b32.xlu0 %v3106, 16
      %v3251 = vpop.permute.xlu0 %3250
      %3254 = vrot.lane.b32.xlu0 %v3107, 32
      %v3255 = vpop.permute.xlu0 %3254
      %3258 = vrot.lane.b32.xlu0 %v3108, 48
      %v3259 = vpop.permute.xlu0 %3258
      %3262 = vrot.lane.b32.xlu0 %v3109, 64
      %v3263 = vpop.permute.xlu0 %3262
      %3266 = vrot.lane.b32.xlu0 %v3110, 80
      %v3267 = vpop.permute.xlu0 %3266
      %3270 = vrot.lane.b32.xlu0 %v3111, 96
      %v3271 = vpop.permute.xlu0 %3270
      %3274 = vrot.lane.b32.xlu0 %v3112, 112
      %v3275 = vpop.permute.xlu0 %3274
      %3278 = vrot.lane.b32.xlu0 %v3242, 16
      %v3279 = vpop.permute.xlu0 %3278
      %3282 = vrot.lane.b32.xlu0 %v3243, 32
      %v3283 = vpop.permute.xlu0 %3282
      %3286 = vrot.lane.b32.xlu0 %v3244, 48
      %v3287 = vpop.permute.xlu0 %3286
      %3290 = vrot.lane.b32.xlu0 %v3245, 64
      %v3291 = vpop.permute.xlu0 %3290
      %3294 = vrot.lane.b32.xlu0 %v3246, 80
      %v3295 = vpop.permute.xlu0 %3294
      %3298 = vrot.lane.b32.xlu0 %v3247, 96
      %v3299 = vpop.permute.xlu0 %3298
      %3302 = vrot.lane.b32.xlu0 %v3248, 112
      %v3303 = vpop.permute.xlu0 %3302
      %v3305 = vsel %vm497, %v3105, %v3251
      %v3306 = vsel %vm499, %v3305, %v3255
      %v3307 = vsel %vm501, %v3306, %v3259
      %v3308 = vsel %vm503, %v3307, %v3263
      %v3309 = vsel %vm505, %v3308, %v3267
      %v3310 = vsel %vm507, %v3309, %v3271
      %v3311 = vsel %vm509, %v3310, %v3275
      %v3312 = vsel %vm497, %v3241, %v3279
      %v3313 = vsel %vm499, %v3312, %v3283
      %v3314 = vsel %vm501, %v3313, %v3287
      %v3315 = vsel %vm503, %v3314, %v3291
      %v3316 = vsel %vm505, %v3315, %v3295
      %v3317 = vsel %vm507, %v3316, %v3299
      %v3318 = vsel %vm509, %v3317, %v3303
      %3319 = vst [vmem:[#allocation5] sm:$0xff] %v3311
      %3320 = vst [vmem:[#allocation5 + $0x8] sm:$0xff] %v3318
      %v3321 = vld [vmem:[#allocation4] sm:$0xff]
      %v3322 = vld [vmem:[#allocation4 + $0x8] sm:$0xff]
      %v3323 = vld [vmem:[#allocation4 + $0x18] sm:$0xff]
      %v3324 = vld [vmem:[#allocation4 + $0x20] sm:$0xff]
      %v3325 = vld [vmem:[#allocation4 + $0x30] sm:$0xff]
      %v3326 = vld [vmem:[#allocation4 + $0x38] sm:$0xff]
      %v3327 = vld [vmem:[#allocation4 + $0x48] sm:$0xff]
      %v3328 = vld [vmem:[#allocation4 + $0x50] sm:$0xff]
      %v3329 = vld [vmem:[#allocation4 + $0x60] sm:$0xff]
      %v3330 = vld [vmem:[#allocation4 + $0x68] sm:$0xff]
      %v3331 = vld [vmem:[#allocation4 + $0x78] sm:$0xff]
      %v3332 = vld [vmem:[#allocation4 + $0x80] sm:$0xff]
      %v3333 = vld [vmem:[#allocation4 + $0x90] sm:$0xff]
      %v3334 = vld [vmem:[#allocation4 + $0x98] sm:$0xff]
      %v3335 = vld [vmem:[#allocation4 + $0xa8] sm:$0xff]
      %v3336 = vld [vmem:[#allocation4 + $0xb0] sm:$0xff]
      %3353 = vrot.lane.b32.xlu0 %v3321, 127
      %v3354 = vpop.permute.xlu0 %3353
      %3355 = vrot.lane.b32.xlu0 %v3322, 127
      %v3356 = vpop.permute.xlu0 %3355
      %3357 = vrot.lane.b32.xlu0 %v3323, 127
      %v3358 = vpop.permute.xlu0 %3357
      %3359 = vrot.lane.b32.xlu0 %v3324, 127
      %v3360 = vpop.permute.xlu0 %3359
      %3361 = vrot.lane.b32.xlu0 %v3325, 127
      %v3362 = vpop.permute.xlu0 %3361
      %3363 = vrot.lane.b32.xlu0 %v3326, 127
      %v3364 = vpop.permute.xlu0 %3363
      %3365 = vrot.lane.b32.xlu0 %v3327, 127
      %v3366 = vpop.permute.xlu0 %3365
      %3367 = vrot.lane.b32.xlu0 %v3328, 127
      %v3368 = vpop.permute.xlu0 %3367
      %3369 = vrot.lane.b32.xlu0 %v3329, 127
      %v3370 = vpop.permute.xlu0 %3369
      %3371 = vrot.lane.b32.xlu0 %v3330, 127
      %v3372 = vpop.permute.xlu0 %3371
      %3373 = vrot.lane.b32.xlu0 %v3331, 127
      %v3374 = vpop.permute.xlu0 %3373
      %3375 = vrot.lane.b32.xlu0 %v3332, 127
      %v3376 = vpop.permute.xlu0 %3375
      %3377 = vrot.lane.b32.xlu0 %v3333, 127
      %v3378 = vpop.permute.xlu0 %3377
      %3379 = vrot.lane.b32.xlu0 %v3334, 127
      %v3380 = vpop.permute.xlu0 %3379
      %3381 = vrot.lane.b32.xlu0 %v3335, 127
      %v3382 = vpop.permute.xlu0 %3381
      %3383 = vrot.lane.b32.xlu0 %v3336, 127
      %v3384 = vpop.permute.xlu0 %3383
      %v3401 = vcombine.low %v3354, %v3362
      %v3402 = vcombine.high %v3354, %v3362
      %v3404 = vunpack.c.l.s4 1983009808
      %v3405 = vunpack.c.0.s8 %v3404
      %v3406 = vlaneseq
      %v3407 = vshrl.u32 %v3406, 7
      %v3408 = vsub.s32 %v3405, %v3407
      %v3409 = vrot.slane %v3401, %v3408
      %v3411 = vunpack.c.l.s4 1983009808
      %v3412 = vunpack.c.0.s8 %v3411
      %v3413 = vlaneseq
      %v3414 = vshrl.u32 %v3413, 7
      %v3415 = vsub.s32 %v3412, %v3414
      %v3416 = vrot.slane %v3402, %v3415
      %v3417 = vcombine.low %v3358, %v3366
      %v3418 = vcombine.high %v3358, %v3366
      %v3420 = vunpack.c.l.s4 1983009808
      %v3421 = vunpack.c.0.s8 %v3420
      %v3422 = vlaneseq
      %v3423 = vshrl.u32 %v3422, 7
      %v3424 = vsub.s32 %v3421, %v3423
      %v3425 = vrot.slane %v3417, %v3424
      %v3427 = vunpack.c.l.s4 1983009808
      %v3428 = vunpack.c.0.s8 %v3427
      %v3429 = vlaneseq
      %v3430 = vshrl.u32 %v3429, 7
      %v3431 = vsub.s32 %v3428, %v3430
      %v3432 = vrot.slane %v3418, %v3431
      %v3433 = vcombine.low %v3370, %v3378
      %v3434 = vcombine.high %v3370, %v3378
      %v3436 = vunpack.c.l.s4 1983009808
      %v3437 = vunpack.c.0.s8 %v3436
      %v3438 = vlaneseq
      %v3439 = vshrl.u32 %v3438, 7
      %v3440 = vsub.s32 %v3437, %v3439
      %v3441 = vrot.slane %v3433, %v3440
      %v3443 = vunpack.c.l.s4 1983009808
      %v3444 = vunpack.c.0.s8 %v3443
      %v3445 = vlaneseq
      %v3446 = vshrl.u32 %v3445, 7
      %v3447 = vsub.s32 %v3444, %v3446
      %v3448 = vrot.slane %v3434, %v3447
      %v3449 = vcombine.low %v3374, %v3382
      %v3450 = vcombine.high %v3374, %v3382
      %v3452 = vunpack.c.l.s4 1983009808
      %v3453 = vunpack.c.0.s8 %v3452
      %v3454 = vlaneseq
      %v3455 = vshrl.u32 %v3454, 7
      %v3456 = vsub.s32 %v3453, %v3455
      %v3457 = vrot.slane %v3449, %v3456
      %v3459 = vunpack.c.l.s4 1983009808
      %v3460 = vunpack.c.0.s8 %v3459
      %v3461 = vlaneseq
      %v3462 = vshrl.u32 %v3461, 7
      %v3463 = vsub.s32 %v3460, %v3462
      %v3464 = vrot.slane %v3450, %v3463
      %v3465 = vcombine.low %v3409, %v3425
      %v3466 = vcombine.high %v3409, %v3425
      %v3468 = vunpack.c.l.s4 1934713408
      %v3469 = vunpack.c.0.s8 %v3468
      %v3470 = vlaneseq
      %v3471 = vshrl.u32 %v3470, 7
      %v3472 = vsub.s32 %v3469, %v3471
      %v3473 = vrot.slane %v3465, %v3472
      %v3475 = vunpack.c.l.s4 1934713408
      %v3476 = vunpack.c.0.s8 %v3475
      %v3477 = vlaneseq
      %v3478 = vshrl.u32 %v3477, 7
      %v3479 = vsub.s32 %v3476, %v3478
      %v3480 = vrot.slane %v3466, %v3479
      %v3481 = vcombine.low %v3416, %v3432
      %v3482 = vcombine.high %v3416, %v3432
      %v3484 = vunpack.c.l.s4 1934713408
      %v3485 = vunpack.c.0.s8 %v3484
      %v3486 = vlaneseq
      %v3487 = vshrl.u32 %v3486, 7
      %v3488 = vsub.s32 %v3485, %v3487
      %v3489 = vrot.slane %v3481, %v3488
      %v3491 = vunpack.c.l.s4 1934713408
      %v3492 = vunpack.c.0.s8 %v3491
      %v3493 = vlaneseq
      %v3494 = vshrl.u32 %v3493, 7
      %v3495 = vsub.s32 %v3492, %v3494
      %v3496 = vrot.slane %v3482, %v3495
      %v3497 = vcombine.low %v3441, %v3457
      %v3498 = vcombine.high %v3441, %v3457
      %v3500 = vunpack.c.l.s4 1934713408
      %v3501 = vunpack.c.0.s8 %v3500
      %v3502 = vlaneseq
      %v3503 = vshrl.u32 %v3502, 7
      %v3504 = vsub.s32 %v3501, %v3503
      %v3505 = vrot.slane %v3497, %v3504
      %v3507 = vunpack.c.l.s4 1934713408
      %v3508 = vunpack.c.0.s8 %v3507
      %v3509 = vlaneseq
      %v3510 = vshrl.u32 %v3509, 7
      %v3511 = vsub.s32 %v3508, %v3510
      %v3512 = vrot.slane %v3498, %v3511
      %v3513 = vcombine.low %v3448, %v3464
      %v3514 = vcombine.high %v3448, %v3464
      %v3516 = vunpack.c.l.s4 1934713408
      %v3517 = vunpack.c.0.s8 %v3516
      %v3518 = vlaneseq
      %v3519 = vshrl.u32 %v3518, 7
      %v3520 = vsub.s32 %v3517, %v3519
      %v3521 = vrot.slane %v3513, %v3520
      %v3523 = vunpack.c.l.s4 1934713408
      %v3524 = vunpack.c.0.s8 %v3523
      %v3525 = vlaneseq
      %v3526 = vshrl.u32 %v3525, 7
      %v3527 = vsub.s32 %v3524, %v3526
      %v3528 = vrot.slane %v3514, %v3527
      %v3529 = vcombine.low %v3473, %v3505
      %v3530 = vcombine.high %v3473, %v3505
      %v3531 = vcombine.low %v3480, %v3512
      %v3532 = vcombine.high %v3480, %v3512
      %v3533 = vcombine.low %v3489, %v3521
      %v3534 = vcombine.high %v3489, %v3521
      %v3535 = vcombine.low %v3496, %v3528
      %v3536 = vcombine.high %v3496, %v3528
      %v3537 = vcombine.low %v3356, %v3364
      %v3538 = vcombine.high %v3356, %v3364
      %v3540 = vunpack.c.l.s4 1983009808
      %v3541 = vunpack.c.0.s8 %v3540
      %v3542 = vlaneseq
      %v3543 = vshrl.u32 %v3542, 7
      %v3544 = vsub.s32 %v3541, %v3543
      %v3545 = vrot.slane %v3537, %v3544
      %v3547 = vunpack.c.l.s4 1983009808
      %v3548 = vunpack.c.0.s8 %v3547
      %v3549 = vlaneseq
      %v3550 = vshrl.u32 %v3549, 7
      %v3551 = vsub.s32 %v3548, %v3550
      %v3552 = vrot.slane %v3538, %v3551
      %v3553 = vcombine.low %v3360, %v3368
      %v3554 = vcombine.high %v3360, %v3368
      %v3556 = vunpack.c.l.s4 1983009808
      %v3557 = vunpack.c.0.s8 %v3556
      %v3558 = vlaneseq
      %v3559 = vshrl.u32 %v3558, 7
      %v3560 = vsub.s32 %v3557, %v3559
      %v3561 = vrot.slane %v3553, %v3560
      %v3563 = vunpack.c.l.s4 1983009808
      %v3564 = vunpack.c.0.s8 %v3563
      %v3565 = vlaneseq
      %v3566 = vshrl.u32 %v3565, 7
      %v3567 = vsub.s32 %v3564, %v3566
      %v3568 = vrot.slane %v3554, %v3567
      %v3569 = vcombine.low %v3372, %v3380
      %v3570 = vcombine.high %v3372, %v3380
      %v3572 = vunpack.c.l.s4 1983009808
      %v3573 = vunpack.c.0.s8 %v3572
      %v3574 = vlaneseq
      %v3575 = vshrl.u32 %v3574, 7
      %v3576 = vsub.s32 %v3573, %v3575
      %v3577 = vrot.slane %v3569, %v3576
      %v3579 = vunpack.c.l.s4 1983009808
      %v3580 = vunpack.c.0.s8 %v3579
      %v3581 = vlaneseq
      %v3582 = vshrl.u32 %v3581, 7
      %v3583 = vsub.s32 %v3580, %v3582
      %v3584 = vrot.slane %v3570, %v3583
      %v3585 = vcombine.low %v3376, %v3384
      %v3586 = vcombine.high %v3376, %v3384
      %v3588 = vunpack.c.l.s4 1983009808
      %v3589 = vunpack.c.0.s8 %v3588
      %v3590 = vlaneseq
      %v3591 = vshrl.u32 %v3590, 7
      %v3592 = vsub.s32 %v3589, %v3591
      %v3593 = vrot.slane %v3585, %v3592
      %v3595 = vunpack.c.l.s4 1983009808
      %v3596 = vunpack.c.0.s8 %v3595
      %v3597 = vlaneseq
      %v3598 = vshrl.u32 %v3597, 7
      %v3599 = vsub.s32 %v3596, %v3598
      %v3600 = vrot.slane %v3586, %v3599
      %v3601 = vcombine.low %v3545, %v3561
      %v3602 = vcombine.high %v3545, %v3561
      %v3604 = vunpack.c.l.s4 1934713408
      %v3605 = vunpack.c.0.s8 %v3604
      %v3606 = vlaneseq
      %v3607 = vshrl.u32 %v3606, 7
      %v3608 = vsub.s32 %v3605, %v3607
      %v3609 = vrot.slane %v3601, %v3608
      %v3611 = vunpack.c.l.s4 1934713408
      %v3612 = vunpack.c.0.s8 %v3611
      %v3613 = vlaneseq
      %v3614 = vshrl.u32 %v3613, 7
      %v3615 = vsub.s32 %v3612, %v3614
      %v3616 = vrot.slane %v3602, %v3615
      %v3617 = vcombine.low %v3552, %v3568
      %v3618 = vcombine.high %v3552, %v3568
      %v3620 = vunpack.c.l.s4 1934713408
      %v3621 = vunpack.c.0.s8 %v3620
      %v3622 = vlaneseq
      %v3623 = vshrl.u32 %v3622, 7
      %v3624 = vsub.s32 %v3621, %v3623
      %v3625 = vrot.slane %v3617, %v3624
      %v3627 = vunpack.c.l.s4 1934713408
      %v3628 = vunpack.c.0.s8 %v3627
      %v3629 = vlaneseq
      %v3630 = vshrl.u32 %v3629, 7
      %v3631 = vsub.s32 %v3628, %v3630
      %v3632 = vrot.slane %v3618, %v3631
      %v3633 = vcombine.low %v3577, %v3593
      %v3634 = vcombine.high %v3577, %v3593
      %v3636 = vunpack.c.l.s4 1934713408
      %v3637 = vunpack.c.0.s8 %v3636
      %v3638 = vlaneseq
      %v3639 = vshrl.u32 %v3638, 7
      %v3640 = vsub.s32 %v3637, %v3639
      %v3641 = vrot.slane %v3633, %v3640
      %v3643 = vunpack.c.l.s4 1934713408
      %v3644 = vunpack.c.0.s8 %v3643
      %v3645 = vlaneseq
      %v3646 = vshrl.u32 %v3645, 7
      %v3647 = vsub.s32 %v3644, %v3646
      %v3648 = vrot.slane %v3634, %v3647
      %v3649 = vcombine.low %v3584, %v3600
      %v3650 = vcombine.high %v3584, %v3600
      %v3652 = vunpack.c.l.s4 1934713408
      %v3653 = vunpack.c.0.s8 %v3652
      %v3654 = vlaneseq
      %v3655 = vshrl.u32 %v3654, 7
      %v3656 = vsub.s32 %v3653, %v3655
      %v3657 = vrot.slane %v3649, %v3656
      %v3659 = vunpack.c.l.s4 1934713408
      %v3660 = vunpack.c.0.s8 %v3659
      %v3661 = vlaneseq
      %v3662 = vshrl.u32 %v3661, 7
      %v3663 = vsub.s32 %v3660, %v3662
      %v3664 = vrot.slane %v3650, %v3663
      %v3665 = vcombine.low %v3609, %v3641
      %v3666 = vcombine.high %v3609, %v3641
      %v3667 = vcombine.low %v3616, %v3648
      %v3668 = vcombine.high %v3616, %v3648
      %v3669 = vcombine.low %v3625, %v3657
      %v3670 = vcombine.high %v3625, %v3657
      %v3671 = vcombine.low %v3632, %v3664
      %v3672 = vcombine.high %v3632, %v3664
      %3674 = vrot.lane.b32.xlu0 %v3530, 16
      %v3675 = vpop.permute.xlu0 %3674
      %3678 = vrot.lane.b32.xlu0 %v3531, 32
      %v3679 = vpop.permute.xlu0 %3678
      %3682 = vrot.lane.b32.xlu0 %v3532, 48
      %v3683 = vpop.permute.xlu0 %3682
      %3686 = vrot.lane.b32.xlu0 %v3533, 64
      %v3687 = vpop.permute.xlu0 %3686
      %3690 = vrot.lane.b32.xlu0 %v3534, 80
      %v3691 = vpop.permute.xlu0 %3690
      %3694 = vrot.lane.b32.xlu0 %v3535, 96
      %v3695 = vpop.permute.xlu0 %3694
      %3698 = vrot.lane.b32.xlu0 %v3536, 112
      %v3699 = vpop.permute.xlu0 %3698
      %3702 = vrot.lane.b32.xlu0 %v3666, 16
      %v3703 = vpop.permute.xlu0 %3702
      %3706 = vrot.lane.b32.xlu0 %v3667, 32
      %v3707 = vpop.permute.xlu0 %3706
      %3710 = vrot.lane.b32.xlu0 %v3668, 48
      %v3711 = vpop.permute.xlu0 %3710
      %3714 = vrot.lane.b32.xlu0 %v3669, 64
      %v3715 = vpop.permute.xlu0 %3714
      %3718 = vrot.lane.b32.xlu0 %v3670, 80
      %v3719 = vpop.permute.xlu0 %3718
      %3722 = vrot.lane.b32.xlu0 %v3671, 96
      %v3723 = vpop.permute.xlu0 %3722
      %3726 = vrot.lane.b32.xlu0 %v3672, 112
      %v3727 = vpop.permute.xlu0 %3726
      %v3729 = vsel %vm497, %v3529, %v3675
      %v3730 = vsel %vm499, %v3729, %v3679
      %v3731 = vsel %vm501, %v3730, %v3683
      %v3732 = vsel %vm503, %v3731, %v3687
      %v3733 = vsel %vm505, %v3732, %v3691
      %v3734 = vsel %vm507, %v3733, %v3695
      %v3735 = vsel %vm509, %v3734, %v3699
      %v3736 = vsel %vm497, %v3665, %v3703
      %v3737 = vsel %vm499, %v3736, %v3707
      %v3738 = vsel %vm501, %v3737, %v3711
      %v3739 = vsel %vm503, %v3738, %v3715
      %v3740 = vsel %vm505, %v3739, %v3719
      %v3741 = vsel %vm507, %v3740, %v3723
      %v3742 = vsel %vm509, %v3741, %v3727
      %3743 = vst [vmem:[#allocation5 + $0x10] sm:$0xff] %v3735
      %3744 = vst [vmem:[#allocation5 + $0x18] sm:$0xff] %v3742
      %v3745 = vld [vmem:[#allocation4] sm:$0xff]
      %v3746 = vld [vmem:[#allocation4 + $0x8] sm:$0xff]
      %v3747 = vld [vmem:[#allocation4 + $0x18] sm:$0xff]
      %v3748 = vld [vmem:[#allocation4 + $0x20] sm:$0xff]
      %v3749 = vld [vmem:[#allocation4 + $0x30] sm:$0xff]
      %v3750 = vld [vmem:[#allocation4 + $0x38] sm:$0xff]
      %v3751 = vld [vmem:[#allocation4 + $0x48] sm:$0xff]
      %v3752 = vld [vmem:[#allocation4 + $0x50] sm:$0xff]
      %v3753 = vld [vmem:[#allocation4 + $0x60] sm:$0xff]
      %v3754 = vld [vmem:[#allocation4 + $0x68] sm:$0xff]
      %v3755 = vld [vmem:[#allocation4 + $0x78] sm:$0xff]
      %v3756 = vld [vmem:[#allocation4 + $0x80] sm:$0xff]
      %v3757 = vld [vmem:[#allocation4 + $0x90] sm:$0xff]
      %v3758 = vld [vmem:[#allocation4 + $0x98] sm:$0xff]
      %v3759 = vld [vmem:[#allocation4 + $0xa8] sm:$0xff]
      %v3760 = vld [vmem:[#allocation4 + $0xb0] sm:$0xff]
      %3777 = vrot.lane.b32.xlu0 %v3745, 126
      %v3778 = vpop.permute.xlu0 %3777
      %3779 = vrot.lane.b32.xlu0 %v3746, 126
      %v3780 = vpop.permute.xlu0 %3779
      %3781 = vrot.lane.b32.xlu0 %v3747, 126
      %v3782 = vpop.permute.xlu0 %3781
      %3783 = vrot.lane.b32.xlu0 %v3748, 126
      %v3784 = vpop.permute.xlu0 %3783
      %3785 = vrot.lane.b32.xlu0 %v3749, 126
      %v3786 = vpop.permute.xlu0 %3785
      %3787 = vrot.lane.b32.xlu0 %v3750, 126
      %v3788 = vpop.permute.xlu0 %3787
      %3789 = vrot.lane.b32.xlu0 %v3751, 126
      %v3790 = vpop.permute.xlu0 %3789
      %3791 = vrot.lane.b32.xlu0 %v3752, 126
      %v3792 = vpop.permute.xlu0 %3791
      %3793 = vrot.lane.b32.xlu0 %v3753, 126
      %v3794 = vpop.permute.xlu0 %3793
      %3795 = vrot.lane.b32.xlu0 %v3754, 126
      %v3796 = vpop.permute.xlu0 %3795
      %3797 = vrot.lane.b32.xlu0 %v3755, 126
      %v3798 = vpop.permute.xlu0 %3797
      %3799 = vrot.lane.b32.xlu0 %v3756, 126
      %v3800 = vpop.permute.xlu0 %3799
      %3801 = vrot.lane.b32.xlu0 %v3757, 126
      %v3802 = vpop.permute.xlu0 %3801
      %3803 = vrot.lane.b32.xlu0 %v3758, 126
      %v3804 = vpop.permute.xlu0 %3803
      %3805 = vrot.lane.b32.xlu0 %v3759, 126
      %v3806 = vpop.permute.xlu0 %3805
      %3807 = vrot.lane.b32.xlu0 %v3760, 126
      %v3808 = vpop.permute.xlu0 %3807
      %v3825 = vcombine.low %v3778, %v3786
      %v3826 = vcombine.high %v3778, %v3786
      %v3828 = vunpack.c.l.s4 1983009808
      %v3829 = vunpack.c.0.s8 %v3828
      %v3830 = vlaneseq
      %v3831 = vshrl.u32 %v3830, 7
      %v3832 = vsub.s32 %v3829, %v3831
      %v3833 = vrot.slane %v3825, %v3832
      %v3835 = vunpack.c.l.s4 1983009808
      %v3836 = vunpack.c.0.s8 %v3835
      %v3837 = vlaneseq
      %v3838 = vshrl.u32 %v3837, 7
      %v3839 = vsub.s32 %v3836, %v3838
      %v3840 = vrot.slane %v3826, %v3839
      %v3841 = vcombine.low %v3782, %v3790
      %v3842 = vcombine.high %v3782, %v3790
      %v3844 = vunpack.c.l.s4 1983009808
      %v3845 = vunpack.c.0.s8 %v3844
      %v3846 = vlaneseq
      %v3847 = vshrl.u32 %v3846, 7
      %v3848 = vsub.s32 %v3845, %v3847
      %v3849 = vrot.slane %v3841, %v3848
      %v3851 = vunpack.c.l.s4 1983009808
      %v3852 = vunpack.c.0.s8 %v3851
      %v3853 = vlaneseq
      %v3854 = vshrl.u32 %v3853, 7
      %v3855 = vsub.s32 %v3852, %v3854
      %v3856 = vrot.slane %v3842, %v3855
      %v3857 = vcombine.low %v3794, %v3802
      %v3858 = vcombine.high %v3794, %v3802
      %v3860 = vunpack.c.l.s4 1983009808
      %v3861 = vunpack.c.0.s8 %v3860
      %v3862 = vlaneseq
      %v3863 = vshrl.u32 %v3862, 7
      %v3864 = vsub.s32 %v3861, %v3863
      %v3865 = vrot.slane %v3857, %v3864
      %v3867 = vunpack.c.l.s4 1983009808
      %v3868 = vunpack.c.0.s8 %v3867
      %v3869 = vlaneseq
      %v3870 = vshrl.u32 %v3869, 7
      %v3871 = vsub.s32 %v3868, %v3870
      %v3872 = vrot.slane %v3858, %v3871
      %v3873 = vcombine.low %v3798, %v3806
      %v3874 = vcombine.high %v3798, %v3806
      %v3876 = vunpack.c.l.s4 1983009808
      %v3877 = vunpack.c.0.s8 %v3876
      %v3878 = vlaneseq
      %v3879 = vshrl.u32 %v3878, 7
      %v3880 = vsub.s32 %v3877, %v3879
      %v3881 = vrot.slane %v3873, %v3880
      %v3883 = vunpack.c.l.s4 1983009808
      %v3884 = vunpack.c.0.s8 %v3883
      %v3885 = vlaneseq
      %v3886 = vshrl.u32 %v3885, 7
      %v3887 = vsub.s32 %v3884, %v3886
      %v3888 = vrot.slane %v3874, %v3887
      %v3889 = vcombine.low %v3833, %v3849
      %v3890 = vcombine.high %v3833, %v3849
      %v3892 = vunpack.c.l.s4 1934713408
      %v3893 = vunpack.c.0.s8 %v3892
      %v3894 = vlaneseq
      %v3895 = vshrl.u32 %v3894, 7
      %v3896 = vsub.s32 %v3893, %v3895
      %v3897 = vrot.slane %v3889, %v3896
      %v3899 = vunpack.c.l.s4 1934713408
      %v3900 = vunpack.c.0.s8 %v3899
      %v3901 = vlaneseq
      %v3902 = vshrl.u32 %v3901, 7
      %v3903 = vsub.s32 %v3900, %v3902
      %v3904 = vrot.slane %v3890, %v3903
      %v3905 = vcombine.low %v3840, %v3856
      %v3906 = vcombine.high %v3840, %v3856
      %v3908 = vunpack.c.l.s4 1934713408
      %v3909 = vunpack.c.0.s8 %v3908
      %v3910 = vlaneseq
      %v3911 = vshrl.u32 %v3910, 7
      %v3912 = vsub.s32 %v3909, %v3911
      %v3913 = vrot.slane %v3905, %v3912
      %v3915 = vunpack.c.l.s4 1934713408
      %v3916 = vunpack.c.0.s8 %v3915
      %v3917 = vlaneseq
      %v3918 = vshrl.u32 %v3917, 7
      %v3919 = vsub.s32 %v3916, %v3918
      %v3920 = vrot.slane %v3906, %v3919
      %v3921 = vcombine.low %v3865, %v3881
      %v3922 = vcombine.high %v3865, %v3881
      %v3924 = vunpack.c.l.s4 1934713408
      %v3925 = vunpack.c.0.s8 %v3924
      %v3926 = vlaneseq
      %v3927 = vshrl.u32 %v3926, 7
      %v3928 = vsub.s32 %v3925, %v3927
      %v3929 = vrot.slane %v3921, %v3928
      %v3931 = vunpack.c.l.s4 1934713408
      %v3932 = vunpack.c.0.s8 %v3931
      %v3933 = vlaneseq
      %v3934 = vshrl.u32 %v3933, 7
      %v3935 = vsub.s32 %v3932, %v3934
      %v3936 = vrot.slane %v3922, %v3935
      %v3937 = vcombine.low %v3872, %v3888
      %v3938 = vcombine.high %v3872, %v3888
      %v3940 = vunpack.c.l.s4 1934713408
      %v3941 = vunpack.c.0.s8 %v3940
      %v3942 = vlaneseq
      %v3943 = vshrl.u32 %v3942, 7
      %v3944 = vsub.s32 %v3941, %v3943
      %v3945 = vrot.slane %v3937, %v3944
      %v3947 = vunpack.c.l.s4 1934713408
      %v3948 = vunpack.c.0.s8 %v3947
      %v3949 = vlaneseq
      %v3950 = vshrl.u32 %v3949, 7
      %v3951 = vsub.s32 %v3948, %v3950
      %v3952 = vrot.slane %v3938, %v3951
      %v3953 = vcombine.low %v3897, %v3929
      %v3954 = vcombine.high %v3897, %v3929
      %v3955 = vcombine.low %v3904, %v3936
      %v3956 = vcombine.high %v3904, %v3936
      %v3957 = vcombine.low %v3913, %v3945
      %v3958 = vcombine.high %v3913, %v3945
      %v3959 = vcombine.low %v3920, %v3952
      %v3960 = vcombine.high %v3920, %v3952
      %v3961 = vcombine.low %v3780, %v3788
      %v3962 = vcombine.high %v3780, %v3788
      %v3964 = vunpack.c.l.s4 1983009808
      %v3965 = vunpack.c.0.s8 %v3964
      %v3966 = vlaneseq
      %v3967 = vshrl.u32 %v3966, 7
      %v3968 = vsub.s32 %v3965, %v3967
      %v3969 = vrot.slane %v3961, %v3968
      %v3971 = vunpack.c.l.s4 1983009808
      %v3972 = vunpack.c.0.s8 %v3971
      %v3973 = vlaneseq
      %v3974 = vshrl.u32 %v3973, 7
      %v3975 = vsub.s32 %v3972, %v3974
      %v3976 = vrot.slane %v3962, %v3975
      %v3977 = vcombine.low %v3784, %v3792
      %v3978 = vcombine.high %v3784, %v3792
      %v3980 = vunpack.c.l.s4 1983009808
      %v3981 = vunpack.c.0.s8 %v3980
      %v3982 = vlaneseq
      %v3983 = vshrl.u32 %v3982, 7
      %v3984 = vsub.s32 %v3981, %v3983
      %v3985 = vrot.slane %v3977, %v3984
      %v3987 = vunpack.c.l.s4 1983009808
      %v3988 = vunpack.c.0.s8 %v3987
      %v3989 = vlaneseq
      %v3990 = vshrl.u32 %v3989, 7
      %v3991 = vsub.s32 %v3988, %v3990
      %v3992 = vrot.slane %v3978, %v3991
      %v3993 = vcombine.low %v3796, %v3804
      %v3994 = vcombine.high %v3796, %v3804
      %v3996 = vunpack.c.l.s4 1983009808
      %v3997 = vunpack.c.0.s8 %v3996
      %v3998 = vlaneseq
      %v3999 = vshrl.u32 %v3998, 7
      %v4000 = vsub.s32 %v3997, %v3999
      %v4001 = vrot.slane %v3993, %v4000
      %v4003 = vunpack.c.l.s4 1983009808
      %v4004 = vunpack.c.0.s8 %v4003
      %v4005 = vlaneseq
      %v4006 = vshrl.u32 %v4005, 7
      %v4007 = vsub.s32 %v4004, %v4006
      %v4008 = vrot.slane %v3994, %v4007
      %v4009 = vcombine.low %v3800, %v3808
      %v4010 = vcombine.high %v3800, %v3808
      %v4012 = vunpack.c.l.s4 1983009808
      %v4013 = vunpack.c.0.s8 %v4012
      %v4014 = vlaneseq
      %v4015 = vshrl.u32 %v4014, 7
      %v4016 = vsub.s32 %v4013, %v4015
      %v4017 = vrot.slane %v4009, %v4016
      %v4019 = vunpack.c.l.s4 1983009808
      %v4020 = vunpack.c.0.s8 %v4019
      %v4021 = vlaneseq
      %v4022 = vshrl.u32 %v4021, 7
      %v4023 = vsub.s32 %v4020, %v4022
      %v4024 = vrot.slane %v4010, %v4023
      %v4025 = vcombine.low %v3969, %v3985
      %v4026 = vcombine.high %v3969, %v3985
      %v4028 = vunpack.c.l.s4 1934713408
      %v4029 = vunpack.c.0.s8 %v4028
      %v4030 = vlaneseq
      %v4031 = vshrl.u32 %v4030, 7
      %v4032 = vsub.s32 %v4029, %v4031
      %v4033 = vrot.slane %v4025, %v4032
      %v4035 = vunpack.c.l.s4 1934713408
      %v4036 = vunpack.c.0.s8 %v4035
      %v4037 = vlaneseq
      %v4038 = vshrl.u32 %v4037, 7
      %v4039 = vsub.s32 %v4036, %v4038
      %v4040 = vrot.slane %v4026, %v4039
      %v4041 = vcombine.low %v3976, %v3992
      %v4042 = vcombine.high %v3976, %v3992
      %v4044 = vunpack.c.l.s4 1934713408
      %v4045 = vunpack.c.0.s8 %v4044
      %v4046 = vlaneseq
      %v4047 = vshrl.u32 %v4046, 7
      %v4048 = vsub.s32 %v4045, %v4047
      %v4049 = vrot.slane %v4041, %v4048
      %v4051 = vunpack.c.l.s4 1934713408
      %v4052 = vunpack.c.0.s8 %v4051
      %v4053 = vlaneseq
      %v4054 = vshrl.u32 %v4053, 7
      %v4055 = vsub.s32 %v4052, %v4054
      %v4056 = vrot.slane %v4042, %v4055
      %v4057 = vcombine.low %v4001, %v4017
      %v4058 = vcombine.high %v4001, %v4017
      %v4060 = vunpack.c.l.s4 1934713408
      %v4061 = vunpack.c.0.s8 %v4060
      %v4062 = vlaneseq
      %v4063 = vshrl.u32 %v4062, 7
      %v4064 = vsub.s32 %v4061, %v4063
      %v4065 = vrot.slane %v4057, %v4064
      %v4067 = vunpack.c.l.s4 1934713408
      %v4068 = vunpack.c.0.s8 %v4067
      %v4069 = vlaneseq
      %v4070 = vshrl.u32 %v4069, 7
      %v4071 = vsub.s32 %v4068, %v4070
      %v4072 = vrot.slane %v4058, %v4071
      %v4073 = vcombine.low %v4008, %v4024
      %v4074 = vcombine.high %v4008, %v4024
      %v4076 = vunpack.c.l.s4 1934713408
      %v4077 = vunpack.c.0.s8 %v4076
      %v4078 = vlaneseq
      %v4079 = vshrl.u32 %v4078, 7
      %v4080 = vsub.s32 %v4077, %v4079
      %v4081 = vrot.slane %v4073, %v4080
      %v4083 = vunpack.c.l.s4 1934713408
      %v4084 = vunpack.c.0.s8 %v4083
      %v4085 = vlaneseq
      %v4086 = vshrl.u32 %v4085, 7
      %v4087 = vsub.s32 %v4084, %v4086
      %v4088 = vrot.slane %v4074, %v4087
      %v4089 = vcombine.low %v4033, %v4065
      %v4090 = vcombine.high %v4033, %v4065
      %v4091 = vcombine.low %v4040, %v4072
      %v4092 = vcombine.high %v4040, %v4072
      %v4093 = vcombine.low %v4049, %v4081
      %v4094 = vcombine.high %v4049, %v4081
      %v4095 = vcombine.low %v4056, %v4088
      %v4096 = vcombine.high %v4056, %v4088
      %4098 = vrot.lane.b32.xlu0 %v3954, 16
      %v4099 = vpop.permute.xlu0 %4098
      %4102 = vrot.lane.b32.xlu0 %v3955, 32
      %v4103 = vpop.permute.xlu0 %4102
      %4106 = vrot.lane.b32.xlu0 %v3956, 48
      %v4107 = vpop.permute.xlu0 %4106
      %4110 = vrot.lane.b32.xlu0 %v3957, 64
      %v4111 = vpop.permute.xlu0 %4110
      %4114 = vrot.lane.b32.xlu0 %v3958, 80
      %v4115 = vpop.permute.xlu0 %4114
      %4118 = vrot.lane.b32.xlu0 %v3959, 96
      %v4119 = vpop.permute.xlu0 %4118
      %4122 = vrot.lane.b32.xlu0 %v3960, 112
      %v4123 = vpop.permute.xlu0 %4122
      %4126 = vrot.lane.b32.xlu0 %v4090, 16
      %v4127 = vpop.permute.xlu0 %4126
      %4130 = vrot.lane.b32.xlu0 %v4091, 32
      %v4131 = vpop.permute.xlu0 %4130
      %4134 = vrot.lane.b32.xlu0 %v4092, 48
      %v4135 = vpop.permute.xlu0 %4134
      %4138 = vrot.lane.b32.xlu0 %v4093, 64
      %v4139 = vpop.permute.xlu0 %4138
      %4142 = vrot.lane.b32.xlu0 %v4094, 80
      %v4143 = vpop.permute.xlu0 %4142
      %4146 = vrot.lane.b32.xlu0 %v4095, 96
      %v4147 = vpop.permute.xlu0 %4146
      %4150 = vrot.lane.b32.xlu0 %v4096, 112
      %v4151 = vpop.permute.xlu0 %4150
      %v4153 = vsel %vm497, %v3953, %v4099
      %v4154 = vsel %vm499, %v4153, %v4103
      %v4155 = vsel %vm501, %v4154, %v4107
      %v4156 = vsel %vm503, %v4155, %v4111
      %v4157 = vsel %vm505, %v4156, %v4115
      %v4158 = vsel %vm507, %v4157, %v4119
      %v4159 = vsel %vm509, %v4158, %v4123
      %v4160 = vsel %vm497, %v4089, %v4127
      %v4161 = vsel %vm499, %v4160, %v4131
      %v4162 = vsel %vm501, %v4161, %v4135
      %v4163 = vsel %vm503, %v4162, %v4139
      %v4164 = vsel %vm505, %v4163, %v4143
      %v4165 = vsel %vm507, %v4164, %v4147
      %v4166 = vsel %vm509, %v4165, %v4151
      %4167 = vst [vmem:[#allocation5 + $0x20] sm:$0xff] %v4159
      %4168 = vst [vmem:[#allocation5 + $0x28] sm:$0xff] %v4166
      %v4169 = vld [vmem:[#allocation4 + $0x1] sm:$0xff]
      %v4170 = vld [vmem:[#allocation4 + $0x9] sm:$0xff]
      %v4171 = vld [vmem:[#allocation4 + $0x19] sm:$0xff]
      %v4172 = vld [vmem:[#allocation4 + $0x21] sm:$0xff]
      %v4173 = vld [vmem:[#allocation4 + $0x31] sm:$0xff]
      %v4174 = vld [vmem:[#allocation4 + $0x39] sm:$0xff]
      %v4175 = vld [vmem:[#allocation4 + $0x49] sm:$0xff]
      %v4176 = vld [vmem:[#allocation4 + $0x51] sm:$0xff]
      %v4177 = vld [vmem:[#allocation4 + $0x61] sm:$0xff]
      %v4178 = vld [vmem:[#allocation4 + $0x69] sm:$0xff]
      %v4179 = vld [vmem:[#allocation4 + $0x79] sm:$0xff]
      %v4180 = vld [vmem:[#allocation4 + $0x81] sm:$0xff]
      %v4181 = vld [vmem:[#allocation4 + $0x91] sm:$0xff]
      %v4182 = vld [vmem:[#allocation4 + $0x99] sm:$0xff]
      %v4183 = vld [vmem:[#allocation4 + $0xa9] sm:$0xff]
      %v4184 = vld [vmem:[#allocation4 + $0xb1] sm:$0xff]
      %v4185 = vcombine.low %v4169, %v4173
      %v4186 = vcombine.high %v4169, %v4173
      %v4188 = vunpack.c.l.s4 1983009808
      %v4189 = vunpack.c.0.s8 %v4188
      %v4190 = vlaneseq
      %v4191 = vshrl.u32 %v4190, 7
      %v4192 = vsub.s32 %v4189, %v4191
      %v4193 = vrot.slane %v4185, %v4192
      %v4195 = vunpack.c.l.s4 1983009808
      %v4196 = vunpack.c.0.s8 %v4195
      %v4197 = vlaneseq
      %v4198 = vshrl.u32 %v4197, 7
      %v4199 = vsub.s32 %v4196, %v4198
      %v4200 = vrot.slane %v4186, %v4199
      %v4201 = vcombine.low %v4171, %v4175
      %v4202 = vcombine.high %v4171, %v4175
      %v4204 = vunpack.c.l.s4 1983009808
      %v4205 = vunpack.c.0.s8 %v4204
      %v4206 = vlaneseq
      %v4207 = vshrl.u32 %v4206, 7
      %v4208 = vsub.s32 %v4205, %v4207
      %v4209 = vrot.slane %v4201, %v4208
      %v4211 = vunpack.c.l.s4 1983009808
      %v4212 = vunpack.c.0.s8 %v4211
      %v4213 = vlaneseq
      %v4214 = vshrl.u32 %v4213, 7
      %v4215 = vsub.s32 %v4212, %v4214
      %v4216 = vrot.slane %v4202, %v4215
      %v4217 = vcombine.low %v4177, %v4181
      %v4218 = vcombine.high %v4177, %v4181
      %v4220 = vunpack.c.l.s4 1983009808
      %v4221 = vunpack.c.0.s8 %v4220
      %v4222 = vlaneseq
      %v4223 = vshrl.u32 %v4222, 7
      %v4224 = vsub.s32 %v4221, %v4223
      %v4225 = vrot.slane %v4217, %v4224
      %v4227 = vunpack.c.l.s4 1983009808
      %v4228 = vunpack.c.0.s8 %v4227
      %v4229 = vlaneseq
      %v4230 = vshrl.u32 %v4229, 7
      %v4231 = vsub.s32 %v4228, %v4230
      %v4232 = vrot.slane %v4218, %v4231
      %v4233 = vcombine.low %v4179, %v4183
      %v4234 = vcombine.high %v4179, %v4183
      %v4236 = vunpack.c.l.s4 1983009808
      %v4237 = vunpack.c.0.s8 %v4236
      %v4238 = vlaneseq
      %v4239 = vshrl.u32 %v4238, 7
      %v4240 = vsub.s32 %v4237, %v4239
      %v4241 = vrot.slane %v4233, %v4240
      %v4243 = vunpack.c.l.s4 1983009808
      %v4244 = vunpack.c.0.s8 %v4243
      %v4245 = vlaneseq
      %v4246 = vshrl.u32 %v4245, 7
      %v4247 = vsub.s32 %v4244, %v4246
      %v4248 = vrot.slane %v4234, %v4247
      %v4249 = vcombine.low %v4193, %v4209
      %v4250 = vcombine.high %v4193, %v4209
      %v4252 = vunpack.c.l.s4 1934713408
      %v4253 = vunpack.c.0.s8 %v4252
      %v4254 = vlaneseq
      %v4255 = vshrl.u32 %v4254, 7
      %v4256 = vsub.s32 %v4253, %v4255
      %v4257 = vrot.slane %v4249, %v4256
      %v4259 = vunpack.c.l.s4 1934713408
      %v4260 = vunpack.c.0.s8 %v4259
      %v4261 = vlaneseq
      %v4262 = vshrl.u32 %v4261, 7
      %v4263 = vsub.s32 %v4260, %v4262
      %v4264 = vrot.slane %v4250, %v4263
      %v4265 = vcombine.low %v4200, %v4216
      %v4266 = vcombine.high %v4200, %v4216
      %v4268 = vunpack.c.l.s4 1934713408
      %v4269 = vunpack.c.0.s8 %v4268
      %v4270 = vlaneseq
      %v4271 = vshrl.u32 %v4270, 7
      %v4272 = vsub.s32 %v4269, %v4271
      %v4273 = vrot.slane %v4265, %v4272
      %v4275 = vunpack.c.l.s4 1934713408
      %v4276 = vunpack.c.0.s8 %v4275
      %v4277 = vlaneseq
      %v4278 = vshrl.u32 %v4277, 7
      %v4279 = vsub.s32 %v4276, %v4278
      %v4280 = vrot.slane %v4266, %v4279
      %v4281 = vcombine.low %v4225, %v4241
      %v4282 = vcombine.high %v4225, %v4241
      %v4284 = vunpack.c.l.s4 1934713408
      %v4285 = vunpack.c.0.s8 %v4284
      %v4286 = vlaneseq
      %v4287 = vshrl.u32 %v4286, 7
      %v4288 = vsub.s32 %v4285, %v4287
      %v4289 = vrot.slane %v4281, %v4288
      %v4291 = vunpack.c.l.s4 1934713408
      %v4292 = vunpack.c.0.s8 %v4291
      %v4293 = vlaneseq
      %v4294 = vshrl.u32 %v4293, 7
      %v4295 = vsub.s32 %v4292, %v4294
      %v4296 = vrot.slane %v4282, %v4295
      %v4297 = vcombine.low %v4232, %v4248
      %v4298 = vcombine.high %v4232, %v4248
      %v4300 = vunpack.c.l.s4 1934713408
      %v4301 = vunpack.c.0.s8 %v4300
      %v4302 = vlaneseq
      %v4303 = vshrl.u32 %v4302, 7
      %v4304 = vsub.s32 %v4301, %v4303
      %v4305 = vrot.slane %v4297, %v4304
      %v4307 = vunpack.c.l.s4 1934713408
      %v4308 = vunpack.c.0.s8 %v4307
      %v4309 = vlaneseq
      %v4310 = vshrl.u32 %v4309, 7
      %v4311 = vsub.s32 %v4308, %v4310
      %v4312 = vrot.slane %v4298, %v4311
      %v4313 = vcombine.low %v4257, %v4289
      %v4314 = vcombine.high %v4257, %v4289
      %v4315 = vcombine.low %v4264, %v4296
      %v4316 = vcombine.high %v4264, %v4296
      %v4317 = vcombine.low %v4273, %v4305
      %v4318 = vcombine.high %v4273, %v4305
      %v4319 = vcombine.low %v4280, %v4312
      %v4320 = vcombine.high %v4280, %v4312
      %v4321 = vcombine.low %v4170, %v4174
      %v4322 = vcombine.high %v4170, %v4174
      %v4324 = vunpack.c.l.s4 1983009808
      %v4325 = vunpack.c.0.s8 %v4324
      %v4326 = vlaneseq
      %v4327 = vshrl.u32 %v4326, 7
      %v4328 = vsub.s32 %v4325, %v4327
      %v4329 = vrot.slane %v4321, %v4328
      %v4331 = vunpack.c.l.s4 1983009808
      %v4332 = vunpack.c.0.s8 %v4331
      %v4333 = vlaneseq
      %v4334 = vshrl.u32 %v4333, 7
      %v4335 = vsub.s32 %v4332, %v4334
      %v4336 = vrot.slane %v4322, %v4335
      %v4337 = vcombine.low %v4172, %v4176
      %v4338 = vcombine.high %v4172, %v4176
      %v4340 = vunpack.c.l.s4 1983009808
      %v4341 = vunpack.c.0.s8 %v4340
      %v4342 = vlaneseq
      %v4343 = vshrl.u32 %v4342, 7
      %v4344 = vsub.s32 %v4341, %v4343
      %v4345 = vrot.slane %v4337, %v4344
      %v4347 = vunpack.c.l.s4 1983009808
      %v4348 = vunpack.c.0.s8 %v4347
      %v4349 = vlaneseq
      %v4350 = vshrl.u32 %v4349, 7
      %v4351 = vsub.s32 %v4348, %v4350
      %v4352 = vrot.slane %v4338, %v4351
      %v4353 = vcombine.low %v4178, %v4182
      %v4354 = vcombine.high %v4178, %v4182
      %v4356 = vunpack.c.l.s4 1983009808
      %v4357 = vunpack.c.0.s8 %v4356
      %v4358 = vlaneseq
      %v4359 = vshrl.u32 %v4358, 7
      %v4360 = vsub.s32 %v4357, %v4359
      %v4361 = vrot.slane %v4353, %v4360
      %v4363 = vunpack.c.l.s4 1983009808
      %v4364 = vunpack.c.0.s8 %v4363
      %v4365 = vlaneseq
      %v4366 = vshrl.u32 %v4365, 7
      %v4367 = vsub.s32 %v4364, %v4366
      %v4368 = vrot.slane %v4354, %v4367
      %v4369 = vcombine.low %v4180, %v4184
      %v4370 = vcombine.high %v4180, %v4184
      %v4372 = vunpack.c.l.s4 1983009808
      %v4373 = vunpack.c.0.s8 %v4372
      %v4374 = vlaneseq
      %v4375 = vshrl.u32 %v4374, 7
      %v4376 = vsub.s32 %v4373, %v4375
      %v4377 = vrot.slane %v4369, %v4376
      %v4379 = vunpack.c.l.s4 1983009808
      %v4380 = vunpack.c.0.s8 %v4379
      %v4381 = vlaneseq
      %v4382 = vshrl.u32 %v4381, 7
      %v4383 = vsub.s32 %v4380, %v4382
      %v4384 = vrot.slane %v4370, %v4383
      %v4385 = vcombine.low %v4329, %v4345
      %v4386 = vcombine.high %v4329, %v4345
      %v4388 = vunpack.c.l.s4 1934713408
      %v4389 = vunpack.c.0.s8 %v4388
      %v4390 = vlaneseq
      %v4391 = vshrl.u32 %v4390, 7
      %v4392 = vsub.s32 %v4389, %v4391
      %v4393 = vrot.slane %v4385, %v4392
      %v4395 = vunpack.c.l.s4 1934713408
      %v4396 = vunpack.c.0.s8 %v4395
      %v4397 = vlaneseq
      %v4398 = vshrl.u32 %v4397, 7
      %v4399 = vsub.s32 %v4396, %v4398
      %v4400 = vrot.slane %v4386, %v4399
      %v4401 = vcombine.low %v4336, %v4352
      %v4402 = vcombine.high %v4336, %v4352
      %v4404 = vunpack.c.l.s4 1934713408
      %v4405 = vunpack.c.0.s8 %v4404
      %v4406 = vlaneseq
      %v4407 = vshrl.u32 %v4406, 7
      %v4408 = vsub.s32 %v4405, %v4407
      %v4409 = vrot.slane %v4401, %v4408
      %v4411 = vunpack.c.l.s4 1934713408
      %v4412 = vunpack.c.0.s8 %v4411
      %v4413 = vlaneseq
      %v4414 = vshrl.u32 %v4413, 7
      %v4415 = vsub.s32 %v4412, %v4414
      %v4416 = vrot.slane %v4402, %v4415
      %v4417 = vcombine.low %v4361, %v4377
      %v4418 = vcombine.high %v4361, %v4377
      %v4420 = vunpack.c.l.s4 1934713408
      %v4421 = vunpack.c.0.s8 %v4420
      %v4422 = vlaneseq
      %v4423 = vshrl.u32 %v4422, 7
      %v4424 = vsub.s32 %v4421, %v4423
      %v4425 = vrot.slane %v4417, %v4424
      %v4427 = vunpack.c.l.s4 1934713408
      %v4428 = vunpack.c.0.s8 %v4427
      %v4429 = vlaneseq
      %v4430 = vshrl.u32 %v4429, 7
      %v4431 = vsub.s32 %v4428, %v4430
      %v4432 = vrot.slane %v4418, %v4431
      %v4433 = vcombine.low %v4368, %v4384
      %v4434 = vcombine.high %v4368, %v4384
      %v4436 = vunpack.c.l.s4 1934713408
      %v4437 = vunpack.c.0.s8 %v4436
      %v4438 = vlaneseq
      %v4439 = vshrl.u32 %v4438, 7
      %v4440 = vsub.s32 %v4437, %v4439
      %v4441 = vrot.slane %v4433, %v4440
      %v4443 = vunpack.c.l.s4 1934713408
      %v4444 = vunpack.c.0.s8 %v4443
      %v4445 = vlaneseq
      %v4446 = vshrl.u32 %v4445, 7
      %v4447 = vsub.s32 %v4444, %v4446
      %v4448 = vrot.slane %v4434, %v4447
      %v4449 = vcombine.low %v4393, %v4425
      %v4450 = vcombine.high %v4393, %v4425
      %v4451 = vcombine.low %v4400, %v4432
      %v4452 = vcombine.high %v4400, %v4432
      %v4453 = vcombine.low %v4409, %v4441
      %v4454 = vcombine.high %v4409, %v4441
      %v4455 = vcombine.low %v4416, %v4448
      %v4456 = vcombine.high %v4416, %v4448
      %4458 = vrot.lane.b32.xlu0 %v4314, 16
      %v4459 = vpop.permute.xlu0 %4458
      %4462 = vrot.lane.b32.xlu0 %v4315, 32
      %v4463 = vpop.permute.xlu0 %4462
      %4466 = vrot.lane.b32.xlu0 %v4316, 48
      %v4467 = vpop.permute.xlu0 %4466
      %4470 = vrot.lane.b32.xlu0 %v4317, 64
      %v4471 = vpop.permute.xlu0 %4470
      %4474 = vrot.lane.b32.xlu0 %v4318, 80
      %v4475 = vpop.permute.xlu0 %4474
      %4478 = vrot.lane.b32.xlu0 %v4319, 96
      %v4479 = vpop.permute.xlu0 %4478
      %4482 = vrot.lane.b32.xlu0 %v4320, 112
      %v4483 = vpop.permute.xlu0 %4482
      %4486 = vrot.lane.b32.xlu0 %v4450, 16
      %v4487 = vpop.permute.xlu0 %4486
      %4490 = vrot.lane.b32.xlu0 %v4451, 32
      %v4491 = vpop.permute.xlu0 %4490
      %4494 = vrot.lane.b32.xlu0 %v4452, 48
      %v4495 = vpop.permute.xlu0 %4494
      %4498 = vrot.lane.b32.xlu0 %v4453, 64
      %v4499 = vpop.permute.xlu0 %4498
      %4502 = vrot.lane.b32.xlu0 %v4454, 80
      %v4503 = vpop.permute.xlu0 %4502
      %4506 = vrot.lane.b32.xlu0 %v4455, 96
      %v4507 = vpop.permute.xlu0 %4506
      %4510 = vrot.lane.b32.xlu0 %v4456, 112
      %v4511 = vpop.permute.xlu0 %4510
      %v4513 = vsel %vm497, %v4313, %v4459
      %v4514 = vsel %vm499, %v4513, %v4463
      %v4515 = vsel %vm501, %v4514, %v4467
      %v4516 = vsel %vm503, %v4515, %v4471
      %v4517 = vsel %vm505, %v4516, %v4475
      %v4518 = vsel %vm507, %v4517, %v4479
      %v4519 = vsel %vm509, %v4518, %v4483
      %v4520 = vsel %vm497, %v4449, %v4487
      %v4521 = vsel %vm499, %v4520, %v4491
      %v4522 = vsel %vm501, %v4521, %v4495
      %v4523 = vsel %vm503, %v4522, %v4499
      %v4524 = vsel %vm505, %v4523, %v4503
      %v4525 = vsel %vm507, %v4524, %v4507
      %v4526 = vsel %vm509, %v4525, %v4511
      %4527 = vst [vmem:[#allocation5 + $0x30] sm:$0xff] %v4519
      %4528 = vst [vmem:[#allocation5 + $0x38] sm:$0xff] %v4526
      %v4529 = vld [vmem:[#allocation4 + $0x1] sm:$0xff]
      %v4530 = vld [vmem:[#allocation4 + $0x9] sm:$0xff]
      %v4531 = vld [vmem:[#allocation4 + $0x19] sm:$0xff]
      %v4532 = vld [vmem:[#allocation4 + $0x21] sm:$0xff]
      %v4533 = vld [vmem:[#allocation4 + $0x31] sm:$0xff]
      %v4534 = vld [vmem:[#allocation4 + $0x39] sm:$0xff]
      %v4535 = vld [vmem:[#allocation4 + $0x49] sm:$0xff]
      %v4536 = vld [vmem:[#allocation4 + $0x51] sm:$0xff]
      %v4537 = vld [vmem:[#allocation4 + $0x61] sm:$0xff]
      %v4538 = vld [vmem:[#allocation4 + $0x69] sm:$0xff]
      %v4539 = vld [vmem:[#allocation4 + $0x79] sm:$0xff]
      %v4540 = vld [vmem:[#allocation4 + $0x81] sm:$0xff]
      %v4541 = vld [vmem:[#allocation4 + $0x91] sm:$0xff]
      %v4542 = vld [vmem:[#allocation4 + $0x99] sm:$0xff]
      %v4543 = vld [vmem:[#allocation4 + $0xa9] sm:$0xff]
      %v4544 = vld [vmem:[#allocation4 + $0xb1] sm:$0xff]
      %4561 = vrot.lane.b32.xlu0 %v4529, 127
      %v4562 = vpop.permute.xlu0 %4561
      %4563 = vrot.lane.b32.xlu0 %v4530, 127
      %v4564 = vpop.permute.xlu0 %4563
      %4565 = vrot.lane.b32.xlu0 %v4531, 127
      %v4566 = vpop.permute.xlu0 %4565
      %4567 = vrot.lane.b32.xlu0 %v4532, 127
      %v4568 = vpop.permute.xlu0 %4567
      %4569 = vrot.lane.b32.xlu0 %v4533, 127
      %v4570 = vpop.permute.xlu0 %4569
      %4571 = vrot.lane.b32.xlu0 %v4534, 127
      %v4572 = vpop.permute.xlu0 %4571
      %4573 = vrot.lane.b32.xlu0 %v4535, 127
      %v4574 = vpop.permute.xlu0 %4573
      %4575 = vrot.lane.b32.xlu0 %v4536, 127
      %v4576 = vpop.permute.xlu0 %4575
      %4577 = vrot.lane.b32.xlu0 %v4537, 127
      %v4578 = vpop.permute.xlu0 %4577
      %4579 = vrot.lane.b32.xlu0 %v4538, 127
      %v4580 = vpop.permute.xlu0 %4579
      %4581 = vrot.lane.b32.xlu0 %v4539, 127
      %v4582 = vpop.permute.xlu0 %4581
      %4583 = vrot.lane.b32.xlu0 %v4540, 127
      %v4584 = vpop.permute.xlu0 %4583
      %4585 = vrot.lane.b32.xlu0 %v4541, 127
      %v4586 = vpop.permute.xlu0 %4585
      %4587 = vrot.lane.b32.xlu0 %v4542, 127
      %v4588 = vpop.permute.xlu0 %4587
      %4589 = vrot.lane.b32.xlu0 %v4543, 127
      %v4590 = vpop.permute.xlu0 %4589
      %4591 = vrot.lane.b32.xlu0 %v4544, 127
      %v4592 = vpop.permute.xlu0 %4591
      %v4609 = vcombine.low %v4562, %v4570
      %v4610 = vcombine.high %v4562, %v4570
      %v4612 = vunpack.c.l.s4 1983009808
      %v4613 = vunpack.c.0.s8 %v4612
      %v4614 = vlaneseq
      %v4615 = vshrl.u32 %v4614, 7
      %v4616 = vsub.s32 %v4613, %v4615
      %v4617 = vrot.slane %v4609, %v4616
      %v4619 = vunpack.c.l.s4 1983009808
      %v4620 = vunpack.c.0.s8 %v4619
      %v4621 = vlaneseq
      %v4622 = vshrl.u32 %v4621, 7
      %v4623 = vsub.s32 %v4620, %v4622
      %v4624 = vrot.slane %v4610, %v4623
      %v4625 = vcombine.low %v4566, %v4574
      %v4626 = vcombine.high %v4566, %v4574
      %v4628 = vunpack.c.l.s4 1983009808
      %v4629 = vunpack.c.0.s8 %v4628
      %v4630 = vlaneseq
      %v4631 = vshrl.u32 %v4630, 7
      %v4632 = vsub.s32 %v4629, %v4631
      %v4633 = vrot.slane %v4625, %v4632
      %v4635 = vunpack.c.l.s4 1983009808
      %v4636 = vunpack.c.0.s8 %v4635
      %v4637 = vlaneseq
      %v4638 = vshrl.u32 %v4637, 7
      %v4639 = vsub.s32 %v4636, %v4638
      %v4640 = vrot.slane %v4626, %v4639
      %v4641 = vcombine.low %v4578, %v4586
      %v4642 = vcombine.high %v4578, %v4586
      %v4644 = vunpack.c.l.s4 1983009808
      %v4645 = vunpack.c.0.s8 %v4644
      %v4646 = vlaneseq
      %v4647 = vshrl.u32 %v4646, 7
      %v4648 = vsub.s32 %v4645, %v4647
      %v4649 = vrot.slane %v4641, %v4648
      %v4651 = vunpack.c.l.s4 1983009808
      %v4652 = vunpack.c.0.s8 %v4651
      %v4653 = vlaneseq
      %v4654 = vshrl.u32 %v4653, 7
      %v4655 = vsub.s32 %v4652, %v4654
      %v4656 = vrot.slane %v4642, %v4655
      %v4657 = vcombine.low %v4582, %v4590
      %v4658 = vcombine.high %v4582, %v4590
      %v4660 = vunpack.c.l.s4 1983009808
      %v4661 = vunpack.c.0.s8 %v4660
      %v4662 = vlaneseq
      %v4663 = vshrl.u32 %v4662, 7
      %v4664 = vsub.s32 %v4661, %v4663
      %v4665 = vrot.slane %v4657, %v4664
      %v4667 = vunpack.c.l.s4 1983009808
      %v4668 = vunpack.c.0.s8 %v4667
      %v4669 = vlaneseq
      %v4670 = vshrl.u32 %v4669, 7
      %v4671 = vsub.s32 %v4668, %v4670
      %v4672 = vrot.slane %v4658, %v4671
      %v4673 = vcombine.low %v4617, %v4633
      %v4674 = vcombine.high %v4617, %v4633
      %v4676 = vunpack.c.l.s4 1934713408
      %v4677 = vunpack.c.0.s8 %v4676
      %v4678 = vlaneseq
      %v4679 = vshrl.u32 %v4678, 7
      %v4680 = vsub.s32 %v4677, %v4679
      %v4681 = vrot.slane %v4673, %v4680
      %v4683 = vunpack.c.l.s4 1934713408
      %v4684 = vunpack.c.0.s8 %v4683
      %v4685 = vlaneseq
      %v4686 = vshrl.u32 %v4685, 7
      %v4687 = vsub.s32 %v4684, %v4686
      %v4688 = vrot.slane %v4674, %v4687
      %v4689 = vcombine.low %v4624, %v4640
      %v4690 = vcombine.high %v4624, %v4640
      %v4692 = vunpack.c.l.s4 1934713408
      %v4693 = vunpack.c.0.s8 %v4692
      %v4694 = vlaneseq
      %v4695 = vshrl.u32 %v4694, 7
      %v4696 = vsub.s32 %v4693, %v4695
      %v4697 = vrot.slane %v4689, %v4696
      %v4699 = vunpack.c.l.s4 1934713408
      %v4700 = vunpack.c.0.s8 %v4699
      %v4701 = vlaneseq
      %v4702 = vshrl.u32 %v4701, 7
      %v4703 = vsub.s32 %v4700, %v4702
      %v4704 = vrot.slane %v4690, %v4703
      %v4705 = vcombine.low %v4649, %v4665
      %v4706 = vcombine.high %v4649, %v4665
      %v4708 = vunpack.c.l.s4 1934713408
      %v4709 = vunpack.c.0.s8 %v4708
      %v4710 = vlaneseq
      %v4711 = vshrl.u32 %v4710, 7
      %v4712 = vsub.s32 %v4709, %v4711
      %v4713 = vrot.slane %v4705, %v4712
      %v4715 = vunpack.c.l.s4 1934713408
      %v4716 = vunpack.c.0.s8 %v4715
      %v4717 = vlaneseq
      %v4718 = vshrl.u32 %v4717, 7
      %v4719 = vsub.s32 %v4716, %v4718
      %v4720 = vrot.slane %v4706, %v4719
      %v4721 = vcombine.low %v4656, %v4672
      %v4722 = vcombine.high %v4656, %v4672
      %v4724 = vunpack.c.l.s4 1934713408
      %v4725 = vunpack.c.0.s8 %v4724
      %v4726 = vlaneseq
      %v4727 = vshrl.u32 %v4726, 7
      %v4728 = vsub.s32 %v4725, %v4727
      %v4729 = vrot.slane %v4721, %v4728
      %v4731 = vunpack.c.l.s4 1934713408
      %v4732 = vunpack.c.0.s8 %v4731
      %v4733 = vlaneseq
      %v4734 = vshrl.u32 %v4733, 7
      %v4735 = vsub.s32 %v4732, %v4734
      %v4736 = vrot.slane %v4722, %v4735
      %v4737 = vcombine.low %v4681, %v4713
      %v4738 = vcombine.high %v4681, %v4713
      %v4739 = vcombine.low %v4688, %v4720
      %v4740 = vcombine.high %v4688, %v4720
      %v4741 = vcombine.low %v4697, %v4729
      %v4742 = vcombine.high %v4697, %v4729
      %v4743 = vcombine.low %v4704, %v4736
      %v4744 = vcombine.high %v4704, %v4736
      %v4745 = vcombine.low %v4564, %v4572
      %v4746 = vcombine.high %v4564, %v4572
      %v4748 = vunpack.c.l.s4 1983009808
      %v4749 = vunpack.c.0.s8 %v4748
      %v4750 = vlaneseq
      %v4751 = vshrl.u32 %v4750, 7
      %v4752 = vsub.s32 %v4749, %v4751
      %v4753 = vrot.slane %v4745, %v4752
      %v4755 = vunpack.c.l.s4 1983009808
      %v4756 = vunpack.c.0.s8 %v4755
      %v4757 = vlaneseq
      %v4758 = vshrl.u32 %v4757, 7
      %v4759 = vsub.s32 %v4756, %v4758
      %v4760 = vrot.slane %v4746, %v4759
      %v4761 = vcombine.low %v4568, %v4576
      %v4762 = vcombine.high %v4568, %v4576
      %v4764 = vunpack.c.l.s4 1983009808
      %v4765 = vunpack.c.0.s8 %v4764
      %v4766 = vlaneseq
      %v4767 = vshrl.u32 %v4766, 7
      %v4768 = vsub.s32 %v4765, %v4767
      %v4769 = vrot.slane %v4761, %v4768
      %v4771 = vunpack.c.l.s4 1983009808
      %v4772 = vunpack.c.0.s8 %v4771
      %v4773 = vlaneseq
      %v4774 = vshrl.u32 %v4773, 7
      %v4775 = vsub.s32 %v4772, %v4774
      %v4776 = vrot.slane %v4762, %v4775
      %v4777 = vcombine.low %v4580, %v4588
      %v4778 = vcombine.high %v4580, %v4588
      %v4780 = vunpack.c.l.s4 1983009808
      %v4781 = vunpack.c.0.s8 %v4780
      %v4782 = vlaneseq
      %v4783 = vshrl.u32 %v4782, 7
      %v4784 = vsub.s32 %v4781, %v4783
      %v4785 = vrot.slane %v4777, %v4784
      %v4787 = vunpack.c.l.s4 1983009808
      %v4788 = vunpack.c.0.s8 %v4787
      %v4789 = vlaneseq
      %v4790 = vshrl.u32 %v4789, 7
      %v4791 = vsub.s32 %v4788, %v4790
      %v4792 = vrot.slane %v4778, %v4791
      %v4793 = vcombine.low %v4584, %v4592
      %v4794 = vcombine.high %v4584, %v4592
      %v4796 = vunpack.c.l.s4 1983009808
      %v4797 = vunpack.c.0.s8 %v4796
      %v4798 = vlaneseq
      %v4799 = vshrl.u32 %v4798, 7
      %v4800 = vsub.s32 %v4797, %v4799
      %v4801 = vrot.slane %v4793, %v4800
      %v4803 = vunpack.c.l.s4 1983009808
      %v4804 = vunpack.c.0.s8 %v4803
      %v4805 = vlaneseq
      %v4806 = vshrl.u32 %v4805, 7
      %v4807 = vsub.s32 %v4804, %v4806
      %v4808 = vrot.slane %v4794, %v4807
      %v4809 = vcombine.low %v4753, %v4769
      %v4810 = vcombine.high %v4753, %v4769
      %v4812 = vunpack.c.l.s4 1934713408
      %v4813 = vunpack.c.0.s8 %v4812
      %v4814 = vlaneseq
      %v4815 = vshrl.u32 %v4814, 7
      %v4816 = vsub.s32 %v4813, %v4815
      %v4817 = vrot.slane %v4809, %v4816
      %v4819 = vunpack.c.l.s4 1934713408
      %v4820 = vunpack.c.0.s8 %v4819
      %v4821 = vlaneseq
      %v4822 = vshrl.u32 %v4821, 7
      %v4823 = vsub.s32 %v4820, %v4822
      %v4824 = vrot.slane %v4810, %v4823
      %v4825 = vcombine.low %v4760, %v4776
      %v4826 = vcombine.high %v4760, %v4776
      %v4828 = vunpack.c.l.s4 1934713408
      %v4829 = vunpack.c.0.s8 %v4828
      %v4830 = vlaneseq
      %v4831 = vshrl.u32 %v4830, 7
      %v4832 = vsub.s32 %v4829, %v4831
      %v4833 = vrot.slane %v4825, %v4832
      %v4835 = vunpack.c.l.s4 1934713408
      %v4836 = vunpack.c.0.s8 %v4835
      %v4837 = vlaneseq
      %v4838 = vshrl.u32 %v4837, 7
      %v4839 = vsub.s32 %v4836, %v4838
      %v4840 = vrot.slane %v4826, %v4839
      %v4841 = vcombine.low %v4785, %v4801
      %v4842 = vcombine.high %v4785, %v4801
      %v4844 = vunpack.c.l.s4 1934713408
      %v4845 = vunpack.c.0.s8 %v4844
      %v4846 = vlaneseq
      %v4847 = vshrl.u32 %v4846, 7
      %v4848 = vsub.s32 %v4845, %v4847
      %v4849 = vrot.slane %v4841, %v4848
      %v4851 = vunpack.c.l.s4 1934713408
      %v4852 = vunpack.c.0.s8 %v4851
      %v4853 = vlaneseq
      %v4854 = vshrl.u32 %v4853, 7
      %v4855 = vsub.s32 %v4852, %v4854
      %v4856 = vrot.slane %v4842, %v4855
      %v4857 = vcombine.low %v4792, %v4808
      %v4858 = vcombine.high %v4792, %v4808
      %v4860 = vunpack.c.l.s4 1934713408
      %v4861 = vunpack.c.0.s8 %v4860
      %v4862 = vlaneseq
      %v4863 = vshrl.u32 %v4862, 7
      %v4864 = vsub.s32 %v4861, %v4863
      %v4865 = vrot.slane %v4857, %v4864
      %v4867 = vunpack.c.l.s4 1934713408
      %v4868 = vunpack.c.0.s8 %v4867
      %v4869 = vlaneseq
      %v4870 = vshrl.u32 %v4869, 7
      %v4871 = vsub.s32 %v4868, %v4870
      %v4872 = vrot.slane %v4858, %v4871
      %v4873 = vcombine.low %v4817, %v4849
      %v4874 = vcombine.high %v4817, %v4849
      %v4875 = vcombine.low %v4824, %v4856
      %v4876 = vcombine.high %v4824, %v4856
      %v4877 = vcombine.low %v4833, %v4865
      %v4878 = vcombine.high %v4833, %v4865
      %v4879 = vcombine.low %v4840, %v4872
      %v4880 = vcombine.high %v4840, %v4872
      %4882 = vrot.lane.b32.xlu0 %v4738, 16
      %v4883 = vpop.permute.xlu0 %4882
      %4886 = vrot.lane.b32.xlu0 %v4739, 32
      %v4887 = vpop.permute.xlu0 %4886
      %4890 = vrot.lane.b32.xlu0 %v4740, 48
      %v4891 = vpop.permute.xlu0 %4890
      %4894 = vrot.lane.b32.xlu0 %v4741, 64
      %v4895 = vpop.permute.xlu0 %4894
      %4898 = vrot.lane.b32.xlu0 %v4742, 80
      %v4899 = vpop.permute.xlu0 %4898
      %4902 = vrot.lane.b32.xlu0 %v4743, 96
      %v4903 = vpop.permute.xlu0 %4902
      %4906 = vrot.lane.b32.xlu0 %v4744, 112
      %v4907 = vpop.permute.xlu0 %4906
      %4910 = vrot.lane.b32.xlu0 %v4874, 16
      %v4911 = vpop.permute.xlu0 %4910
      %4914 = vrot.lane.b32.xlu0 %v4875, 32
      %v4915 = vpop.permute.xlu0 %4914
      %4918 = vrot.lane.b32.xlu0 %v4876, 48
      %v4919 = vpop.permute.xlu0 %4918
      %4922 = vrot.lane.b32.xlu0 %v4877, 64
      %v4923 = vpop.permute.xlu0 %4922
      %4926 = vrot.lane.b32.xlu0 %v4878, 80
      %v4927 = vpop.permute.xlu0 %4926
      %4930 = vrot.lane.b32.xlu0 %v4879, 96
      %v4931 = vpop.permute.xlu0 %4930
      %4934 = vrot.lane.b32.xlu0 %v4880, 112
      %v4935 = vpop.permute.xlu0 %4934
      %v4937 = vsel %vm497, %v4737, %v4883
      %v4938 = vsel %vm499, %v4937, %v4887
      %v4939 = vsel %vm501, %v4938, %v4891
      %v4940 = vsel %vm503, %v4939, %v4895
      %v4941 = vsel %vm505, %v4940, %v4899
      %v4942 = vsel %vm507, %v4941, %v4903
      %v4943 = vsel %vm509, %v4942, %v4907
      %v4944 = vsel %vm497, %v4873, %v4911
      %v4945 = vsel %vm499, %v4944, %v4915
      %v4946 = vsel %vm501, %v4945, %v4919
      %v4947 = vsel %vm503, %v4946, %v4923
      %v4948 = vsel %vm505, %v4947, %v4927
      %v4949 = vsel %vm507, %v4948, %v4931
      %v4950 = vsel %vm509, %v4949, %v4935
      %4951 = vst [vmem:[#allocation5 + $0x40] sm:$0xff] %v4943
      %4952 = vst [vmem:[#allocation5 + $0x48] sm:$0xff] %v4950
      %v4953 = vld [vmem:[#allocation4 + $0x1] sm:$0xff]
      %v4954 = vld [vmem:[#allocation4 + $0x9] sm:$0xff]
      %v4955 = vld [vmem:[#allocation4 + $0x19] sm:$0xff]
      %v4956 = vld [vmem:[#allocation4 + $0x21] sm:$0xff]
      %v4957 = vld [vmem:[#allocation4 + $0x31] sm:$0xff]
      %v4958 = vld [vmem:[#allocation4 + $0x39] sm:$0xff]
      %v4959 = vld [vmem:[#allocation4 + $0x49] sm:$0xff]
      %v4960 = vld [vmem:[#allocation4 + $0x51] sm:$0xff]
      %v4961 = vld [vmem:[#allocation4 + $0x61] sm:$0xff]
      %v4962 = vld [vmem:[#allocation4 + $0x69] sm:$0xff]
      %v4963 = vld [vmem:[#allocation4 + $0x79] sm:$0xff]
      %v4964 = vld [vmem:[#allocation4 + $0x81] sm:$0xff]
      %v4965 = vld [vmem:[#allocation4 + $0x91] sm:$0xff]
      %v4966 = vld [vmem:[#allocation4 + $0x99] sm:$0xff]
      %v4967 = vld [vmem:[#allocation4 + $0xa9] sm:$0xff]
      %v4968 = vld [vmem:[#allocation4 + $0xb1] sm:$0xff]
      %4985 = vrot.lane.b32.xlu0 %v4953, 126
      %v4986 = vpop.permute.xlu0 %4985
      %4987 = vrot.lane.b32.xlu0 %v4954, 126
      %v4988 = vpop.permute.xlu0 %4987
      %4989 = vrot.lane.b32.xlu0 %v4955, 126
      %v4990 = vpop.permute.xlu0 %4989
      %4991 = vrot.lane.b32.xlu0 %v4956, 126
      %v4992 = vpop.permute.xlu0 %4991
      %4993 = vrot.lane.b32.xlu0 %v4957, 126
      %v4994 = vpop.permute.xlu0 %4993
      %4995 = vrot.lane.b32.xlu0 %v4958, 126
      %v4996 = vpop.permute.xlu0 %4995
      %4997 = vrot.lane.b32.xlu0 %v4959, 126
      %v4998 = vpop.permute.xlu0 %4997
      %4999 = vrot.lane.b32.xlu0 %v4960, 126
      %v5000 = vpop.permute.xlu0 %4999
      %5001 = vrot.lane.b32.xlu0 %v4961, 126
      %v5002 = vpop.permute.xlu0 %5001
      %5003 = vrot.lane.b32.xlu0 %v4962, 126
      %v5004 = vpop.permute.xlu0 %5003
      %5005 = vrot.lane.b32.xlu0 %v4963, 126
      %v5006 = vpop.permute.xlu0 %5005
      %5007 = vrot.lane.b32.xlu0 %v4964, 126
      %v5008 = vpop.permute.xlu0 %5007
      %5009 = vrot.lane.b32.xlu0 %v4965, 126
      %v5010 = vpop.permute.xlu0 %5009
      %5011 = vrot.lane.b32.xlu0 %v4966, 126
      %v5012 = vpop.permute.xlu0 %5011
      %5013 = vrot.lane.b32.xlu0 %v4967, 126
      %v5014 = vpop.permute.xlu0 %5013
      %5015 = vrot.lane.b32.xlu0 %v4968, 126
      %v5016 = vpop.permute.xlu0 %5015
      %v5033 = vcombine.low %v4986, %v4994
      %v5034 = vcombine.high %v4986, %v4994
      %v5036 = vunpack.c.l.s4 1983009808
      %v5037 = vunpack.c.0.s8 %v5036
      %v5038 = vlaneseq
      %v5039 = vshrl.u32 %v5038, 7
      %v5040 = vsub.s32 %v5037, %v5039
      %v5041 = vrot.slane %v5033, %v5040
      %v5043 = vunpack.c.l.s4 1983009808
      %v5044 = vunpack.c.0.s8 %v5043
      %v5045 = vlaneseq
      %v5046 = vshrl.u32 %v5045, 7
      %v5047 = vsub.s32 %v5044, %v5046
      %v5048 = vrot.slane %v5034, %v5047
      %v5049 = vcombine.low %v4990, %v4998
      %v5050 = vcombine.high %v4990, %v4998
      %v5052 = vunpack.c.l.s4 1983009808
      %v5053 = vunpack.c.0.s8 %v5052
      %v5054 = vlaneseq
      %v5055 = vshrl.u32 %v5054, 7
      %v5056 = vsub.s32 %v5053, %v5055
      %v5057 = vrot.slane %v5049, %v5056
      %v5059 = vunpack.c.l.s4 1983009808
      %v5060 = vunpack.c.0.s8 %v5059
      %v5061 = vlaneseq
      %v5062 = vshrl.u32 %v5061, 7
      %v5063 = vsub.s32 %v5060, %v5062
      %v5064 = vrot.slane %v5050, %v5063
      %v5065 = vcombine.low %v5002, %v5010
      %v5066 = vcombine.high %v5002, %v5010
      %v5068 = vunpack.c.l.s4 1983009808
      %v5069 = vunpack.c.0.s8 %v5068
      %v5070 = vlaneseq
      %v5071 = vshrl.u32 %v5070, 7
      %v5072 = vsub.s32 %v5069, %v5071
      %v5073 = vrot.slane %v5065, %v5072
      %v5075 = vunpack.c.l.s4 1983009808
      %v5076 = vunpack.c.0.s8 %v5075
      %v5077 = vlaneseq
      %v5078 = vshrl.u32 %v5077, 7
      %v5079 = vsub.s32 %v5076, %v5078
      %v5080 = vrot.slane %v5066, %v5079
      %v5081 = vcombine.low %v5006, %v5014
      %v5082 = vcombine.high %v5006, %v5014
      %v5084 = vunpack.c.l.s4 1983009808
      %v5085 = vunpack.c.0.s8 %v5084
      %v5086 = vlaneseq
      %v5087 = vshrl.u32 %v5086, 7
      %v5088 = vsub.s32 %v5085, %v5087
      %v5089 = vrot.slane %v5081, %v5088
      %v5091 = vunpack.c.l.s4 1983009808
      %v5092 = vunpack.c.0.s8 %v5091
      %v5093 = vlaneseq
      %v5094 = vshrl.u32 %v5093, 7
      %v5095 = vsub.s32 %v5092, %v5094
      %v5096 = vrot.slane %v5082, %v5095
      %v5097 = vcombine.low %v5041, %v5057
      %v5098 = vcombine.high %v5041, %v5057
      %v5100 = vunpack.c.l.s4 1934713408
      %v5101 = vunpack.c.0.s8 %v5100
      %v5102 = vlaneseq
      %v5103 = vshrl.u32 %v5102, 7
      %v5104 = vsub.s32 %v5101, %v5103
      %v5105 = vrot.slane %v5097, %v5104
      %v5107 = vunpack.c.l.s4 1934713408
      %v5108 = vunpack.c.0.s8 %v5107
      %v5109 = vlaneseq
      %v5110 = vshrl.u32 %v5109, 7
      %v5111 = vsub.s32 %v5108, %v5110
      %v5112 = vrot.slane %v5098, %v5111
      %v5113 = vcombine.low %v5048, %v5064
      %v5114 = vcombine.high %v5048, %v5064
      %v5116 = vunpack.c.l.s4 1934713408
      %v5117 = vunpack.c.0.s8 %v5116
      %v5118 = vlaneseq
      %v5119 = vshrl.u32 %v5118, 7
      %v5120 = vsub.s32 %v5117, %v5119
      %v5121 = vrot.slane %v5113, %v5120
      %v5123 = vunpack.c.l.s4 1934713408
      %v5124 = vunpack.c.0.s8 %v5123
      %v5125 = vlaneseq
      %v5126 = vshrl.u32 %v5125, 7
      %v5127 = vsub.s32 %v5124, %v5126
      %v5128 = vrot.slane %v5114, %v5127
      %v5129 = vcombine.low %v5073, %v5089
      %v5130 = vcombine.high %v5073, %v5089
      %v5132 = vunpack.c.l.s4 1934713408
      %v5133 = vunpack.c.0.s8 %v5132
      %v5134 = vlaneseq
      %v5135 = vshrl.u32 %v5134, 7
      %v5136 = vsub.s32 %v5133, %v5135
      %v5137 = vrot.slane %v5129, %v5136
      %v5139 = vunpack.c.l.s4 1934713408
      %v5140 = vunpack.c.0.s8 %v5139
      %v5141 = vlaneseq
      %v5142 = vshrl.u32 %v5141, 7
      %v5143 = vsub.s32 %v5140, %v5142
      %v5144 = vrot.slane %v5130, %v5143
      %v5145 = vcombine.low %v5080, %v5096
      %v5146 = vcombine.high %v5080, %v5096
      %v5148 = vunpack.c.l.s4 1934713408
      %v5149 = vunpack.c.0.s8 %v5148
      %v5150 = vlaneseq
      %v5151 = vshrl.u32 %v5150, 7
      %v5152 = vsub.s32 %v5149, %v5151
      %v5153 = vrot.slane %v5145, %v5152
      %v5155 = vunpack.c.l.s4 1934713408
      %v5156 = vunpack.c.0.s8 %v5155
      %v5157 = vlaneseq
      %v5158 = vshrl.u32 %v5157, 7
      %v5159 = vsub.s32 %v5156, %v5158
      %v5160 = vrot.slane %v5146, %v5159
      %v5161 = vcombine.low %v5105, %v5137
      %v5162 = vcombine.high %v5105, %v5137
      %v5163 = vcombine.low %v5112, %v5144
      %v5164 = vcombine.high %v5112, %v5144
      %v5165 = vcombine.low %v5121, %v5153
      %v5166 = vcombine.high %v5121, %v5153
      %v5167 = vcombine.low %v5128, %v5160
      %v5168 = vcombine.high %v5128, %v5160
      %v5169 = vcombine.low %v4988, %v4996
      %v5170 = vcombine.high %v4988, %v4996
      %v5172 = vunpack.c.l.s4 1983009808
      %v5173 = vunpack.c.0.s8 %v5172
      %v5174 = vlaneseq
      %v5175 = vshrl.u32 %v5174, 7
      %v5176 = vsub.s32 %v5173, %v5175
      %v5177 = vrot.slane %v5169, %v5176
      %v5179 = vunpack.c.l.s4 1983009808
      %v5180 = vunpack.c.0.s8 %v5179
      %v5181 = vlaneseq
      %v5182 = vshrl.u32 %v5181, 7
      %v5183 = vsub.s32 %v5180, %v5182
      %v5184 = vrot.slane %v5170, %v5183
      %v5185 = vcombine.low %v4992, %v5000
      %v5186 = vcombine.high %v4992, %v5000
      %v5188 = vunpack.c.l.s4 1983009808
      %v5189 = vunpack.c.0.s8 %v5188
      %v5190 = vlaneseq
      %v5191 = vshrl.u32 %v5190, 7
      %v5192 = vsub.s32 %v5189, %v5191
      %v5193 = vrot.slane %v5185, %v5192
      %v5195 = vunpack.c.l.s4 1983009808
      %v5196 = vunpack.c.0.s8 %v5195
      %v5197 = vlaneseq
      %v5198 = vshrl.u32 %v5197, 7
      %v5199 = vsub.s32 %v5196, %v5198
      %v5200 = vrot.slane %v5186, %v5199
      %v5201 = vcombine.low %v5004, %v5012
      %v5202 = vcombine.high %v5004, %v5012
      %v5204 = vunpack.c.l.s4 1983009808
      %v5205 = vunpack.c.0.s8 %v5204
      %v5206 = vlaneseq
      %v5207 = vshrl.u32 %v5206, 7
      %v5208 = vsub.s32 %v5205, %v5207
      %v5209 = vrot.slane %v5201, %v5208
      %v5211 = vunpack.c.l.s4 1983009808
      %v5212 = vunpack.c.0.s8 %v5211
      %v5213 = vlaneseq
      %v5214 = vshrl.u32 %v5213, 7
      %v5215 = vsub.s32 %v5212, %v5214
      %v5216 = vrot.slane %v5202, %v5215
      %v5217 = vcombine.low %v5008, %v5016
      %v5218 = vcombine.high %v5008, %v5016
      %v5220 = vunpack.c.l.s4 1983009808
      %v5221 = vunpack.c.0.s8 %v5220
      %v5222 = vlaneseq
      %v5223 = vshrl.u32 %v5222, 7
      %v5224 = vsub.s32 %v5221, %v5223
      %v5225 = vrot.slane %v5217, %v5224
      %v5227 = vunpack.c.l.s4 1983009808
      %v5228 = vunpack.c.0.s8 %v5227
      %v5229 = vlaneseq
      %v5230 = vshrl.u32 %v5229, 7
      %v5231 = vsub.s32 %v5228, %v5230
      %v5232 = vrot.slane %v5218, %v5231
      %v5233 = vcombine.low %v5177, %v5193
      %v5234 = vcombine.high %v5177, %v5193
      %v5236 = vunpack.c.l.s4 1934713408
      %v5237 = vunpack.c.0.s8 %v5236
      %v5238 = vlaneseq
      %v5239 = vshrl.u32 %v5238, 7
      %v5240 = vsub.s32 %v5237, %v5239
      %v5241 = vrot.slane %v5233, %v5240
      %v5243 = vunpack.c.l.s4 1934713408
      %v5244 = vunpack.c.0.s8 %v5243
      %v5245 = vlaneseq
      %v5246 = vshrl.u32 %v5245, 7
      %v5247 = vsub.s32 %v5244, %v5246
      %v5248 = vrot.slane %v5234, %v5247
      %v5249 = vcombine.low %v5184, %v5200
      %v5250 = vcombine.high %v5184, %v5200
      %v5252 = vunpack.c.l.s4 1934713408
      %v5253 = vunpack.c.0.s8 %v5252
      %v5254 = vlaneseq
      %v5255 = vshrl.u32 %v5254, 7
      %v5256 = vsub.s32 %v5253, %v5255
      %v5257 = vrot.slane %v5249, %v5256
      %v5259 = vunpack.c.l.s4 1934713408
      %v5260 = vunpack.c.0.s8 %v5259
      %v5261 = vlaneseq
      %v5262 = vshrl.u32 %v5261, 7
      %v5263 = vsub.s32 %v5260, %v5262
      %v5264 = vrot.slane %v5250, %v5263
      %v5265 = vcombine.low %v5209, %v5225
      %v5266 = vcombine.high %v5209, %v5225
      %v5268 = vunpack.c.l.s4 1934713408
      %v5269 = vunpack.c.0.s8 %v5268
      %v5270 = vlaneseq
      %v5271 = vshrl.u32 %v5270, 7
      %v5272 = vsub.s32 %v5269, %v5271
      %v5273 = vrot.slane %v5265, %v5272
      %v5275 = vunpack.c.l.s4 1934713408
      %v5276 = vunpack.c.0.s8 %v5275
      %v5277 = vlaneseq
      %v5278 = vshrl.u32 %v5277, 7
      %v5279 = vsub.s32 %v5276, %v5278
      %v5280 = vrot.slane %v5266, %v5279
      %v5281 = vcombine.low %v5216, %v5232
      %v5282 = vcombine.high %v5216, %v5232
      %v5284 = vunpack.c.l.s4 1934713408
      %v5285 = vunpack.c.0.s8 %v5284
      %v5286 = vlaneseq
      %v5287 = vshrl.u32 %v5286, 7
      %v5288 = vsub.s32 %v5285, %v5287
      %v5289 = vrot.slane %v5281, %v5288
      %v5291 = vunpack.c.l.s4 1934713408
      %v5292 = vunpack.c.0.s8 %v5291
      %v5293 = vlaneseq
      %v5294 = vshrl.u32 %v5293, 7
      %v5295 = vsub.s32 %v5292, %v5294
      %v5296 = vrot.slane %v5282, %v5295
      %v5297 = vcombine.low %v5241, %v5273
      %v5298 = vcombine.high %v5241, %v5273
      %v5299 = vcombine.low %v5248, %v5280
      %v5300 = vcombine.high %v5248, %v5280
      %v5301 = vcombine.low %v5257, %v5289
      %v5302 = vcombine.high %v5257, %v5289
      %v5303 = vcombine.low %v5264, %v5296
      %v5304 = vcombine.high %v5264, %v5296
      %5306 = vrot.lane.b32.xlu0 %v5162, 16
      %v5307 = vpop.permute.xlu0 %5306
      %5310 = vrot.lane.b32.xlu0 %v5163, 32
      %v5311 = vpop.permute.xlu0 %5310
      %5314 = vrot.lane.b32.xlu0 %v5164, 48
      %v5315 = vpop.permute.xlu0 %5314
      %5318 = vrot.lane.b32.xlu0 %v5165, 64
      %v5319 = vpop.permute.xlu0 %5318
      %5322 = vrot.lane.b32.xlu0 %v5166, 80
      %v5323 = vpop.permute.xlu0 %5322
      %5326 = vrot.lane.b32.xlu0 %v5167, 96
      %v5327 = vpop.permute.xlu0 %5326
      %5330 = vrot.lane.b32.xlu0 %v5168, 112
      %v5331 = vpop.permute.xlu0 %5330
      %5334 = vrot.lane.b32.xlu0 %v5298, 16
      %v5335 = vpop.permute.xlu0 %5334
      %5338 = vrot.lane.b32.xlu0 %v5299, 32
      %v5339 = vpop.permute.xlu0 %5338
      %5342 = vrot.lane.b32.xlu0 %v5300, 48
      %v5343 = vpop.permute.xlu0 %5342
      %5346 = vrot.lane.b32.xlu0 %v5301, 64
      %v5347 = vpop.permute.xlu0 %5346
      %5350 = vrot.lane.b32.xlu0 %v5302, 80
      %v5351 = vpop.permute.xlu0 %5350
      %5354 = vrot.lane.b32.xlu0 %v5303, 96
      %v5355 = vpop.permute.xlu0 %5354
      %5358 = vrot.lane.b32.xlu0 %v5304, 112
      %v5359 = vpop.permute.xlu0 %5358
      %v5361 = vsel %vm497, %v5161, %v5307
      %v5362 = vsel %vm499, %v5361, %v5311
      %v5363 = vsel %vm501, %v5362, %v5315
      %v5364 = vsel %vm503, %v5363, %v5319
      %v5365 = vsel %vm505, %v5364, %v5323
      %v5366 = vsel %vm507, %v5365, %v5327
      %v5367 = vsel %vm509, %v5366, %v5331
      %v5368 = vsel %vm497, %v5297, %v5335
      %v5369 = vsel %vm499, %v5368, %v5339
      %v5370 = vsel %vm501, %v5369, %v5343
      %v5371 = vsel %vm503, %v5370, %v5347
      %v5372 = vsel %vm505, %v5371, %v5351
      %v5373 = vsel %vm507, %v5372, %v5355
      %v5374 = vsel %vm509, %v5373, %v5359
      %5375 = vst [vmem:[#allocation5 + $0x50] sm:$0xff] %v5367
      %5376 = vst [vmem:[#allocation5 + $0x58] sm:$0xff] %v5374
      %v5377 = vld [vmem:[#allocation4 + $0x2] sm:$0xff]
      %v5378 = vld [vmem:[#allocation4 + $0xa] sm:$0xff]
      %v5379 = vld [vmem:[#allocation4 + $0x1a] sm:$0xff]
      %v5380 = vld [vmem:[#allocation4 + $0x22] sm:$0xff]
      %v5381 = vld [vmem:[#allocation4 + $0x32] sm:$0xff]
      %v5382 = vld [vmem:[#allocation4 + $0x3a] sm:$0xff]
      %v5383 = vld [vmem:[#allocation4 + $0x4a] sm:$0xff]
      %v5384 = vld [vmem:[#allocation4 + $0x52] sm:$0xff]
      %v5385 = vld [vmem:[#allocation4 + $0x62] sm:$0xff]
      %v5386 = vld [vmem:[#allocation4 + $0x6a] sm:$0xff]
      %v5387 = vld [vmem:[#allocation4 + $0x7a] sm:$0xff]
      %v5388 = vld [vmem:[#allocation4 + $0x82] sm:$0xff]
      %v5389 = vld [vmem:[#allocation4 + $0x92] sm:$0xff]
      %v5390 = vld [vmem:[#allocation4 + $0x9a] sm:$0xff]
      %v5391 = vld [vmem:[#allocation4 + $0xaa] sm:$0xff]
      %v5392 = vld [vmem:[#allocation4 + $0xb2] sm:$0xff]
      %v5393 = vcombine.low %v5377, %v5381
      %v5394 = vcombine.high %v5377, %v5381
      %v5396 = vunpack.c.l.s4 1983009808
      %v5397 = vunpack.c.0.s8 %v5396
      %v5398 = vlaneseq
      %v5399 = vshrl.u32 %v5398, 7
      %v5400 = vsub.s32 %v5397, %v5399
      %v5401 = vrot.slane %v5393, %v5400
      %v5403 = vunpack.c.l.s4 1983009808
      %v5404 = vunpack.c.0.s8 %v5403
      %v5405 = vlaneseq
      %v5406 = vshrl.u32 %v5405, 7
      %v5407 = vsub.s32 %v5404, %v5406
      %v5408 = vrot.slane %v5394, %v5407
      %v5409 = vcombine.low %v5379, %v5383
      %v5410 = vcombine.high %v5379, %v5383
      %v5412 = vunpack.c.l.s4 1983009808
      %v5413 = vunpack.c.0.s8 %v5412
      %v5414 = vlaneseq
      %v5415 = vshrl.u32 %v5414, 7
      %v5416 = vsub.s32 %v5413, %v5415
      %v5417 = vrot.slane %v5409, %v5416
      %v5419 = vunpack.c.l.s4 1983009808
      %v5420 = vunpack.c.0.s8 %v5419
      %v5421 = vlaneseq
      %v5422 = vshrl.u32 %v5421, 7
      %v5423 = vsub.s32 %v5420, %v5422
      %v5424 = vrot.slane %v5410, %v5423
      %v5425 = vcombine.low %v5385, %v5389
      %v5426 = vcombine.high %v5385, %v5389
      %v5428 = vunpack.c.l.s4 1983009808
      %v5429 = vunpack.c.0.s8 %v5428
      %v5430 = vlaneseq
      %v5431 = vshrl.u32 %v5430, 7
      %v5432 = vsub.s32 %v5429, %v5431
      %v5433 = vrot.slane %v5425, %v5432
      %v5435 = vunpack.c.l.s4 1983009808
      %v5436 = vunpack.c.0.s8 %v5435
      %v5437 = vlaneseq
      %v5438 = vshrl.u32 %v5437, 7
      %v5439 = vsub.s32 %v5436, %v5438
      %v5440 = vrot.slane %v5426, %v5439
      %v5441 = vcombine.low %v5387, %v5391
      %v5442 = vcombine.high %v5387, %v5391
      %v5444 = vunpack.c.l.s4 1983009808
      %v5445 = vunpack.c.0.s8 %v5444
      %v5446 = vlaneseq
      %v5447 = vshrl.u32 %v5446, 7
      %v5448 = vsub.s32 %v5445, %v5447
      %v5449 = vrot.slane %v5441, %v5448
      %v5451 = vunpack.c.l.s4 1983009808
      %v5452 = vunpack.c.0.s8 %v5451
      %v5453 = vlaneseq
      %v5454 = vshrl.u32 %v5453, 7
      %v5455 = vsub.s32 %v5452, %v5454
      %v5456 = vrot.slane %v5442, %v5455
      %v5457 = vcombine.low %v5401, %v5417
      %v5458 = vcombine.high %v5401, %v5417
      %v5460 = vunpack.c.l.s4 1934713408
      %v5461 = vunpack.c.0.s8 %v5460
      %v5462 = vlaneseq
      %v5463 = vshrl.u32 %v5462, 7
      %v5464 = vsub.s32 %v5461, %v5463
      %v5465 = vrot.slane %v5457, %v5464
      %v5467 = vunpack.c.l.s4 1934713408
      %v5468 = vunpack.c.0.s8 %v5467
      %v5469 = vlaneseq
      %v5470 = vshrl.u32 %v5469, 7
      %v5471 = vsub.s32 %v5468, %v5470
      %v5472 = vrot.slane %v5458, %v5471
      %v5473 = vcombine.low %v5408, %v5424
      %v5474 = vcombine.high %v5408, %v5424
      %v5476 = vunpack.c.l.s4 1934713408
      %v5477 = vunpack.c.0.s8 %v5476
      %v5478 = vlaneseq
      %v5479 = vshrl.u32 %v5478, 7
      %v5480 = vsub.s32 %v5477, %v5479
      %v5481 = vrot.slane %v5473, %v5480
      %v5483 = vunpack.c.l.s4 1934713408
      %v5484 = vunpack.c.0.s8 %v5483
      %v5485 = vlaneseq
      %v5486 = vshrl.u32 %v5485, 7
      %v5487 = vsub.s32 %v5484, %v5486
      %v5488 = vrot.slane %v5474, %v5487
      %v5489 = vcombine.low %v5433, %v5449
      %v5490 = vcombine.high %v5433, %v5449
      %v5492 = vunpack.c.l.s4 1934713408
      %v5493 = vunpack.c.0.s8 %v5492
      %v5494 = vlaneseq
      %v5495 = vshrl.u32 %v5494, 7
      %v5496 = vsub.s32 %v5493, %v5495
      %v5497 = vrot.slane %v5489, %v5496
      %v5499 = vunpack.c.l.s4 1934713408
      %v5500 = vunpack.c.0.s8 %v5499
      %v5501 = vlaneseq
      %v5502 = vshrl.u32 %v5501, 7
      %v5503 = vsub.s32 %v5500, %v5502
      %v5504 = vrot.slane %v5490, %v5503
      %v5505 = vcombine.low %v5440, %v5456
      %v5506 = vcombine.high %v5440, %v5456
      %v5508 = vunpack.c.l.s4 1934713408
      %v5509 = vunpack.c.0.s8 %v5508
      %v5510 = vlaneseq
      %v5511 = vshrl.u32 %v5510, 7
      %v5512 = vsub.s32 %v5509, %v5511
      %v5513 = vrot.slane %v5505, %v5512
      %v5515 = vunpack.c.l.s4 1934713408
      %v5516 = vunpack.c.0.s8 %v5515
      %v5517 = vlaneseq
      %v5518 = vshrl.u32 %v5517, 7
      %v5519 = vsub.s32 %v5516, %v5518
      %v5520 = vrot.slane %v5506, %v5519
      %v5521 = vcombine.low %v5465, %v5497
      %v5522 = vcombine.high %v5465, %v5497
      %v5523 = vcombine.low %v5472, %v5504
      %v5524 = vcombine.high %v5472, %v5504
      %v5525 = vcombine.low %v5481, %v5513
      %v5526 = vcombine.high %v5481, %v5513
      %v5527 = vcombine.low %v5488, %v5520
      %v5528 = vcombine.high %v5488, %v5520
      %v5529 = vcombine.low %v5378, %v5382
      %v5530 = vcombine.high %v5378, %v5382
      %v5532 = vunpack.c.l.s4 1983009808
      %v5533 = vunpack.c.0.s8 %v5532
      %v5534 = vlaneseq
      %v5535 = vshrl.u32 %v5534, 7
      %v5536 = vsub.s32 %v5533, %v5535
      %v5537 = vrot.slane %v5529, %v5536
      %v5539 = vunpack.c.l.s4 1983009808
      %v5540 = vunpack.c.0.s8 %v5539
      %v5541 = vlaneseq
      %v5542 = vshrl.u32 %v5541, 7
      %v5543 = vsub.s32 %v5540, %v5542
      %v5544 = vrot.slane %v5530, %v5543
      %v5545 = vcombine.low %v5380, %v5384
      %v5546 = vcombine.high %v5380, %v5384
      %v5548 = vunpack.c.l.s4 1983009808
      %v5549 = vunpack.c.0.s8 %v5548
      %v5550 = vlaneseq
      %v5551 = vshrl.u32 %v5550, 7
      %v5552 = vsub.s32 %v5549, %v5551
      %v5553 = vrot.slane %v5545, %v5552
      %v5555 = vunpack.c.l.s4 1983009808
      %v5556 = vunpack.c.0.s8 %v5555
      %v5557 = vlaneseq
      %v5558 = vshrl.u32 %v5557, 7
      %v5559 = vsub.s32 %v5556, %v5558
      %v5560 = vrot.slane %v5546, %v5559
      %v5561 = vcombine.low %v5386, %v5390
      %v5562 = vcombine.high %v5386, %v5390
      %v5564 = vunpack.c.l.s4 1983009808
      %v5565 = vunpack.c.0.s8 %v5564
      %v5566 = vlaneseq
      %v5567 = vshrl.u32 %v5566, 7
      %v5568 = vsub.s32 %v5565, %v5567
      %v5569 = vrot.slane %v5561, %v5568
      %v5571 = vunpack.c.l.s4 1983009808
      %v5572 = vunpack.c.0.s8 %v5571
      %v5573 = vlaneseq
      %v5574 = vshrl.u32 %v5573, 7
      %v5575 = vsub.s32 %v5572, %v5574
      %v5576 = vrot.slane %v5562, %v5575
      %v5577 = vcombine.low %v5388, %v5392
      %v5578 = vcombine.high %v5388, %v5392
      %v5580 = vunpack.c.l.s4 1983009808
      %v5581 = vunpack.c.0.s8 %v5580
      %v5582 = vlaneseq
      %v5583 = vshrl.u32 %v5582, 7
      %v5584 = vsub.s32 %v5581, %v5583
      %v5585 = vrot.slane %v5577, %v5584
      %v5587 = vunpack.c.l.s4 1983009808
      %v5588 = vunpack.c.0.s8 %v5587
      %v5589 = vlaneseq
      %v5590 = vshrl.u32 %v5589, 7
      %v5591 = vsub.s32 %v5588, %v5590
      %v5592 = vrot.slane %v5578, %v5591
      %v5593 = vcombine.low %v5537, %v5553
      %v5594 = vcombine.high %v5537, %v5553
      %v5596 = vunpack.c.l.s4 1934713408
      %v5597 = vunpack.c.0.s8 %v5596
      %v5598 = vlaneseq
      %v5599 = vshrl.u32 %v5598, 7
      %v5600 = vsub.s32 %v5597, %v5599
      %v5601 = vrot.slane %v5593, %v5600
      %v5603 = vunpack.c.l.s4 1934713408
      %v5604 = vunpack.c.0.s8 %v5603
      %v5605 = vlaneseq
      %v5606 = vshrl.u32 %v5605, 7
      %v5607 = vsub.s32 %v5604, %v5606
      %v5608 = vrot.slane %v5594, %v5607
      %v5609 = vcombine.low %v5544, %v5560
      %v5610 = vcombine.high %v5544, %v5560
      %v5612 = vunpack.c.l.s4 1934713408
      %v5613 = vunpack.c.0.s8 %v5612
      %v5614 = vlaneseq
      %v5615 = vshrl.u32 %v5614, 7
      %v5616 = vsub.s32 %v5613, %v5615
      %v5617 = vrot.slane %v5609, %v5616
      %v5619 = vunpack.c.l.s4 1934713408
      %v5620 = vunpack.c.0.s8 %v5619
      %v5621 = vlaneseq
      %v5622 = vshrl.u32 %v5621, 7
      %v5623 = vsub.s32 %v5620, %v5622
      %v5624 = vrot.slane %v5610, %v5623
      %v5625 = vcombine.low %v5569, %v5585
      %v5626 = vcombine.high %v5569, %v5585
      %v5628 = vunpack.c.l.s4 1934713408
      %v5629 = vunpack.c.0.s8 %v5628
      %v5630 = vlaneseq
      %v5631 = vshrl.u32 %v5630, 7
      %v5632 = vsub.s32 %v5629, %v5631
      %v5633 = vrot.slane %v5625, %v5632
      %v5635 = vunpack.c.l.s4 1934713408
      %v5636 = vunpack.c.0.s8 %v5635
      %v5637 = vlaneseq
      %v5638 = vshrl.u32 %v5637, 7
      %v5639 = vsub.s32 %v5636, %v5638
      %v5640 = vrot.slane %v5626, %v5639
      %v5641 = vcombine.low %v5576, %v5592
      %v5642 = vcombine.high %v5576, %v5592
      %v5644 = vunpack.c.l.s4 1934713408
      %v5645 = vunpack.c.0.s8 %v5644
      %v5646 = vlaneseq
      %v5647 = vshrl.u32 %v5646, 7
      %v5648 = vsub.s32 %v5645, %v5647
      %v5649 = vrot.slane %v5641, %v5648
      %v5651 = vunpack.c.l.s4 1934713408
      %v5652 = vunpack.c.0.s8 %v5651
      %v5653 = vlaneseq
      %v5654 = vshrl.u32 %v5653, 7
      %v5655 = vsub.s32 %v5652, %v5654
      %v5656 = vrot.slane %v5642, %v5655
      %v5657 = vcombine.low %v5601, %v5633
      %v5658 = vcombine.high %v5601, %v5633
      %v5659 = vcombine.low %v5608, %v5640
      %v5660 = vcombine.high %v5608, %v5640
      %v5661 = vcombine.low %v5617, %v5649
      %v5662 = vcombine.high %v5617, %v5649
      %v5663 = vcombine.low %v5624, %v5656
      %v5664 = vcombine.high %v5624, %v5656
      %5666 = vrot.lane.b32.xlu0 %v5522, 16
      %v5667 = vpop.permute.xlu0 %5666
      %5670 = vrot.lane.b32.xlu0 %v5523, 32
      %v5671 = vpop.permute.xlu0 %5670
      %5674 = vrot.lane.b32.xlu0 %v5524, 48
      %v5675 = vpop.permute.xlu0 %5674
      %5678 = vrot.lane.b32.xlu0 %v5525, 64
      %v5679 = vpop.permute.xlu0 %5678
      %5682 = vrot.lane.b32.xlu0 %v5526, 80
      %v5683 = vpop.permute.xlu0 %5682
      %5686 = vrot.lane.b32.xlu0 %v5527, 96
      %v5687 = vpop.permute.xlu0 %5686
      %5690 = vrot.lane.b32.xlu0 %v5528, 112
      %v5691 = vpop.permute.xlu0 %5690
      %5694 = vrot.lane.b32.xlu0 %v5658, 16
      %v5695 = vpop.permute.xlu0 %5694
      %5698 = vrot.lane.b32.xlu0 %v5659, 32
      %v5699 = vpop.permute.xlu0 %5698
      %5702 = vrot.lane.b32.xlu0 %v5660, 48
      %v5703 = vpop.permute.xlu0 %5702
      %5706 = vrot.lane.b32.xlu0 %v5661, 64
      %v5707 = vpop.permute.xlu0 %5706
      %5710 = vrot.lane.b32.xlu0 %v5662, 80
      %v5711 = vpop.permute.xlu0 %5710
      %5714 = vrot.lane.b32.xlu0 %v5663, 96
      %v5715 = vpop.permute.xlu0 %5714
      %5718 = vrot.lane.b32.xlu0 %v5664, 112
      %v5719 = vpop.permute.xlu0 %5718
      %v5721 = vsel %vm497, %v5521, %v5667
      %v5722 = vsel %vm499, %v5721, %v5671
      %v5723 = vsel %vm501, %v5722, %v5675
      %v5724 = vsel %vm503, %v5723, %v5679
      %v5725 = vsel %vm505, %v5724, %v5683
      %v5726 = vsel %vm507, %v5725, %v5687
      %v5727 = vsel %vm509, %v5726, %v5691
      %v5728 = vsel %vm497, %v5657, %v5695
      %v5729 = vsel %vm499, %v5728, %v5699
      %v5730 = vsel %vm501, %v5729, %v5703
      %v5731 = vsel %vm503, %v5730, %v5707
      %v5732 = vsel %vm505, %v5731, %v5711
      %v5733 = vsel %vm507, %v5732, %v5715
      %v5734 = vsel %vm509, %v5733, %v5719
      %5735 = vst [vmem:[#allocation5 + $0x60] sm:$0xff] %v5727
      %5736 = vst [vmem:[#allocation5 + $0x68] sm:$0xff] %v5734
      %v5737 = vld [vmem:[#allocation4 + $0x2] sm:$0xff]
      %v5738 = vld [vmem:[#allocation4 + $0xa] sm:$0xff]
      %v5739 = vld [vmem:[#allocation4 + $0x1a] sm:$0xff]
      %v5740 = vld [vmem:[#allocation4 + $0x22] sm:$0xff]
      %v5741 = vld [vmem:[#allocation4 + $0x32] sm:$0xff]
      %v5742 = vld [vmem:[#allocation4 + $0x3a] sm:$0xff]
      %v5743 = vld [vmem:[#allocation4 + $0x4a] sm:$0xff]
      %v5744 = vld [vmem:[#allocation4 + $0x52] sm:$0xff]
      %v5745 = vld [vmem:[#allocation4 + $0x62] sm:$0xff]
      %v5746 = vld [vmem:[#allocation4 + $0x6a] sm:$0xff]
      %v5747 = vld [vmem:[#allocation4 + $0x7a] sm:$0xff]
      %v5748 = vld [vmem:[#allocation4 + $0x82] sm:$0xff]
      %v5749 = vld [vmem:[#allocation4 + $0x92] sm:$0xff]
      %v5750 = vld [vmem:[#allocation4 + $0x9a] sm:$0xff]
      %v5751 = vld [vmem:[#allocation4 + $0xaa] sm:$0xff]
      %v5752 = vld [vmem:[#allocation4 + $0xb2] sm:$0xff]
      %5769 = vrot.lane.b32.xlu0 %v5737, 127
      %v5770 = vpop.permute.xlu0 %5769
      %5771 = vrot.lane.b32.xlu0 %v5738, 127
      %v5772 = vpop.permute.xlu0 %5771
      %5773 = vrot.lane.b32.xlu0 %v5739, 127
      %v5774 = vpop.permute.xlu0 %5773
      %5775 = vrot.lane.b32.xlu0 %v5740, 127
      %v5776 = vpop.permute.xlu0 %5775
      %5777 = vrot.lane.b32.xlu0 %v5741, 127
      %v5778 = vpop.permute.xlu0 %5777
      %5779 = vrot.lane.b32.xlu0 %v5742, 127
      %v5780 = vpop.permute.xlu0 %5779
      %5781 = vrot.lane.b32.xlu0 %v5743, 127
      %v5782 = vpop.permute.xlu0 %5781
      %5783 = vrot.lane.b32.xlu0 %v5744, 127
      %v5784 = vpop.permute.xlu0 %5783
      %5785 = vrot.lane.b32.xlu0 %v5745, 127
      %v5786 = vpop.permute.xlu0 %5785
      %5787 = vrot.lane.b32.xlu0 %v5746, 127
      %v5788 = vpop.permute.xlu0 %5787
      %5789 = vrot.lane.b32.xlu0 %v5747, 127
      %v5790 = vpop.permute.xlu0 %5789
      %5791 = vrot.lane.b32.xlu0 %v5748, 127
      %v5792 = vpop.permute.xlu0 %5791
      %5793 = vrot.lane.b32.xlu0 %v5749, 127
      %v5794 = vpop.permute.xlu0 %5793
      %5795 = vrot.lane.b32.xlu0 %v5750, 127
      %v5796 = vpop.permute.xlu0 %5795
      %5797 = vrot.lane.b32.xlu0 %v5751, 127
      %v5798 = vpop.permute.xlu0 %5797
      %5799 = vrot.lane.b32.xlu0 %v5752, 127
      %v5800 = vpop.permute.xlu0 %5799
      %v5817 = vcombine.low %v5770, %v5778
      %v5818 = vcombine.high %v5770, %v5778
      %v5820 = vunpack.c.l.s4 1983009808
      %v5821 = vunpack.c.0.s8 %v5820
      %v5822 = vlaneseq
      %v5823 = vshrl.u32 %v5822, 7
      %v5824 = vsub.s32 %v5821, %v5823
      %v5825 = vrot.slane %v5817, %v5824
      %v5827 = vunpack.c.l.s4 1983009808
      %v5828 = vunpack.c.0.s8 %v5827
      %v5829 = vlaneseq
      %v5830 = vshrl.u32 %v5829, 7
      %v5831 = vsub.s32 %v5828, %v5830
      %v5832 = vrot.slane %v5818, %v5831
      %v5833 = vcombine.low %v5774, %v5782
      %v5834 = vcombine.high %v5774, %v5782
      %v5836 = vunpack.c.l.s4 1983009808
      %v5837 = vunpack.c.0.s8 %v5836
      %v5838 = vlaneseq
      %v5839 = vshrl.u32 %v5838, 7
      %v5840 = vsub.s32 %v5837, %v5839
      %v5841 = vrot.slane %v5833, %v5840
      %v5843 = vunpack.c.l.s4 1983009808
      %v5844 = vunpack.c.0.s8 %v5843
      %v5845 = vlaneseq
      %v5846 = vshrl.u32 %v5845, 7
      %v5847 = vsub.s32 %v5844, %v5846
      %v5848 = vrot.slane %v5834, %v5847
      %v5849 = vcombine.low %v5786, %v5794
      %v5850 = vcombine.high %v5786, %v5794
      %v5852 = vunpack.c.l.s4 1983009808
      %v5853 = vunpack.c.0.s8 %v5852
      %v5854 = vlaneseq
      %v5855 = vshrl.u32 %v5854, 7
      %v5856 = vsub.s32 %v5853, %v5855
      %v5857 = vrot.slane %v5849, %v5856
      %v5859 = vunpack.c.l.s4 1983009808
      %v5860 = vunpack.c.0.s8 %v5859
      %v5861 = vlaneseq
      %v5862 = vshrl.u32 %v5861, 7
      %v5863 = vsub.s32 %v5860, %v5862
      %v5864 = vrot.slane %v5850, %v5863
      %v5865 = vcombine.low %v5790, %v5798
      %v5866 = vcombine.high %v5790, %v5798
      %v5868 = vunpack.c.l.s4 1983009808
      %v5869 = vunpack.c.0.s8 %v5868
      %v5870 = vlaneseq
      %v5871 = vshrl.u32 %v5870, 7
      %v5872 = vsub.s32 %v5869, %v5871
      %v5873 = vrot.slane %v5865, %v5872
      %v5875 = vunpack.c.l.s4 1983009808
      %v5876 = vunpack.c.0.s8 %v5875
      %v5877 = vlaneseq
      %v5878 = vshrl.u32 %v5877, 7
      %v5879 = vsub.s32 %v5876, %v5878
      %v5880 = vrot.slane %v5866, %v5879
      %v5881 = vcombine.low %v5825, %v5841
      %v5882 = vcombine.high %v5825, %v5841
      %v5884 = vunpack.c.l.s4 1934713408
      %v5885 = vunpack.c.0.s8 %v5884
      %v5886 = vlaneseq
      %v5887 = vshrl.u32 %v5886, 7
      %v5888 = vsub.s32 %v5885, %v5887
      %v5889 = vrot.slane %v5881, %v5888
      %v5891 = vunpack.c.l.s4 1934713408
      %v5892 = vunpack.c.0.s8 %v5891
      %v5893 = vlaneseq
      %v5894 = vshrl.u32 %v5893, 7
      %v5895 = vsub.s32 %v5892, %v5894
      %v5896 = vrot.slane %v5882, %v5895
      %v5897 = vcombine.low %v5832, %v5848
      %v5898 = vcombine.high %v5832, %v5848
      %v5900 = vunpack.c.l.s4 1934713408
      %v5901 = vunpack.c.0.s8 %v5900
      %v5902 = vlaneseq
      %v5903 = vshrl.u32 %v5902, 7
      %v5904 = vsub.s32 %v5901, %v5903
      %v5905 = vrot.slane %v5897, %v5904
      %v5907 = vunpack.c.l.s4 1934713408
      %v5908 = vunpack.c.0.s8 %v5907
      %v5909 = vlaneseq
      %v5910 = vshrl.u32 %v5909, 7
      %v5911 = vsub.s32 %v5908, %v5910
      %v5912 = vrot.slane %v5898, %v5911
      %v5913 = vcombine.low %v5857, %v5873
      %v5914 = vcombine.high %v5857, %v5873
      %v5916 = vunpack.c.l.s4 1934713408
      %v5917 = vunpack.c.0.s8 %v5916
      %v5918 = vlaneseq
      %v5919 = vshrl.u32 %v5918, 7
      %v5920 = vsub.s32 %v5917, %v5919
      %v5921 = vrot.slane %v5913, %v5920
      %v5923 = vunpack.c.l.s4 1934713408
      %v5924 = vunpack.c.0.s8 %v5923
      %v5925 = vlaneseq
      %v5926 = vshrl.u32 %v5925, 7
      %v5927 = vsub.s32 %v5924, %v5926
      %v5928 = vrot.slane %v5914, %v5927
      %v5929 = vcombine.low %v5864, %v5880
      %v5930 = vcombine.high %v5864, %v5880
      %v5932 = vunpack.c.l.s4 1934713408
      %v5933 = vunpack.c.0.s8 %v5932
      %v5934 = vlaneseq
      %v5935 = vshrl.u32 %v5934, 7
      %v5936 = vsub.s32 %v5933, %v5935
      %v5937 = vrot.slane %v5929, %v5936
      %v5939 = vunpack.c.l.s4 1934713408
      %v5940 = vunpack.c.0.s8 %v5939
      %v5941 = vlaneseq
      %v5942 = vshrl.u32 %v5941, 7
      %v5943 = vsub.s32 %v5940, %v5942
      %v5944 = vrot.slane %v5930, %v5943
      %v5945 = vcombine.low %v5889, %v5921
      %v5946 = vcombine.high %v5889, %v5921
      %v5947 = vcombine.low %v5896, %v5928
      %v5948 = vcombine.high %v5896, %v5928
      %v5949 = vcombine.low %v5905, %v5937
      %v5950 = vcombine.high %v5905, %v5937
      %v5951 = vcombine.low %v5912, %v5944
      %v5952 = vcombine.high %v5912, %v5944
      %v5953 = vcombine.low %v5772, %v5780
      %v5954 = vcombine.high %v5772, %v5780
      %v5956 = vunpack.c.l.s4 1983009808
      %v5957 = vunpack.c.0.s8 %v5956
      %v5958 = vlaneseq
      %v5959 = vshrl.u32 %v5958, 7
      %v5960 = vsub.s32 %v5957, %v5959
      %v5961 = vrot.slane %v5953, %v5960
      %v5963 = vunpack.c.l.s4 1983009808
      %v5964 = vunpack.c.0.s8 %v5963
      %v5965 = vlaneseq
      %v5966 = vshrl.u32 %v5965, 7
      %v5967 = vsub.s32 %v5964, %v5966
      %v5968 = vrot.slane %v5954, %v5967
      %v5969 = vcombine.low %v5776, %v5784
      %v5970 = vcombine.high %v5776, %v5784
      %v5972 = vunpack.c.l.s4 1983009808
      %v5973 = vunpack.c.0.s8 %v5972
      %v5974 = vlaneseq
      %v5975 = vshrl.u32 %v5974, 7
      %v5976 = vsub.s32 %v5973, %v5975
      %v5977 = vrot.slane %v5969, %v5976
      %v5979 = vunpack.c.l.s4 1983009808
      %v5980 = vunpack.c.0.s8 %v5979
      %v5981 = vlaneseq
      %v5982 = vshrl.u32 %v5981, 7
      %v5983 = vsub.s32 %v5980, %v5982
      %v5984 = vrot.slane %v5970, %v5983
      %v5985 = vcombine.low %v5788, %v5796
      %v5986 = vcombine.high %v5788, %v5796
      %v5988 = vunpack.c.l.s4 1983009808
      %v5989 = vunpack.c.0.s8 %v5988
      %v5990 = vlaneseq
      %v5991 = vshrl.u32 %v5990, 7
      %v5992 = vsub.s32 %v5989, %v5991
      %v5993 = vrot.slane %v5985, %v5992
      %v5995 = vunpack.c.l.s4 1983009808
      %v5996 = vunpack.c.0.s8 %v5995
      %v5997 = vlaneseq
      %v5998 = vshrl.u32 %v5997, 7
      %v5999 = vsub.s32 %v5996, %v5998
      %v6000 = vrot.slane %v5986, %v5999
      %v6001 = vcombine.low %v5792, %v5800
      %v6002 = vcombine.high %v5792, %v5800
      %v6004 = vunpack.c.l.s4 1983009808
      %v6005 = vunpack.c.0.s8 %v6004
      %v6006 = vlaneseq
      %v6007 = vshrl.u32 %v6006, 7
      %v6008 = vsub.s32 %v6005, %v6007
      %v6009 = vrot.slane %v6001, %v6008
      %v6011 = vunpack.c.l.s4 1983009808
      %v6012 = vunpack.c.0.s8 %v6011
      %v6013 = vlaneseq
      %v6014 = vshrl.u32 %v6013, 7
      %v6015 = vsub.s32 %v6012, %v6014
      %v6016 = vrot.slane %v6002, %v6015
      %v6017 = vcombine.low %v5961, %v5977
      %v6018 = vcombine.high %v5961, %v5977
      %v6020 = vunpack.c.l.s4 1934713408
      %v6021 = vunpack.c.0.s8 %v6020
      %v6022 = vlaneseq
      %v6023 = vshrl.u32 %v6022, 7
      %v6024 = vsub.s32 %v6021, %v6023
      %v6025 = vrot.slane %v6017, %v6024
      %v6027 = vunpack.c.l.s4 1934713408
      %v6028 = vunpack.c.0.s8 %v6027
      %v6029 = vlaneseq
      %v6030 = vshrl.u32 %v6029, 7
      %v6031 = vsub.s32 %v6028, %v6030
      %v6032 = vrot.slane %v6018, %v6031
      %v6033 = vcombine.low %v5968, %v5984
      %v6034 = vcombine.high %v5968, %v5984
      %v6036 = vunpack.c.l.s4 1934713408
      %v6037 = vunpack.c.0.s8 %v6036
      %v6038 = vlaneseq
      %v6039 = vshrl.u32 %v6038, 7
      %v6040 = vsub.s32 %v6037, %v6039
      %v6041 = vrot.slane %v6033, %v6040
      %v6043 = vunpack.c.l.s4 1934713408
      %v6044 = vunpack.c.0.s8 %v6043
      %v6045 = vlaneseq
      %v6046 = vshrl.u32 %v6045, 7
      %v6047 = vsub.s32 %v6044, %v6046
      %v6048 = vrot.slane %v6034, %v6047
      %v6049 = vcombine.low %v5993, %v6009
      %v6050 = vcombine.high %v5993, %v6009
      %v6052 = vunpack.c.l.s4 1934713408
      %v6053 = vunpack.c.0.s8 %v6052
      %v6054 = vlaneseq
      %v6055 = vshrl.u32 %v6054, 7
      %v6056 = vsub.s32 %v6053, %v6055
      %v6057 = vrot.slane %v6049, %v6056
      %v6059 = vunpack.c.l.s4 1934713408
      %v6060 = vunpack.c.0.s8 %v6059
      %v6061 = vlaneseq
      %v6062 = vshrl.u32 %v6061, 7
      %v6063 = vsub.s32 %v6060, %v6062
      %v6064 = vrot.slane %v6050, %v6063
      %v6065 = vcombine.low %v6000, %v6016
      %v6066 = vcombine.high %v6000, %v6016
      %v6068 = vunpack.c.l.s4 1934713408
      %v6069 = vunpack.c.0.s8 %v6068
      %v6070 = vlaneseq
      %v6071 = vshrl.u32 %v6070, 7
      %v6072 = vsub.s32 %v6069, %v6071
      %v6073 = vrot.slane %v6065, %v6072
      %v6075 = vunpack.c.l.s4 1934713408
      %v6076 = vunpack.c.0.s8 %v6075
      %v6077 = vlaneseq
      %v6078 = vshrl.u32 %v6077, 7
      %v6079 = vsub.s32 %v6076, %v6078
      %v6080 = vrot.slane %v6066, %v6079
      %v6081 = vcombine.low %v6025, %v6057
      %v6082 = vcombine.high %v6025, %v6057
      %v6083 = vcombine.low %v6032, %v6064
      %v6084 = vcombine.high %v6032, %v6064
      %v6085 = vcombine.low %v6041, %v6073
      %v6086 = vcombine.high %v6041, %v6073
      %v6087 = vcombine.low %v6048, %v6080
      %v6088 = vcombine.high %v6048, %v6080
      %6090 = vrot.lane.b32.xlu0 %v5946, 16
      %v6091 = vpop.permute.xlu0 %6090
      %6094 = vrot.lane.b32.xlu0 %v5947, 32
      %v6095 = vpop.permute.xlu0 %6094
      %6098 = vrot.lane.b32.xlu0 %v5948, 48
      %v6099 = vpop.permute.xlu0 %6098
      %6102 = vrot.lane.b32.xlu0 %v5949, 64
      %v6103 = vpop.permute.xlu0 %6102
      %6106 = vrot.lane.b32.xlu0 %v5950, 80
      %v6107 = vpop.permute.xlu0 %6106
      %6110 = vrot.lane.b32.xlu0 %v5951, 96
      %v6111 = vpop.permute.xlu0 %6110
      %6114 = vrot.lane.b32.xlu0 %v5952, 112
      %v6115 = vpop.permute.xlu0 %6114
      %6118 = vrot.lane.b32.xlu0 %v6082, 16
      %v6119 = vpop.permute.xlu0 %6118
      %6122 = vrot.lane.b32.xlu0 %v6083, 32
      %v6123 = vpop.permute.xlu0 %6122
      %6126 = vrot.lane.b32.xlu0 %v6084, 48
      %v6127 = vpop.permute.xlu0 %6126
      %6130 = vrot.lane.b32.xlu0 %v6085, 64
      %v6131 = vpop.permute.xlu0 %6130
      %6134 = vrot.lane.b32.xlu0 %v6086, 80
      %v6135 = vpop.permute.xlu0 %6134
      %6138 = vrot.lane.b32.xlu0 %v6087, 96
      %v6139 = vpop.permute.xlu0 %6138
      %6142 = vrot.lane.b32.xlu0 %v6088, 112
      %v6143 = vpop.permute.xlu0 %6142
      %v6145 = vsel %vm497, %v5945, %v6091
      %v6146 = vsel %vm499, %v6145, %v6095
      %v6147 = vsel %vm501, %v6146, %v6099
      %v6148 = vsel %vm503, %v6147, %v6103
      %v6149 = vsel %vm505, %v6148, %v6107
      %v6150 = vsel %vm507, %v6149, %v6111
      %v6151 = vsel %vm509, %v6150, %v6115
      %v6152 = vsel %vm497, %v6081, %v6119
      %v6153 = vsel %vm499, %v6152, %v6123
      %v6154 = vsel %vm501, %v6153, %v6127
      %v6155 = vsel %vm503, %v6154, %v6131
      %v6156 = vsel %vm505, %v6155, %v6135
      %v6157 = vsel %vm507, %v6156, %v6139
      %v6158 = vsel %vm509, %v6157, %v6143
      %6159 = vst [vmem:[#allocation5 + $0x70] sm:$0xff] %v6151
      %6160 = vst [vmem:[#allocation5 + $0x78] sm:$0xff] %v6158
      %v6161 = vld [vmem:[#allocation4 + $0x2] sm:$0xff]
      %v6162 = vld [vmem:[#allocation4 + $0xa] sm:$0xff]
      %v6163 = vld [vmem:[#allocation4 + $0x1a] sm:$0xff]
      %v6164 = vld [vmem:[#allocation4 + $0x22] sm:$0xff]
      %v6165 = vld [vmem:[#allocation4 + $0x32] sm:$0xff]
      %v6166 = vld [vmem:[#allocation4 + $0x3a] sm:$0xff]
      %v6167 = vld [vmem:[#allocation4 + $0x4a] sm:$0xff]
      %v6168 = vld [vmem:[#allocation4 + $0x52] sm:$0xff]
      %v6169 = vld [vmem:[#allocation4 + $0x62] sm:$0xff]
      %v6170 = vld [vmem:[#allocation4 + $0x6a] sm:$0xff]
      %v6171 = vld [vmem:[#allocation4 + $0x7a] sm:$0xff]
      %v6172 = vld [vmem:[#allocation4 + $0x82] sm:$0xff]
      %v6173 = vld [vmem:[#allocation4 + $0x92] sm:$0xff]
      %v6174 = vld [vmem:[#allocation4 + $0x9a] sm:$0xff]
      %v6175 = vld [vmem:[#allocation4 + $0xaa] sm:$0xff]
      %v6176 = vld [vmem:[#allocation4 + $0xb2] sm:$0xff]
      %6193 = vrot.lane.b32.xlu0 %v6161, 126
      %v6194 = vpop.permute.xlu0 %6193
      %6195 = vrot.lane.b32.xlu0 %v6162, 126
      %v6196 = vpop.permute.xlu0 %6195
      %6197 = vrot.lane.b32.xlu0 %v6163, 126
      %v6198 = vpop.permute.xlu0 %6197
      %6199 = vrot.lane.b32.xlu0 %v6164, 126
      %v6200 = vpop.permute.xlu0 %6199
      %6201 = vrot.lane.b32.xlu0 %v6165, 126
      %v6202 = vpop.permute.xlu0 %6201
      %6203 = vrot.lane.b32.xlu0 %v6166, 126
      %v6204 = vpop.permute.xlu0 %6203
      %6205 = vrot.lane.b32.xlu0 %v6167, 126
      %v6206 = vpop.permute.xlu0 %6205
      %6207 = vrot.lane.b32.xlu0 %v6168, 126
      %v6208 = vpop.permute.xlu0 %6207
      %6209 = vrot.lane.b32.xlu0 %v6169, 126
      %v6210 = vpop.permute.xlu0 %6209
      %6211 = vrot.lane.b32.xlu0 %v6170, 126
      %v6212 = vpop.permute.xlu0 %6211
      %6213 = vrot.lane.b32.xlu0 %v6171, 126
      %v6214 = vpop.permute.xlu0 %6213
      %6215 = vrot.lane.b32.xlu0 %v6172, 126
      %v6216 = vpop.permute.xlu0 %6215
      %6217 = vrot.lane.b32.xlu0 %v6173, 126
      %v6218 = vpop.permute.xlu0 %6217
      %6219 = vrot.lane.b32.xlu0 %v6174, 126
      %v6220 = vpop.permute.xlu0 %6219
      %6221 = vrot.lane.b32.xlu0 %v6175, 126
      %v6222 = vpop.permute.xlu0 %6221
      %6223 = vrot.lane.b32.xlu0 %v6176, 126
      %v6224 = vpop.permute.xlu0 %6223
      %v6241 = vcombine.low %v6194, %v6202
      %v6242 = vcombine.high %v6194, %v6202
      %v6244 = vunpack.c.l.s4 1983009808
      %v6245 = vunpack.c.0.s8 %v6244
      %v6246 = vlaneseq
      %v6247 = vshrl.u32 %v6246, 7
      %v6248 = vsub.s32 %v6245, %v6247
      %v6249 = vrot.slane %v6241, %v6248
      %v6251 = vunpack.c.l.s4 1983009808
      %v6252 = vunpack.c.0.s8 %v6251
      %v6253 = vlaneseq
      %v6254 = vshrl.u32 %v6253, 7
      %v6255 = vsub.s32 %v6252, %v6254
      %v6256 = vrot.slane %v6242, %v6255
      %v6257 = vcombine.low %v6198, %v6206
      %v6258 = vcombine.high %v6198, %v6206
      %v6260 = vunpack.c.l.s4 1983009808
      %v6261 = vunpack.c.0.s8 %v6260
      %v6262 = vlaneseq
      %v6263 = vshrl.u32 %v6262, 7
      %v6264 = vsub.s32 %v6261, %v6263
      %v6265 = vrot.slane %v6257, %v6264
      %v6267 = vunpack.c.l.s4 1983009808
      %v6268 = vunpack.c.0.s8 %v6267
      %v6269 = vlaneseq
      %v6270 = vshrl.u32 %v6269, 7
      %v6271 = vsub.s32 %v6268, %v6270
      %v6272 = vrot.slane %v6258, %v6271
      %v6273 = vcombine.low %v6210, %v6218
      %v6274 = vcombine.high %v6210, %v6218
      %v6276 = vunpack.c.l.s4 1983009808
      %v6277 = vunpack.c.0.s8 %v6276
      %v6278 = vlaneseq
      %v6279 = vshrl.u32 %v6278, 7
      %v6280 = vsub.s32 %v6277, %v6279
      %v6281 = vrot.slane %v6273, %v6280
      %v6283 = vunpack.c.l.s4 1983009808
      %v6284 = vunpack.c.0.s8 %v6283
      %v6285 = vlaneseq
      %v6286 = vshrl.u32 %v6285, 7
      %v6287 = vsub.s32 %v6284, %v6286
      %v6288 = vrot.slane %v6274, %v6287
      %v6289 = vcombine.low %v6214, %v6222
      %v6290 = vcombine.high %v6214, %v6222
      %v6292 = vunpack.c.l.s4 1983009808
      %v6293 = vunpack.c.0.s8 %v6292
      %v6294 = vlaneseq
      %v6295 = vshrl.u32 %v6294, 7
      %v6296 = vsub.s32 %v6293, %v6295
      %v6297 = vrot.slane %v6289, %v6296
      %v6299 = vunpack.c.l.s4 1983009808
      %v6300 = vunpack.c.0.s8 %v6299
      %v6301 = vlaneseq
      %v6302 = vshrl.u32 %v6301, 7
      %v6303 = vsub.s32 %v6300, %v6302
      %v6304 = vrot.slane %v6290, %v6303
      %v6305 = vcombine.low %v6249, %v6265
      %v6306 = vcombine.high %v6249, %v6265
      %v6308 = vunpack.c.l.s4 1934713408
      %v6309 = vunpack.c.0.s8 %v6308
      %v6310 = vlaneseq
      %v6311 = vshrl.u32 %v6310, 7
      %v6312 = vsub.s32 %v6309, %v6311
      %v6313 = vrot.slane %v6305, %v6312
      %v6315 = vunpack.c.l.s4 1934713408
      %v6316 = vunpack.c.0.s8 %v6315
      %v6317 = vlaneseq
      %v6318 = vshrl.u32 %v6317, 7
      %v6319 = vsub.s32 %v6316, %v6318
      %v6320 = vrot.slane %v6306, %v6319
      %v6321 = vcombine.low %v6256, %v6272
      %v6322 = vcombine.high %v6256, %v6272
      %v6324 = vunpack.c.l.s4 1934713408
      %v6325 = vunpack.c.0.s8 %v6324
      %v6326 = vlaneseq
      %v6327 = vshrl.u32 %v6326, 7
      %v6328 = vsub.s32 %v6325, %v6327
      %v6329 = vrot.slane %v6321, %v6328
      %v6331 = vunpack.c.l.s4 1934713408
      %v6332 = vunpack.c.0.s8 %v6331
      %v6333 = vlaneseq
      %v6334 = vshrl.u32 %v6333, 7
      %v6335 = vsub.s32 %v6332, %v6334
      %v6336 = vrot.slane %v6322, %v6335
      %v6337 = vcombine.low %v6281, %v6297
      %v6338 = vcombine.high %v6281, %v6297
      %v6340 = vunpack.c.l.s4 1934713408
      %v6341 = vunpack.c.0.s8 %v6340
      %v6342 = vlaneseq
      %v6343 = vshrl.u32 %v6342, 7
      %v6344 = vsub.s32 %v6341, %v6343
      %v6345 = vrot.slane %v6337, %v6344
      %v6347 = vunpack.c.l.s4 1934713408
      %v6348 = vunpack.c.0.s8 %v6347
      %v6349 = vlaneseq
      %v6350 = vshrl.u32 %v6349, 7
      %v6351 = vsub.s32 %v6348, %v6350
      %v6352 = vrot.slane %v6338, %v6351
      %v6353 = vcombine.low %v6288, %v6304
      %v6354 = vcombine.high %v6288, %v6304
      %v6356 = vunpack.c.l.s4 1934713408
      %v6357 = vunpack.c.0.s8 %v6356
      %v6358 = vlaneseq
      %v6359 = vshrl.u32 %v6358, 7
      %v6360 = vsub.s32 %v6357, %v6359
      %v6361 = vrot.slane %v6353, %v6360
      %v6363 = vunpack.c.l.s4 1934713408
      %v6364 = vunpack.c.0.s8 %v6363
      %v6365 = vlaneseq
      %v6366 = vshrl.u32 %v6365, 7
      %v6367 = vsub.s32 %v6364, %v6366
      %v6368 = vrot.slane %v6354, %v6367
      %v6369 = vcombine.low %v6313, %v6345
      %v6370 = vcombine.high %v6313, %v6345
      %v6371 = vcombine.low %v6320, %v6352
      %v6372 = vcombine.high %v6320, %v6352
      %v6373 = vcombine.low %v6329, %v6361
      %v6374 = vcombine.high %v6329, %v6361
      %v6375 = vcombine.low %v6336, %v6368
      %v6376 = vcombine.high %v6336, %v6368
      %v6377 = vcombine.low %v6196, %v6204
      %v6378 = vcombine.high %v6196, %v6204
      %v6380 = vunpack.c.l.s4 1983009808
      %v6381 = vunpack.c.0.s8 %v6380
      %v6382 = vlaneseq
      %v6383 = vshrl.u32 %v6382, 7
      %v6384 = vsub.s32 %v6381, %v6383
      %v6385 = vrot.slane %v6377, %v6384
      %v6387 = vunpack.c.l.s4 1983009808
      %v6388 = vunpack.c.0.s8 %v6387
      %v6389 = vlaneseq
      %v6390 = vshrl.u32 %v6389, 7
      %v6391 = vsub.s32 %v6388, %v6390
      %v6392 = vrot.slane %v6378, %v6391
      %v6393 = vcombine.low %v6200, %v6208
      %v6394 = vcombine.high %v6200, %v6208
      %v6396 = vunpack.c.l.s4 1983009808
      %v6397 = vunpack.c.0.s8 %v6396
      %v6398 = vlaneseq
      %v6399 = vshrl.u32 %v6398, 7
      %v6400 = vsub.s32 %v6397, %v6399
      %v6401 = vrot.slane %v6393, %v6400
      %v6403 = vunpack.c.l.s4 1983009808
      %v6404 = vunpack.c.0.s8 %v6403
      %v6405 = vlaneseq
      %v6406 = vshrl.u32 %v6405, 7
      %v6407 = vsub.s32 %v6404, %v6406
      %v6408 = vrot.slane %v6394, %v6407
      %v6409 = vcombine.low %v6212, %v6220
      %v6410 = vcombine.high %v6212, %v6220
      %v6412 = vunpack.c.l.s4 1983009808
      %v6413 = vunpack.c.0.s8 %v6412
      %v6414 = vlaneseq
      %v6415 = vshrl.u32 %v6414, 7
      %v6416 = vsub.s32 %v6413, %v6415
      %v6417 = vrot.slane %v6409, %v6416
      %v6419 = vunpack.c.l.s4 1983009808
      %v6420 = vunpack.c.0.s8 %v6419
      %v6421 = vlaneseq
      %v6422 = vshrl.u32 %v6421, 7
      %v6423 = vsub.s32 %v6420, %v6422
      %v6424 = vrot.slane %v6410, %v6423
      %v6425 = vcombine.low %v6216, %v6224
      %v6426 = vcombine.high %v6216, %v6224
      %v6428 = vunpack.c.l.s4 1983009808
      %v6429 = vunpack.c.0.s8 %v6428
      %v6430 = vlaneseq
      %v6431 = vshrl.u32 %v6430, 7
      %v6432 = vsub.s32 %v6429, %v6431
      %v6433 = vrot.slane %v6425, %v6432
      %v6435 = vunpack.c.l.s4 1983009808
      %v6436 = vunpack.c.0.s8 %v6435
      %v6437 = vlaneseq
      %v6438 = vshrl.u32 %v6437, 7
      %v6439 = vsub.s32 %v6436, %v6438
      %v6440 = vrot.slane %v6426, %v6439
      %v6441 = vcombine.low %v6385, %v6401
      %v6442 = vcombine.high %v6385, %v6401
      %v6444 = vunpack.c.l.s4 1934713408
      %v6445 = vunpack.c.0.s8 %v6444
      %v6446 = vlaneseq
      %v6447 = vshrl.u32 %v6446, 7
      %v6448 = vsub.s32 %v6445, %v6447
      %v6449 = vrot.slane %v6441, %v6448
      %v6451 = vunpack.c.l.s4 1934713408
      %v6452 = vunpack.c.0.s8 %v6451
      %v6453 = vlaneseq
      %v6454 = vshrl.u32 %v6453, 7
      %v6455 = vsub.s32 %v6452, %v6454
      %v6456 = vrot.slane %v6442, %v6455
      %v6457 = vcombine.low %v6392, %v6408
      %v6458 = vcombine.high %v6392, %v6408
      %v6460 = vunpack.c.l.s4 1934713408
      %v6461 = vunpack.c.0.s8 %v6460
      %v6462 = vlaneseq
      %v6463 = vshrl.u32 %v6462, 7
      %v6464 = vsub.s32 %v6461, %v6463
      %v6465 = vrot.slane %v6457, %v6464
      %v6467 = vunpack.c.l.s4 1934713408
      %v6468 = vunpack.c.0.s8 %v6467
      %v6469 = vlaneseq
      %v6470 = vshrl.u32 %v6469, 7
      %v6471 = vsub.s32 %v6468, %v6470
      %v6472 = vrot.slane %v6458, %v6471
      %v6473 = vcombine.low %v6417, %v6433
      %v6474 = vcombine.high %v6417, %v6433
      %v6476 = vunpack.c.l.s4 1934713408
      %v6477 = vunpack.c.0.s8 %v6476
      %v6478 = vlaneseq
      %v6479 = vshrl.u32 %v6478, 7
      %v6480 = vsub.s32 %v6477, %v6479
      %v6481 = vrot.slane %v6473, %v6480
      %v6483 = vunpack.c.l.s4 1934713408
      %v6484 = vunpack.c.0.s8 %v6483
      %v6485 = vlaneseq
      %v6486 = vshrl.u32 %v6485, 7
      %v6487 = vsub.s32 %v6484, %v6486
      %v6488 = vrot.slane %v6474, %v6487
      %v6489 = vcombine.low %v6424, %v6440
      %v6490 = vcombine.high %v6424, %v6440
      %v6492 = vunpack.c.l.s4 1934713408
      %v6493 = vunpack.c.0.s8 %v6492
      %v6494 = vlaneseq
      %v6495 = vshrl.u32 %v6494, 7
      %v6496 = vsub.s32 %v6493, %v6495
      %v6497 = vrot.slane %v6489, %v6496
      %v6499 = vunpack.c.l.s4 1934713408
      %v6500 = vunpack.c.0.s8 %v6499
      %v6501 = vlaneseq
      %v6502 = vshrl.u32 %v6501, 7
      %v6503 = vsub.s32 %v6500, %v6502
      %v6504 = vrot.slane %v6490, %v6503
      %v6505 = vcombine.low %v6449, %v6481
      %v6506 = vcombine.high %v6449, %v6481
      %v6507 = vcombine.low %v6456, %v6488
      %v6508 = vcombine.high %v6456, %v6488
      %v6509 = vcombine.low %v6465, %v6497
      %v6510 = vcombine.high %v6465, %v6497
      %v6511 = vcombine.low %v6472, %v6504
      %v6512 = vcombine.high %v6472, %v6504
      %6514 = vrot.lane.b32.xlu0 %v6370, 16
      %v6515 = vpop.permute.xlu0 %6514
      %6518 = vrot.lane.b32.xlu0 %v6371, 32
      %v6519 = vpop.permute.xlu0 %6518
      %6522 = vrot.lane.b32.xlu0 %v6372, 48
      %v6523 = vpop.permute.xlu0 %6522
      %6526 = vrot.lane.b32.xlu0 %v6373, 64
      %v6527 = vpop.permute.xlu0 %6526
      %6530 = vrot.lane.b32.xlu0 %v6374, 80
      %v6531 = vpop.permute.xlu0 %6530
      %6534 = vrot.lane.b32.xlu0 %v6375, 96
      %v6535 = vpop.permute.xlu0 %6534
      %6538 = vrot.lane.b32.xlu0 %v6376, 112
      %v6539 = vpop.permute.xlu0 %6538
      %6542 = vrot.lane.b32.xlu0 %v6506, 16
      %v6543 = vpop.permute.xlu0 %6542
      %6546 = vrot.lane.b32.xlu0 %v6507, 32
      %v6547 = vpop.permute.xlu0 %6546
      %6550 = vrot.lane.b32.xlu0 %v6508, 48
      %v6551 = vpop.permute.xlu0 %6550
      %6554 = vrot.lane.b32.xlu0 %v6509, 64
      %v6555 = vpop.permute.xlu0 %6554
      %6558 = vrot.lane.b32.xlu0 %v6510, 80
      %v6559 = vpop.permute.xlu0 %6558
      %6562 = vrot.lane.b32.xlu0 %v6511, 96
      %v6563 = vpop.permute.xlu0 %6562
      %6566 = vrot.lane.b32.xlu0 %v6512, 112
      %v6567 = vpop.permute.xlu0 %6566
      %v6569 = vsel %vm497, %v6369, %v6515
      %v6570 = vsel %vm499, %v6569, %v6519
      %v6571 = vsel %vm501, %v6570, %v6523
      %v6572 = vsel %vm503, %v6571, %v6527
      %v6573 = vsel %vm505, %v6572, %v6531
      %v6574 = vsel %vm507, %v6573, %v6535
      %v6575 = vsel %vm509, %v6574, %v6539
      %v6576 = vsel %vm497, %v6505, %v6543
      %v6577 = vsel %vm499, %v6576, %v6547
      %v6578 = vsel %vm501, %v6577, %v6551
      %v6579 = vsel %vm503, %v6578, %v6555
      %v6580 = vsel %vm505, %v6579, %v6559
      %v6581 = vsel %vm507, %v6580, %v6563
      %v6582 = vsel %vm509, %v6581, %v6567
      %6583 = vst [vmem:[#allocation5 + $0x80] sm:$0xff] %v6575
      %6584 = vst [vmem:[#allocation5 + $0x88] sm:$0xff] %v6582
      %v6585 = vld [vmem:[%s3] sm:$0xf]
      %v6586 = vld [vmem:[#allocation5] sm:$0xff]
      %v6587 = vld [vmem:[#allocation5 + $0x8] sm:$0xff]
      %v6588 = vld [vmem:[#allocation5 + $0x10] sm:$0xff]
      %v6589 = vld [vmem:[#allocation5 + $0x18] sm:$0xff]
      %v6590 = vld [vmem:[#allocation5 + $0x20] sm:$0xff]
      %v6591 = vld [vmem:[#allocation5 + $0x28] sm:$0xff]
      %v6592 = vld [vmem:[#allocation5 + $0x30] sm:$0xff]
      %v6593 = vld [vmem:[#allocation5 + $0x38] sm:$0xff]
      %v6594 = vld [vmem:[#allocation5 + $0x40] sm:$0xff]
      %v6595 = vld [vmem:[#allocation5 + $0x48] sm:$0xff]
      %v6596 = vld [vmem:[#allocation5 + $0x50] sm:$0xff]
      %v6597 = vld [vmem:[#allocation5 + $0x58] sm:$0xff]
      %v6598 = vld [vmem:[#allocation5 + $0x60] sm:$0xff]
      %v6599 = vld [vmem:[#allocation5 + $0x68] sm:$0xff]
      %v6600 = vld [vmem:[#allocation5 + $0x70] sm:$0xff]
      %v6601 = vld [vmem:[#allocation5 + $0x78] sm:$0xff]
      %v6602 = vld [vmem:[#allocation5 + $0x80] sm:$0xff]
      %v6603 = vld [vmem:[#allocation5 + $0x88] sm:$0xff]
      %v6604 = vpack.c.bf16 %v6588, %v6586
      %v6605 = vpack.c.bf16 %v6589, %v6587
      %v6606 = vpack.c.bf16 %v6592, %v6590
      %v6607 = vpack.c.bf16 %v6593, %v6591
      %v6608 = vpack.c.bf16 %v6596, %v6594
      %v6609 = vpack.c.bf16 %v6597, %v6595
      %v6610 = vpack.c.bf16 %v6600, %v6598
      %v6611 = vpack.c.bf16 %v6601, %v6599
      %v6612 = vpack.c.bf16 %v6602, %v6602
      %v6613 = vpack.c.bf16 %v6603, %v6603
      %v6614 = vld [vmem:[%s4] sm:$0xff]
      %6616 = vset.pattern.permute.xlu0 0
      %6617 = vperm.xlu0 %6616, %v6614
      %v6618 = vpop.permute.xlu0 %6617
      %vm6620 = vcmask 588800
      %v6622 = vsel %vm6620, %v6585, 0
      %vm6624 = vcmask 1043456
      %v6626 = vsel %vm6624, %v6612, 0
      %v6629 = vsel %vm6624, %v6613, 0
      %6631 = vmatprep.subr.bf16.mxu0 %v6605
      %6632 = vmatpush1.bf16.msra.mxu0 %v6604
      %6633 = vmatprep.subr.bf16.mxu0 %v6607
      %6634 = vmatpush1.bf16.msra.mxu0 %v6606
      %6635 = vmatprep.subr.bf16.mxu0 %v6609
      %6636 = vmatpush1.bf16.msra.mxu0 %v6608
      %6637 = vmatprep.subr.bf16.mxu0 %v6611
      %6638 = vmatpush1.bf16.msra.mxu0 %v6610
      %6639 = vmatprep.subr.bf16.mxu0 %v6629
      %6640 = vmatpush1.bf16.msra.mxu0 %v6626
      %6641 = vmatprep.subr.bf16.mxu0 0
      %6642 = vmatpush1.bf16.msra.mxu0 0
      %6643 = vmatprep.subr.bf16.mxu0 0
      %6644 = vmatpush1.bf16.msra.mxu0 0
      %6645 = vmatprep.subr.bf16.mxu0 0
      %6646 = vmatpush1.bf16.msra.mxu0 0
      %6647 = vmatprep.subr.bf16.mxu0 0
      %6648 = vmatpush1.bf16.msra.mxu0 0
      %6649 = vmatprep.subr.bf16.mxu0 0
      %6650 = vmatpush1.bf16.msra.mxu0 0
      %6651 = vmatprep.subr.bf16.mxu0 0
      %6652 = vmatpush1.bf16.msra.mxu0 0
      %6653 = vmatprep.subr.bf16.mxu0 0
      %6654 = vmatpush1.bf16.msra.mxu0 0
      %6655 = vmatprep.subr.bf16.mxu0 0
      %6656 = vmatpush1.bf16.msra.mxu0 0
      %6657 = vmatprep.subr.bf16.mxu0 0
      %6658 = vmatpush1.bf16.msra.mxu0 0
      %6659 = vmatprep.subr.bf16.mxu0 0
      %6660 = vmatpush1.bf16.msra.mxu0 0
      %6661 = vmatprep.subr.bf16.mxu0 0
      %6662 = vmatpush1.bf16.msra.mxu0 0
      %6663 = vmatprep.mubr.bf16.mxu0 0
      %6664 = vmatmul.mubr.bf16.gmra.mrb[0].mxu0 %v6622
      %v6665 = vpop.f32.mrb[0].mxu0
      %v6666 = vadd.f32 %v6618, %v6665
      %v6667 = vpop.f32.mrb[0].mxu0
      %v6668 = vadd.f32 %v6618, %v6667
      %v6669 = vpop.f32.mrb[0].mxu0
      %v6670 = vpop.f32.mrb[0].mxu0
      %6671 = vdwg.mxu0
      %v6672 = vmax.f32 %v6666, 0.0
      %v6673 = vmax.f32 %v6668, 0.0
      %6674 = vst [vmem:[%s224] sm:$0xff] %v6672
      %6675 = vst [vmem:[%s224 + $0x8] sm:$0xff] %v6673
      %p6676 = scmp.lt.s32.totalorder %s16, 1
      %s6677 = scalar_select %p6676, %s16, 1
      %s6678 = smul.addr %s6677, 2
      %s6679 = smul.addr %s6678, 8
      %s6680 = scalar_lea.vmem %s5, %s6679
      // Predicated region
      $region41: #{double_conv_forward.1} parent=39 // pred_check
        %p6681 = pneg %p144
      $region42: #{double_conv_forward.1} parent=39 // pred_check_branch
        %6683 = sbr.rel (%p6681) target = $region44
      $region43: #{double_conv_forward.1} parent=39 // pred_region
        _
      $region44: #{double_conv_forward.1} parent=39 // pred_fallthru
        _
    $region40: #{double_conv_forward.1} parent=5 // pred_fallthru
      _
    %p6684 = scmp.le.s32.totalorder 2, %s11
    // Predicated region
    $region45: #{double_conv_forward.1} parent=5 // pred_check
      %p6685 = pneg %p6684
    $region46: #{double_conv_forward.1} parent=5 // pred_check_branch
      %6687 = sbr.rel (%p6685) target = $region48
    $region47: #{double_conv_forward.1} parent=5 // pred_region
      %s6688 = ssub.s32 %s11, 2
      // Predicated region
      $region49: #{double_conv_forward.1} parent=47 // pred_check
        %p6689 = pneg %p150
      $region50: #{double_conv_forward.1} parent=47 // pred_check_branch
        %6691 = sbr.rel (%p6689) target = $region52
      $region51: #{double_conv_forward.1} parent=47 // pred_region
        %p6692 = scmp.lt.s32.totalorder %s17, 1
        %s6693 = scalar_select %p6692, %s17, 1
        %s6694 = smul.addr %s6693, 2
        %s6695 = smul.addr %s6694, 8
        %s6696 = scalar_lea.vmem %s5, %s6695
      $region52: #{double_conv_forward.1} parent=47 // pred_fallthru
        _
    $region48: #{double_conv_forward.1} parent=5 // pred_fallthru
      _
  $region6: #{double_conv_forward.1} parent=0 // loop_footer
    %s15 = sadd.s32 1, %s11
  $region7: #{double_conv_forward.1} parent=0 // loop_footer_branch
    %10 = sbr.rel target = $region3
  $region8: #{double_conv_forward.1} parent=0 // loop_exit
    _

</llo_original>
